<compile_context>
chip_gen: v6e
topology: v6e:2x2x1
jax: 0.10.0
libtpu: 0.0.40
codegen_flags: <defaults>
</compile_context>

<pallas_src>
import jax
import jax.numpy as jnp
from jax.experimental import pallas as pl
from jax.experimental.pallas import tpu as pltpu


HEAD_DIMS = (4, 3, 3, 2)            # type, polarity, tense, certainty (static!)
_HEAD_OFFS = (0, 4, 7, 10, 12)      # static split offsets into padded logits
N_HEADS_PAD = 128                   # pad concatenated head outputs to 128 lanes


# -----------------------------------------------------------------------------
# Single fused kernel: whole forward pass, weights resident in VMEM
# -----------------------------------------------------------------------------
def fused_model_kernel(x_ref, w0_ref, t0_ref, w1_ref, t1_ref, w2_ref, t2_ref,
                       wh_ref, bh_ref, o_ref):
    """x -> [Lin+BN+LeakyReLU] x3 -> concatenated heads. Dropout = identity (eval)."""
    h = x_ref[...]                                                # (B, D_in) bf16

    def block(h, w_ref, t_ref):
        # Linear with BN scale pre-folded into W; BN shift + bias folded into t.
        y = jnp.dot(h, w_ref[...], preferred_element_type=jnp.float32) + t_ref[...]
        y = jnp.where(y > 0, y, 0.01 * y)                         # LeakyReLU(0.01)
        return y.astype(jnp.bfloat16)

    h = block(h, w0_ref, t0_ref)                                  # (B, 1024)
    h = block(h, w1_ref, t1_ref)                                  # (B, 1024)
    h = block(h, w2_ref, t2_ref)                                  # (B, 512)

    # All 4 classifier heads as one lane-dense matmul (padded to 128 cols).
    o_ref[...] = (jnp.dot(h, wh_ref[...], preferred_element_type=jnp.float32)
                  + bh_ref[...])


def base_model_forward(params, x):
    """Runs the fused Pallas kernel and splits the padded logits into 4 heads."""
    B = x.shape[0]
    w0, t0 = params["layer0"]
    w1, t1 = params["layer1"]
    w2, t2 = params["layer2"]
    wh, bh = params["heads"]

    x_bf16 = x.astype(jnp.bfloat16)
    vmem = pl.BlockSpec(memory_space=pltpu.MemorySpace.VMEM)

    logits = pl.pallas_call(
        fused_model_kernel,
        out_shape=jax.ShapeDtypeStruct((B, N_HEADS_PAD), jnp.float32),
        in_specs=[vmem] * 9,
        out_specs=vmem,
        compiler_params=pltpu.CompilerParams(vmem_limit_bytes=64 << 20),
    )(x_bf16, w0, t0, w1, t1, w2, t2, wh, bh)

    # Static slices (Python ints) — safe under jit.
    return tuple(logits[:, _HEAD_OFFS[i]:_HEAD_OFFS[i + 1]]
                 for i in range(len(HEAD_DIMS)))


# -----------------------------------------------------------------------------
# Parameter construction (deterministic, synthetic)
# -----------------------------------------------------------------------------
def _linear_params(key, in_f, out_f):
    kw, kb = jax.random.split(key)
    bound = 1.0 / jnp.sqrt(jnp.float32(in_f))
    w = jax.random.uniform(kw, (in_f, out_f), jnp.float32, -bound, bound)
    b = jax.random.uniform(kb, (out_f,), jnp.float32, -bound, bound)
    return w, b


def _bn_params(key, num_f):
    k1, k2, k3, k4 = jax.random.split(key, 4)
    gamma = 1.0 + 0.1 * jax.random.normal(k1, (num_f,), jnp.float32)
    beta = 0.1 * jax.random.normal(k2, (num_f,), jnp.float32)
    running_mean = 0.05 * jax.random.normal(k3, (num_f,), jnp.float32)
    running_var = 1.0 + 0.1 * jax.random.uniform(k4, (num_f,), jnp.float32)
    return gamma, beta, running_mean, running_var


def _fold_bn_into_linear(w, b, gamma, beta, mean, var, eps=1e-5):
    """y = ((x@W + b) - mean)/sqrt(var+eps)*gamma + beta
         = x @ (W * s) + t,  s = gamma/sqrt(var+eps),  t = (b - mean)*s + beta."""
    s = gamma / jnp.sqrt(var + eps)
    w_folded = w * s[None, :]
    t = (b - mean) * s + beta
    return w_folded, t.reshape(1, -1)


def build_params(input_dim, key):
    keys = jax.random.split(key, 10)
    params = {}
    dims = [(input_dim, 1024), (1024, 1024), (1024, 512)]
    for i, (din, dout) in enumerate(dims):
        w, b = _linear_params(keys[2 * i], din, dout)
        g, be, mu, var = _bn_params(keys[2 * i + 1], dout)
        wf, t = _fold_bn_into_linear(w, b, g, be, mu, var)
        params[f"layer{i}"] = (wf.astype(jnp.bfloat16), t)          # bf16 W, f32 t

    # Classifier heads: concat weights/biases, zero-pad to 128 lanes.
    hw, hb = [], []
    for i, hd in enumerate(HEAD_DIMS):
        w, b = _linear_params(keys[6 + i], 512, hd)
        hw.append(w)
        hb.append(b)
    w_cat = jnp.concatenate(hw, axis=1)                             # (512, 12)
    b_cat = jnp.concatenate(hb, axis=0)                             # (12,)
    n_total = w_cat.shape[1]
    w_cat = jnp.pad(w_cat, ((0, 0), (0, N_HEADS_PAD - n_total)))
    b_cat = jnp.pad(b_cat, (0, N_HEADS_PAD - n_total))
    params["heads"] = (w_cat.astype(jnp.bfloat16),
                       b_cat.reshape(1, N_HEADS_PAD).astype(jnp.float32))
    return params


# -----------------------------------------------------------------------------
# Pure-JAX reference (mirrors the kernel's bf16 weight/activation quantization)
# -----------------------------------------------------------------------------
def reference_forward(params, x):
    h = x.astype(jnp.bfloat16)
    for i in range(3):
        w, t = params[f"layer{i}"]
        y = jnp.dot(h.astype(jnp.float32), w.astype(jnp.float32),
                    precision=jax.lax.Precision.HIGHEST) + t
        y = jnp.where(y > 0, y, 0.01 * y)
        h = y.astype(jnp.bfloat16)
    w, b = params["heads"]
    logits = jnp.dot(h.astype(jnp.float32), w.astype(jnp.float32),
                     precision=jax.lax.Precision.HIGHEST) + b
    return tuple(logits[:, _HEAD_OFFS[i]:_HEAD_OFFS[i + 1]]
                 for i in range(len(HEAD_DIMS)))


if __name__ == "__main__":
    # Small TPU-friendly shapes: batch=8 (sublane multiple), input_dim=256
    # (stands in for the real 9351-dim input; architecture dims 1024/1024/512 kept).
    B, INPUT_DIM = 8, 256
    key = jax.random.PRNGKey(0)
    kx, kp = jax.random.split(key)

    x = jax.random.normal(kx, (B, INPUT_DIM), jnp.float32)
    params = build_params(INPUT_DIM, kp)

    outs = jax.jit(base_model_forward)(params, x)
    outs = jax.block_until_ready(outs)

    refs = reference_forward(params, x)
    expected_shapes = [(B, 4), (B, 3), (B, 3), (B, 2)]
    for o, r, es in zip(outs, refs, expected_shapes):
        assert o.shape == es, (o.shape, es)
        assert jnp.allclose(o, r, atol=2e-2, rtol=2e-2), \
            float(jnp.max(jnp.abs(o - r)))

    # TODO(synk): training-mode BatchNorm (batch-stat update) and Dropout sampling
    # are not implemented; this kernel covers eval-mode inference only.
    print("KERNEL_OK")
</pallas_src>

<mosaic_0001>
module attributes {stable_mosaic.version = 11 : i64} {
  func.func @fused_model_kernel(%arg0: memref<8x256xbf16, #tpu.memory_space<vmem>>, %arg1: memref<256x1024xbf16, #tpu.memory_space<vmem>>, %arg2: memref<1x1024xf32, #tpu.memory_space<vmem>>, %arg3: memref<1024x1024xbf16, #tpu.memory_space<vmem>>, %arg4: memref<1x1024xf32, #tpu.memory_space<vmem>>, %arg5: memref<1024x512xbf16, #tpu.memory_space<vmem>>, %arg6: memref<1x512xf32, #tpu.memory_space<vmem>>, %arg7: memref<512x128xbf16, #tpu.memory_space<vmem>>, %arg8: memref<1x128xf32, #tpu.memory_space<vmem>>, %arg9: memref<8x128xf32, #tpu.memory_space<vmem>>) attributes {dimension_semantics = [], scalar_prefetch = 0 : i64, scratch_operands = 0 : i64, tpu.core_type = #tpu.core_type<tc>} {
    %c0 = arith.constant 0 : index
    %c0_0 = arith.constant 0 : index
    %0 = vector.load %arg0[%c0, %c0_0] : memref<8x256xbf16, #tpu.memory_space<vmem>>, vector<8x256xbf16>
    %c0_1 = arith.constant 0 : index
    %c0_2 = arith.constant 0 : index
    %1 = vector.load %arg1[%c0_1, %c0_2] : memref<256x1024xbf16, #tpu.memory_space<vmem>>, vector<256x1024xbf16>
    %cst = arith.constant dense<0.000000e+00> : vector<8x1024xf32>
    %2 = tpu.matmul %0, %1, %cst {dimension_numbers = #tpu.dot_dimension_numbers<[1], [0], [0], [1], [0, 0, 1, 1], [], []>} : vector<8x256xbf16>, vector<256x1024xbf16>, vector<8x1024xf32> -> vector<8x1024xf32>
    %c0_3 = arith.constant 0 : index
    %c0_4 = arith.constant 0 : index
    %3 = vector.load %arg2[%c0_3, %c0_4] : memref<1x1024xf32, #tpu.memory_space<vmem>>, vector<1x1024xf32>
    %4 = vector.broadcast %3 : vector<1x1024xf32> to vector<8x1024xf32>
    %5 = arith.addf %2, %4 : vector<8x1024xf32>
    %cst_5 = arith.constant 0.000000e+00 : f32
    %6 = vector.broadcast %cst_5 : f32 to vector<8x1024xf32>
    %7 = arith.cmpf ogt, %5, %6 : vector<8x1024xf32>
    %cst_6 = arith.constant 0.00999999977 : f32
    %8 = vector.broadcast %cst_6 : f32 to vector<8x1024xf32>
    %9 = arith.mulf %8, %5 : vector<8x1024xf32>
    %10 = arith.select %7, %5, %9 : vector<8x1024xi1>, vector<8x1024xf32>
    %11 = arith.truncf %10 : vector<8x1024xf32> to vector<8x1024xbf16>
    %c0_7 = arith.constant 0 : index
    %c0_8 = arith.constant 0 : index
    %12 = vector.load %arg3[%c0_7, %c0_8] : memref<1024x1024xbf16, #tpu.memory_space<vmem>>, vector<1024x1024xbf16>
    %cst_9 = arith.constant dense<0.000000e+00> : vector<8x1024xf32>
    %13 = tpu.matmul %11, %12, %cst_9 {dimension_numbers = #tpu.dot_dimension_numbers<[1], [0], [0], [1], [0, 0, 1, 1], [], []>} : vector<8x1024xbf16>, vector<1024x1024xbf16>, vector<8x1024xf32> -> vector<8x1024xf32>
    %c0_10 = arith.constant 0 : index
    %c0_11 = arith.constant 0 : index
    %14 = vector.load %arg4[%c0_10, %c0_11] : memref<1x1024xf32, #tpu.memory_space<vmem>>, vector<1x1024xf32>
    %15 = vector.broadcast %14 : vector<1x1024xf32> to vector<8x1024xf32>
    %16 = arith.addf %13, %15 : vector<8x1024xf32>
    %cst_12 = arith.constant 0.000000e+00 : f32
    %17 = vector.broadcast %cst_12 : f32 to vector<8x1024xf32>
    %18 = arith.cmpf ogt, %16, %17 : vector<8x1024xf32>
    %cst_13 = arith.constant 0.00999999977 : f32
    %19 = vector.broadcast %cst_13 : f32 to vector<8x1024xf32>
    %20 = arith.mulf %19, %16 : vector<8x1024xf32>
    %21 = arith.select %18, %16, %20 : vector<8x1024xi1>, vector<8x1024xf32>
    %22 = arith.truncf %21 : vector<8x1024xf32> to vector<8x1024xbf16>
    %c0_14 = arith.constant 0 : index
    %c0_15 = arith.constant 0 : index
    %23 = vector.load %arg5[%c0_14, %c0_15] : memref<1024x512xbf16, #tpu.memory_space<vmem>>, vector<1024x512xbf16>
    %cst_16 = arith.constant dense<0.000000e+00> : vector<8x512xf32>
    %24 = tpu.matmul %22, %23, %cst_16 {dimension_numbers = #tpu.dot_dimension_numbers<[1], [0], [0], [1], [0, 0, 1, 1], [], []>} : vector<8x1024xbf16>, vector<1024x512xbf16>, vector<8x512xf32> -> vector<8x512xf32>
    %c0_17 = arith.constant 0 : index
    %c0_18 = arith.constant 0 : index
    %25 = vector.load %arg6[%c0_17, %c0_18] : memref<1x512xf32, #tpu.memory_space<vmem>>, vector<1x512xf32>
    %26 = vector.broadcast %25 : vector<1x512xf32> to vector<8x512xf32>
    %27 = arith.addf %24, %26 : vector<8x512xf32>
    %cst_19 = arith.constant 0.000000e+00 : f32
    %28 = vector.broadcast %cst_19 : f32 to vector<8x512xf32>
    %29 = arith.cmpf ogt, %27, %28 : vector<8x512xf32>
    %cst_20 = arith.constant 0.00999999977 : f32
    %30 = vector.broadcast %cst_20 : f32 to vector<8x512xf32>
    %31 = arith.mulf %30, %27 : vector<8x512xf32>
    %32 = arith.select %29, %27, %31 : vector<8x512xi1>, vector<8x512xf32>
    %33 = arith.truncf %32 : vector<8x512xf32> to vector<8x512xbf16>
    %c0_21 = arith.constant 0 : index
    %c0_22 = arith.constant 0 : index
    %34 = vector.load %arg7[%c0_21, %c0_22] : memref<512x128xbf16, #tpu.memory_space<vmem>>, vector<512x128xbf16>
    %cst_23 = arith.constant dense<0.000000e+00> : vector<8x128xf32>
    %35 = tpu.matmul %33, %34, %cst_23 {dimension_numbers = #tpu.dot_dimension_numbers<[1], [0], [0], [1], [0, 0, 1, 1], [], []>} : vector<8x512xbf16>, vector<512x128xbf16>, vector<8x128xf32> -> vector<8x128xf32>
    %c0_24 = arith.constant 0 : index
    %c0_25 = arith.constant 0 : index
    %36 = vector.load %arg8[%c0_24, %c0_25] : memref<1x128xf32, #tpu.memory_space<vmem>>, vector<1x128xf32>
    %37 = vector.broadcast %36 : vector<1x128xf32> to vector<8x128xf32>
    %38 = arith.addf %35, %37 : vector<8x128xf32>
    %c0_26 = arith.constant 0 : index
    %c0_27 = arith.constant 0 : index
    %39 = vector.load %arg9[%c0_26, %c0_27] : memref<8x128xf32, #tpu.memory_space<vmem>>, vector<8x128xf32>
    tpu.vector_store %arg9[%c0_26, %c0_27], %38 {strides = array<i32>} : memref<8x128xf32, #tpu.memory_space<vmem>>, vector<8x128xf32>,
    return
  }
}

</mosaic_0001>

<llo_original>
// kernel: base_model_forward.1
$region0: #{base_model_forward.1}
  #allocation0 [shape = 'u32[]', space=smem, size = 0x4, offset = 0x4, fixed_abs, tag = 'smem constant byte address 0x4 - core index']
  #allocation1 [shape = 'u32[144,128]{1,0:T(1,128)}', space=vmem, size = 0x12000, scoped, tag = 'internal scratch']
  %s0 = inlined_call_operand.vmem [shape: bf16[8,256], index: 0, kind: input, shape index: {}]
  %s1 = inlined_call_operand.hbm [shape: bf16[256,1024], index: 1, kind: input, shape index: {}]
  %s2 = inlined_call_operand.hbm [shape: f32[1,1024], index: 2, kind: input, shape index: {}]
  %s3 = inlined_call_operand.hbm [shape: bf16[1024,1024], index: 3, kind: input, shape index: {}]
  %s4 = inlined_call_operand.hbm [shape: f32[1,1024], index: 4, kind: input, shape index: {}]
  %s5 = inlined_call_operand.hbm [shape: bf16[1024,512], index: 5, kind: input, shape index: {}]
  %s6 = inlined_call_operand.hbm [shape: f32[1,512], index: 6, kind: input, shape index: {}]
  %s7 = inlined_call_operand.hbm [shape: bf16[512,128], index: 7, kind: input, shape index: {}]
  %s8 = inlined_call_operand.hbm [shape: f32[1,128], index: 8, kind: input, shape index: {}]
  %s9 = inlined_call_operand.vmem [shape: f32[8,128], index: 9, kind: output, shape index: {}]
  %s10 = sld [smem:[#allocation0]]
  $region78: #{base_model_forward.1} parent=0
    _
  %s12 = ssub.s32 1, %s10
  %s13 = scalar_select 0, %s12, %s10
  $region1: #{base_model_forward.1} parent=0
    #allocation2 [shape = 'u8[524288]{0}', space=vmem, size = 0x80000, scoped, tag = 'input window, operand 1, single buffered']
    #allocation3 [shape = 's32[1]{0}', space=sflag, size = 0x4, scoped, tag = 'scoped memory for base_model_forward.1']
    #allocation4 [shape = 'u8[4096]{0}', space=vmem, size = 0x1000, scoped, tag = 'input window, operand 2, single buffered']
    #allocation5 [shape = 's32[1]{0}', space=sflag, size = 0x4, scoped, tag = 'scoped memory for base_model_forward.1']
    #allocation6 [shape = 'u8[2097152]{0}', space=vmem, size = 0x200000, scoped, tag = 'input window, operand 3, single buffered']
    #allocation7 [shape = 'u8[4096]{0}', space=vmem, size = 0x1000, scoped, tag = 'input window, operand 4, single buffered']
    #allocation8 [shape = 's32[1]{0}', space=sflag, size = 0x4, scoped, tag = 'scoped memory for base_model_forward.1']
    #allocation9 [shape = 'u8[1048576]{0}', space=vmem, size = 0x100000, scoped, tag = 'input window, operand 5, single buffered']
    #allocation10 [shape = 'u8[2048]{0}', space=vmem, size = 0x800, scoped, tag = 'input window, operand 6, single buffered']
    #allocation11 [shape = 's32[1]{0}', space=sflag, size = 0x4, scoped, tag = 'scoped memory for base_model_forward.1']
    #allocation12 [shape = 'u8[131072]{0}', space=vmem, size = 0x20000, scoped, tag = 'input window, operand 7, single buffered']
    #allocation13 [shape = 'u8[512]{0}', space=vmem, size = 0x400, scoped, tag = 'input window, operand 8, single buffered']
    #allocation14 [shape = 's32[1]{0}', space=sflag, size = 0x4, scoped, tag = 'scoped memory for base_model_forward.1']
    %14 = vsyncpa [#allocation3], 0
    %15 = vsyncpa [#allocation5], 0
    %16 = vsyncpa [#allocation8], 0
    %17 = vsyncpa [#allocation11], 0
    %18 = vsyncpa [#allocation14], 0
    // Predicated region
    $region2: #{base_model_forward.1} parent=1 // pred_check
      _
    $region3: #{base_model_forward.1} parent=1 // pred_check_branch
      %20 = sbr.rel (0) target = $region5
    $region4: #{base_model_forward.1} parent=1 // pred_region
      _
    $region5: #{base_model_forward.1} parent=1 // pred_fallthru
      _
    // Predicated region
    $region6: #{base_model_forward.1} parent=1 // pred_check
      _
    $region7: #{base_model_forward.1} parent=1 // pred_check_branch
      %22 = sbr.rel (0) target = $region9
    $region8: #{base_model_forward.1} parent=1 // pred_region
      %s24 = ssub.s32 16384, 16384
      %25 = vsyncadd [#allocation3], %s24
      %s26 = sshll.u32 [#allocation2], 4
      %s27 = int_to_ptr.vmem [resolvable:$true] %s26
      %32 = dma.hbm_to_vmem [thread:$0]  %s1, 16384, %s27, [#allocation3], 512, 512, 32
    $region9: #{base_model_forward.1} parent=1 // pred_fallthru
      _
    // Predicated region
    $region10: #{base_model_forward.1} parent=1 // pred_check
      _
    $region11: #{base_model_forward.1} parent=1 // pred_check_branch
      %34 = sbr.rel (0) target = $region13
    $region12: #{base_model_forward.1} parent=1 // pred_region
      %s36 = ssub.s32 128, 128
      %37 = vsyncadd [#allocation5], %s36
      %s39 = sshll.u32 [#allocation4], 4
      %s40 = int_to_ptr.vmem [resolvable:$true] %s39
      %42 = dma.hbm_to_vmem [thread:$0]  %s2, 128, %s40, [#allocation5]
    $region13: #{base_model_forward.1} parent=1 // pred_fallthru
      _
    // Predicated region
    $region14: #{base_model_forward.1} parent=1 // pred_check
      _
    $region15: #{base_model_forward.1} parent=1 // pred_check_branch
      %44 = sbr.rel (0) target = $region17
    $region16: #{base_model_forward.1} parent=1 // pred_region
      %s46 = ssub.s32 65536, 65536
      %47 = vsyncadd [#allocation5], %s46
      %s48 = sshll.u32 [#allocation6], 4
      %s49 = int_to_ptr.vmem [resolvable:$true] %s48
      %54 = dma.hbm_to_vmem [thread:$0]  %s3, 65536, %s49, [#allocation5], 512, 512, 32
    $region17: #{base_model_forward.1} parent=1 // pred_fallthru
      _
    // Predicated region
    $region18: #{base_model_forward.1} parent=1 // pred_check
      _
    $region19: #{base_model_forward.1} parent=1 // pred_check_branch
      %56 = sbr.rel (0) target = $region21
    $region20: #{base_model_forward.1} parent=1 // pred_region
      %s58 = ssub.s32 128, 128
      %59 = vsyncadd [#allocation8], %s58
      %s61 = sshll.u32 [#allocation7], 4
      %s62 = int_to_ptr.vmem [resolvable:$true] %s61
      %64 = dma.hbm_to_vmem [thread:$0]  %s4, 128, %s62, [#allocation8]
    $region21: #{base_model_forward.1} parent=1 // pred_fallthru
      _
    // Predicated region
    $region22: #{base_model_forward.1} parent=1 // pred_check
      _
    $region23: #{base_model_forward.1} parent=1 // pred_check_branch
      %66 = sbr.rel (0) target = $region25
    $region24: #{base_model_forward.1} parent=1 // pred_region
      %s68 = ssub.s32 32768, 32768
      %69 = vsyncadd [#allocation8], %s68
      %s70 = sshll.u32 [#allocation9], 4
      %s71 = int_to_ptr.vmem [resolvable:$true] %s70
      %76 = dma.hbm_to_vmem [thread:$0]  %s5, 32768, %s71, [#allocation8], 256, 256, 16
    $region25: #{base_model_forward.1} parent=1 // pred_fallthru
      _
    // Predicated region
    $region26: #{base_model_forward.1} parent=1 // pred_check
      _
    $region27: #{base_model_forward.1} parent=1 // pred_check_branch
      %78 = sbr.rel (0) target = $region29
    $region28: #{base_model_forward.1} parent=1 // pred_region
      %s80 = ssub.s32 64, 64
      %81 = vsyncadd [#allocation11], %s80
      %s83 = sshll.u32 [#allocation10], 4
      %s84 = int_to_ptr.vmem [resolvable:$true] %s83
      %86 = dma.hbm_to_vmem [thread:$0]  %s6, 64, %s84, [#allocation11]
    $region29: #{base_model_forward.1} parent=1 // pred_fallthru
      _
    // Predicated region
    $region30: #{base_model_forward.1} parent=1 // pred_check
      _
    $region31: #{base_model_forward.1} parent=1 // pred_check_branch
      %88 = sbr.rel (0) target = $region33
    $region32: #{base_model_forward.1} parent=1 // pred_region
      %s90 = ssub.s32 4096, 4096
      %91 = vsyncadd [#allocation11], %s90
      %s92 = sshll.u32 [#allocation12], 4
      %s93 = int_to_ptr.vmem [resolvable:$true] %s92
      %98 = dma.hbm_to_vmem [thread:$0]  %s7, 4096, %s93, [#allocation11], 64, 64, 4
    $region33: #{base_model_forward.1} parent=1 // pred_fallthru
      _
    // Predicated region
    $region34: #{base_model_forward.1} parent=1 // pred_check
      _
    $region35: #{base_model_forward.1} parent=1 // pred_check_branch
      %100 = sbr.rel (0) target = $region37
    $region36: #{base_model_forward.1} parent=1 // pred_region
      %s102 = ssub.s32 16, 16
      %103 = vsyncadd [#allocation14], %s102
      %s105 = sshll.u32 [#allocation13], 4
      %s106 = int_to_ptr.vmem [resolvable:$true] %s105
      %108 = dma.hbm_to_vmem [thread:$0]  %s8, 16, %s106, [#allocation14]
    $region37: #{base_model_forward.1} parent=1 // pred_fallthru
      _
    // Predicated region
    $region38: #{base_model_forward.1} parent=1 // pred_check
      _
    $region39: #{base_model_forward.1} parent=1 // pred_check_branch
      %110 = sbr.rel (0) target = $region41
    $region40: #{base_model_forward.1} parent=1 // pred_region
      %111 = dma.done [#allocation3], 16384
    $region41: #{base_model_forward.1} parent=1 // pred_fallthru
      _
    // Predicated region
    $region42: #{base_model_forward.1} parent=1 // pred_check
      _
    $region43: #{base_model_forward.1} parent=1 // pred_check_branch
      %113 = sbr.rel (0) target = $region45
    $region44: #{base_model_forward.1} parent=1 // pred_region
      %114 = dma.done [#allocation5], 128
    $region45: #{base_model_forward.1} parent=1 // pred_fallthru
      _
    // Predicated region
    $region46: #{base_model_forward.1} parent=1 // pred_check
      _
    $region47: #{base_model_forward.1} parent=1 // pred_check_branch
      %116 = sbr.rel (0) target = $region49
    $region48: #{base_model_forward.1} parent=1 // pred_region
      %117 = dma.done [#allocation5], 65536
    $region49: #{base_model_forward.1} parent=1 // pred_fallthru
      _
    // Predicated region
    $region50: #{base_model_forward.1} parent=1 // pred_check
      _
    $region51: #{base_model_forward.1} parent=1 // pred_check_branch
      %119 = sbr.rel (0) target = $region53
    $region52: #{base_model_forward.1} parent=1 // pred_region
      %120 = dma.done [#allocation8], 128
    $region53: #{base_model_forward.1} parent=1 // pred_fallthru
      _
    // Predicated region
    $region54: #{base_model_forward.1} parent=1 // pred_check
      _
    $region55: #{base_model_forward.1} parent=1 // pred_check_branch
      %122 = sbr.rel (0) target = $region57
    $region56: #{base_model_forward.1} parent=1 // pred_region
      %123 = dma.done [#allocation8], 32768
    $region57: #{base_model_forward.1} parent=1 // pred_fallthru
      _
    // Predicated region
    $region58: #{base_model_forward.1} parent=1 // pred_check
      _
    $region59: #{base_model_forward.1} parent=1 // pred_check_branch
      %125 = sbr.rel (0) target = $region61
    $region60: #{base_model_forward.1} parent=1 // pred_region
      %126 = dma.done [#allocation11], 64
    $region61: #{base_model_forward.1} parent=1 // pred_fallthru
      _
    // Predicated region
    $region62: #{base_model_forward.1} parent=1 // pred_check
      _
    $region63: #{base_model_forward.1} parent=1 // pred_check_branch
      %128 = sbr.rel (0) target = $region65
    $region64: #{base_model_forward.1} parent=1 // pred_region
      %129 = dma.done [#allocation11], 4096
    $region65: #{base_model_forward.1} parent=1 // pred_fallthru
      _
    // Predicated region
    $region66: #{base_model_forward.1} parent=1 // pred_check
      _
    $region67: #{base_model_forward.1} parent=1 // pred_check_branch
      %131 = sbr.rel (0) target = $region69
    $region68: #{base_model_forward.1} parent=1 // pred_region
      %132 = dma.done [#allocation14], 16
    $region69: #{base_model_forward.1} parent=1 // pred_fallthru
      _
    %v134 = vld [vmem:[%s0] sm:$0xff]
    %v135 = vld [vmem:[#allocation2] sm:$0xff]
    %v136 = vld [vmem:[#allocation2 + $0x8] sm:$0xff]
    %v137 = vld [vmem:[#allocation2 + $0x10] sm:$0xff]
    %v138 = vld [vmem:[#allocation2 + $0x18] sm:$0xff]
    %v139 = vld [vmem:[#allocation2 + $0x20] sm:$0xff]
    %v140 = vld [vmem:[#allocation2 + $0x28] sm:$0xff]
    %v141 = vld [vmem:[#allocation2 + $0x30] sm:$0xff]
    %v142 = vld [vmem:[#allocation2 + $0x38] sm:$0xff]
    %v143 = vld [vmem:[#allocation2 + $0x40] sm:$0xff]
    %v144 = vld [vmem:[#allocation2 + $0x48] sm:$0xff]
    %v145 = vld [vmem:[#allocation2 + $0x50] sm:$0xff]
    %v146 = vld [vmem:[#allocation2 + $0x58] sm:$0xff]
    %v147 = vld [vmem:[#allocation2 + $0x60] sm:$0xff]
    %v148 = vld [vmem:[#allocation2 + $0x68] sm:$0xff]
    %v149 = vld [vmem:[#allocation2 + $0x70] sm:$0xff]
    %v150 = vld [vmem:[#allocation2 + $0x78] sm:$0xff]
    %v151 = vld [vmem:[#allocation2 + $0x80] sm:$0xff]
    %v152 = vld [vmem:[#allocation2 + $0x88] sm:$0xff]
    %v153 = vld [vmem:[#allocation2 + $0x90] sm:$0xff]
    %v154 = vld [vmem:[#allocation2 + $0x98] sm:$0xff]
    %v155 = vld [vmem:[#allocation2 + $0xa0] sm:$0xff]
    %v156 = vld [vmem:[#allocation2 + $0xa8] sm:$0xff]
    %v157 = vld [vmem:[#allocation2 + $0xb0] sm:$0xff]
    %v158 = vld [vmem:[#allocation2 + $0xb8] sm:$0xff]
    %v159 = vld [vmem:[#allocation2 + $0xc0] sm:$0xff]
    %v160 = vld [vmem:[#allocation2 + $0xc8] sm:$0xff]
    %v161 = vld [vmem:[#allocation2 + $0xd0] sm:$0xff]
    %v162 = vld [vmem:[#allocation2 + $0xd8] sm:$0xff]
    %v163 = vld [vmem:[#allocation2 + $0xe0] sm:$0xff]
    %v164 = vld [vmem:[#allocation2 + $0xe8] sm:$0xff]
    %v165 = vld [vmem:[#allocation2 + $0xf0] sm:$0xff]
    %v166 = vld [vmem:[#allocation2 + $0xf8] sm:$0xff]
    %v167 = vld [vmem:[#allocation2 + $0x100] sm:$0xff]
    %v168 = vld [vmem:[#allocation2 + $0x108] sm:$0xff]
    %v169 = vld [vmem:[#allocation2 + $0x110] sm:$0xff]
    %v170 = vld [vmem:[#allocation2 + $0x118] sm:$0xff]
    %v171 = vld [vmem:[#allocation2 + $0x120] sm:$0xff]
    %v172 = vld [vmem:[#allocation2 + $0x128] sm:$0xff]
    %v173 = vld [vmem:[#allocation2 + $0x130] sm:$0xff]
    %v174 = vld [vmem:[#allocation2 + $0x138] sm:$0xff]
    %v175 = vld [vmem:[#allocation2 + $0x140] sm:$0xff]
    %v176 = vld [vmem:[#allocation2 + $0x148] sm:$0xff]
    %v177 = vld [vmem:[#allocation2 + $0x150] sm:$0xff]
    %v178 = vld [vmem:[#allocation2 + $0x158] sm:$0xff]
    %v179 = vld [vmem:[#allocation2 + $0x160] sm:$0xff]
    %v180 = vld [vmem:[#allocation2 + $0x168] sm:$0xff]
    %v181 = vld [vmem:[#allocation2 + $0x170] sm:$0xff]
    %v182 = vld [vmem:[#allocation2 + $0x178] sm:$0xff]
    %v183 = vld [vmem:[#allocation2 + $0x180] sm:$0xff]
    %v184 = vld [vmem:[#allocation2 + $0x188] sm:$0xff]
    %v185 = vld [vmem:[#allocation2 + $0x190] sm:$0xff]
    %v186 = vld [vmem:[#allocation2 + $0x198] sm:$0xff]
    %v187 = vld [vmem:[#allocation2 + $0x1a0] sm:$0xff]
    %v188 = vld [vmem:[#allocation2 + $0x1a8] sm:$0xff]
    %v189 = vld [vmem:[#allocation2 + $0x1b0] sm:$0xff]
    %v190 = vld [vmem:[#allocation2 + $0x1b8] sm:$0xff]
    %v191 = vld [vmem:[#allocation2 + $0x1c0] sm:$0xff]
    %v192 = vld [vmem:[#allocation2 + $0x1c8] sm:$0xff]
    %v193 = vld [vmem:[#allocation2 + $0x1d0] sm:$0xff]
    %v194 = vld [vmem:[#allocation2 + $0x1d8] sm:$0xff]
    %v195 = vld [vmem:[#allocation2 + $0x1e0] sm:$0xff]
    %v196 = vld [vmem:[#allocation2 + $0x1e8] sm:$0xff]
    %v197 = vld [vmem:[#allocation2 + $0x1f0] sm:$0xff]
    %v198 = vld [vmem:[#allocation2 + $0x1f8] sm:$0xff]
    %v199 = vld [vmem:[#allocation2 + $0x200] sm:$0xff]
    %v200 = vld [vmem:[#allocation2 + $0x208] sm:$0xff]
    %v201 = vld [vmem:[#allocation2 + $0x210] sm:$0xff]
    %v202 = vld [vmem:[#allocation2 + $0x218] sm:$0xff]
    %v203 = vld [vmem:[#allocation2 + $0x220] sm:$0xff]
    %v204 = vld [vmem:[#allocation2 + $0x228] sm:$0xff]
    %v205 = vld [vmem:[#allocation2 + $0x230] sm:$0xff]
    %v206 = vld [vmem:[#allocation2 + $0x238] sm:$0xff]
    %v207 = vld [vmem:[#allocation2 + $0x240] sm:$0xff]
    %v208 = vld [vmem:[#allocation2 + $0x248] sm:$0xff]
    %v209 = vld [vmem:[#allocation2 + $0x250] sm:$0xff]
    %v210 = vld [vmem:[#allocation2 + $0x258] sm:$0xff]
    %v211 = vld [vmem:[#allocation2 + $0x260] sm:$0xff]
    %v212 = vld [vmem:[#allocation2 + $0x268] sm:$0xff]
    %v213 = vld [vmem:[#allocation2 + $0x270] sm:$0xff]
    %v214 = vld [vmem:[#allocation2 + $0x278] sm:$0xff]
    %v215 = vld [vmem:[#allocation2 + $0x280] sm:$0xff]
    %v216 = vld [vmem:[#allocation2 + $0x288] sm:$0xff]
    %v217 = vld [vmem:[#allocation2 + $0x290] sm:$0xff]
    %v218 = vld [vmem:[#allocation2 + $0x298] sm:$0xff]
    %v219 = vld [vmem:[#allocation2 + $0x2a0] sm:$0xff]
    %v220 = vld [vmem:[#allocation2 + $0x2a8] sm:$0xff]
    %v221 = vld [vmem:[#allocation2 + $0x2b0] sm:$0xff]
    %v222 = vld [vmem:[#allocation2 + $0x2b8] sm:$0xff]
    %v223 = vld [vmem:[#allocation2 + $0x2c0] sm:$0xff]
    %v224 = vld [vmem:[#allocation2 + $0x2c8] sm:$0xff]
    %v225 = vld [vmem:[#allocation2 + $0x2d0] sm:$0xff]
    %v226 = vld [vmem:[#allocation2 + $0x2d8] sm:$0xff]
    %v227 = vld [vmem:[#allocation2 + $0x2e0] sm:$0xff]
    %v228 = vld [vmem:[#allocation2 + $0x2e8] sm:$0xff]
    %v229 = vld [vmem:[#allocation2 + $0x2f0] sm:$0xff]
    %v230 = vld [vmem:[#allocation2 + $0x2f8] sm:$0xff]
    %v231 = vld [vmem:[#allocation2 + $0x300] sm:$0xff]
    %v232 = vld [vmem:[#allocation2 + $0x308] sm:$0xff]
    %v233 = vld [vmem:[#allocation2 + $0x310] sm:$0xff]
    %v234 = vld [vmem:[#allocation2 + $0x318] sm:$0xff]
    %v235 = vld [vmem:[#allocation2 + $0x320] sm:$0xff]
    %v236 = vld [vmem:[#allocation2 + $0x328] sm:$0xff]
    %v237 = vld [vmem:[#allocation2 + $0x330] sm:$0xff]
    %v238 = vld [vmem:[#allocation2 + $0x338] sm:$0xff]
    %v239 = vld [vmem:[#allocation2 + $0x340] sm:$0xff]
    %v240 = vld [vmem:[#allocation2 + $0x348] sm:$0xff]
    %v241 = vld [vmem:[#allocation2 + $0x350] sm:$0xff]
    %v242 = vld [vmem:[#allocation2 + $0x358] sm:$0xff]
    %v243 = vld [vmem:[#allocation2 + $0x360] sm:$0xff]
    %v244 = vld [vmem:[#allocation2 + $0x368] sm:$0xff]
    %v245 = vld [vmem:[#allocation2 + $0x370] sm:$0xff]
    %v246 = vld [vmem:[#allocation2 + $0x378] sm:$0xff]
    %v247 = vld [vmem:[#allocation2 + $0x380] sm:$0xff]
    %v248 = vld [vmem:[#allocation2 + $0x388] sm:$0xff]
    %v249 = vld [vmem:[#allocation2 + $0x390] sm:$0xff]
    %v250 = vld [vmem:[#allocation2 + $0x398] sm:$0xff]
    %v251 = vld [vmem:[#allocation2 + $0x3a0] sm:$0xff]
    %v252 = vld [vmem:[#allocation2 + $0x3a8] sm:$0xff]
    %v253 = vld [vmem:[#allocation2 + $0x3b0] sm:$0xff]
    %v254 = vld [vmem:[#allocation2 + $0x3b8] sm:$0xff]
    %v255 = vld [vmem:[#allocation2 + $0x3c0] sm:$0xff]
    %v256 = vld [vmem:[#allocation2 + $0x3c8] sm:$0xff]
    %v257 = vld [vmem:[#allocation2 + $0x3d0] sm:$0xff]
    %v258 = vld [vmem:[#allocation2 + $0x3d8] sm:$0xff]
    %v259 = vld [vmem:[#allocation2 + $0x3e0] sm:$0xff]
    %v260 = vld [vmem:[#allocation2 + $0x3e8] sm:$0xff]
    %v261 = vld [vmem:[#allocation2 + $0x3f0] sm:$0xff]
    %v262 = vld [vmem:[#allocation2 + $0x3f8] sm:$0xff]
    %v263 = vld [vmem:[#allocation4] sm:$0xff]
    %v265 = vlaneseq
    %v266 = vshrl.u32 %v265, 7
    %v267 = vsub.s32 0, %v266
    %v268 = vrot.slane %v263, %v267
    %v269 = vlaneseq
    %v270 = vshrl.u32 %v269, 7
    %v271 = vsub.s32 1, %v270
    %v272 = vrot.slane %v263, %v271
    %v273 = vlaneseq
    %v274 = vshrl.u32 %v273, 7
    %v275 = vsub.s32 2, %v274
    %v276 = vrot.slane %v263, %v275
    %v277 = vlaneseq
    %v278 = vshrl.u32 %v277, 7
    %v279 = vsub.s32 3, %v278
    %v280 = vrot.slane %v263, %v279
    %v281 = vlaneseq
    %v282 = vshrl.u32 %v281, 7
    %v283 = vsub.s32 4, %v282
    %v284 = vrot.slane %v263, %v283
    %v285 = vlaneseq
    %v286 = vshrl.u32 %v285, 7
    %v287 = vsub.s32 5, %v286
    %v288 = vrot.slane %v263, %v287
    %v289 = vlaneseq
    %v290 = vshrl.u32 %v289, 7
    %v291 = vsub.s32 6, %v290
    %v292 = vrot.slane %v263, %v291
    %v293 = vlaneseq
    %v294 = vshrl.u32 %v293, 7
    %v295 = vsub.s32 7, %v294
    %v296 = vrot.slane %v263, %v295
    %v306 = vunpack.c.l.b16 %v134
    %v307 = vunpack.c.h.b16 %v134
    %v308 = vpack.c.b16 %v306, %v306
    %v309 = vpack.c.b16 %v307, %v307
    %v440 = vunpack.c.l.b16 %v135
    %v441 = vunpack.c.h.b16 %v135
    %v442 = vunpack.c.l.b16 %v136
    %v443 = vunpack.c.h.b16 %v136
    %v444 = vunpack.c.l.b16 %v137
    %v445 = vunpack.c.h.b16 %v137
    %v446 = vunpack.c.l.b16 %v138
    %v447 = vunpack.c.h.b16 %v138
    %v448 = vunpack.c.l.b16 %v139
    %v449 = vunpack.c.h.b16 %v139
    %v450 = vunpack.c.l.b16 %v140
    %v451 = vunpack.c.h.b16 %v140
    %v452 = vunpack.c.l.b16 %v141
    %v453 = vunpack.c.h.b16 %v141
    %v454 = vunpack.c.l.b16 %v142
    %v455 = vunpack.c.h.b16 %v142
    %v456 = vunpack.c.l.b16 %v143
    %v457 = vunpack.c.h.b16 %v143
    %v458 = vunpack.c.l.b16 %v144
    %v459 = vunpack.c.h.b16 %v144
    %v460 = vunpack.c.l.b16 %v145
    %v461 = vunpack.c.h.b16 %v145
    %v462 = vunpack.c.l.b16 %v146
    %v463 = vunpack.c.h.b16 %v146
    %v464 = vunpack.c.l.b16 %v147
    %v465 = vunpack.c.h.b16 %v147
    %v466 = vunpack.c.l.b16 %v148
    %v467 = vunpack.c.h.b16 %v148
    %v468 = vunpack.c.l.b16 %v149
    %v469 = vunpack.c.h.b16 %v149
    %v470 = vunpack.c.l.b16 %v150
    %v471 = vunpack.c.h.b16 %v150
    %v472 = vunpack.c.l.b16 %v151
    %v473 = vunpack.c.h.b16 %v151
    %v474 = vunpack.c.l.b16 %v152
    %v475 = vunpack.c.h.b16 %v152
    %v476 = vunpack.c.l.b16 %v153
    %v477 = vunpack.c.h.b16 %v153
    %v478 = vunpack.c.l.b16 %v154
    %v479 = vunpack.c.h.b16 %v154
    %v480 = vunpack.c.l.b16 %v155
    %v481 = vunpack.c.h.b16 %v155
    %v482 = vunpack.c.l.b16 %v156
    %v483 = vunpack.c.h.b16 %v156
    %v484 = vunpack.c.l.b16 %v157
    %v485 = vunpack.c.h.b16 %v157
    %v486 = vunpack.c.l.b16 %v158
    %v487 = vunpack.c.h.b16 %v158
    %v488 = vunpack.c.l.b16 %v159
    %v489 = vunpack.c.h.b16 %v159
    %v490 = vunpack.c.l.b16 %v160
    %v491 = vunpack.c.h.b16 %v160
    %v492 = vunpack.c.l.b16 %v161
    %v493 = vunpack.c.h.b16 %v161
    %v494 = vunpack.c.l.b16 %v162
    %v495 = vunpack.c.h.b16 %v162
    %v496 = vunpack.c.l.b16 %v163
    %v497 = vunpack.c.h.b16 %v163
    %v498 = vunpack.c.l.b16 %v164
    %v499 = vunpack.c.h.b16 %v164
    %v500 = vunpack.c.l.b16 %v165
    %v501 = vunpack.c.h.b16 %v165
    %v502 = vunpack.c.l.b16 %v166
    %v503 = vunpack.c.h.b16 %v166
    %v504 = vunpack.c.l.b16 %v167
    %v505 = vunpack.c.h.b16 %v167
    %v506 = vunpack.c.l.b16 %v168
    %v507 = vunpack.c.h.b16 %v168
    %v508 = vunpack.c.l.b16 %v169
    %v509 = vunpack.c.h.b16 %v169
    %v510 = vunpack.c.l.b16 %v170
    %v511 = vunpack.c.h.b16 %v170
    %v512 = vunpack.c.l.b16 %v171
    %v513 = vunpack.c.h.b16 %v171
    %v514 = vunpack.c.l.b16 %v172
    %v515 = vunpack.c.h.b16 %v172
    %v516 = vunpack.c.l.b16 %v173
    %v517 = vunpack.c.h.b16 %v173
    %v518 = vunpack.c.l.b16 %v174
    %v519 = vunpack.c.h.b16 %v174
    %v520 = vunpack.c.l.b16 %v175
    %v521 = vunpack.c.h.b16 %v175
    %v522 = vunpack.c.l.b16 %v176
    %v523 = vunpack.c.h.b16 %v176
    %v524 = vunpack.c.l.b16 %v177
    %v525 = vunpack.c.h.b16 %v177
    %v526 = vunpack.c.l.b16 %v178
    %v527 = vunpack.c.h.b16 %v178
    %v528 = vunpack.c.l.b16 %v179
    %v529 = vunpack.c.h.b16 %v179
    %v530 = vunpack.c.l.b16 %v180
    %v531 = vunpack.c.h.b16 %v180
    %v532 = vunpack.c.l.b16 %v181
    %v533 = vunpack.c.h.b16 %v181
    %v534 = vunpack.c.l.b16 %v182
    %v535 = vunpack.c.h.b16 %v182
    %v536 = vunpack.c.l.b16 %v183
    %v537 = vunpack.c.h.b16 %v183
    %v538 = vunpack.c.l.b16 %v184
    %v539 = vunpack.c.h.b16 %v184
    %v540 = vunpack.c.l.b16 %v185
    %v541 = vunpack.c.h.b16 %v185
    %v542 = vunpack.c.l.b16 %v186
    %v543 = vunpack.c.h.b16 %v186
    %v544 = vunpack.c.l.b16 %v187
    %v545 = vunpack.c.h.b16 %v187
    %v546 = vunpack.c.l.b16 %v188
    %v547 = vunpack.c.h.b16 %v188
    %v548 = vunpack.c.l.b16 %v189
    %v549 = vunpack.c.h.b16 %v189
    %v550 = vunpack.c.l.b16 %v190
    %v551 = vunpack.c.h.b16 %v190
    %v552 = vunpack.c.l.b16 %v191
    %v553 = vunpack.c.h.b16 %v191
    %v554 = vunpack.c.l.b16 %v192
    %v555 = vunpack.c.h.b16 %v192
    %v556 = vunpack.c.l.b16 %v193
    %v557 = vunpack.c.h.b16 %v193
    %v558 = vunpack.c.l.b16 %v194
    %v559 = vunpack.c.h.b16 %v194
    %v560 = vunpack.c.l.b16 %v195
    %v561 = vunpack.c.h.b16 %v195
    %v562 = vunpack.c.l.b16 %v196
    %v563 = vunpack.c.h.b16 %v196
    %v564 = vunpack.c.l.b16 %v197
    %v565 = vunpack.c.h.b16 %v197
    %v566 = vunpack.c.l.b16 %v198
    %v567 = vunpack.c.h.b16 %v198
    %v568 = vunpack.c.l.b16 %v199
    %v569 = vunpack.c.h.b16 %v199
    %v570 = vunpack.c.l.b16 %v200
    %v571 = vunpack.c.h.b16 %v200
    %v572 = vunpack.c.l.b16 %v201
    %v573 = vunpack.c.h.b16 %v201
    %v574 = vunpack.c.l.b16 %v202
    %v575 = vunpack.c.h.b16 %v202
    %v576 = vunpack.c.l.b16 %v203
    %v577 = vunpack.c.h.b16 %v203
    %v578 = vunpack.c.l.b16 %v204
    %v579 = vunpack.c.h.b16 %v204
    %v580 = vunpack.c.l.b16 %v205
    %v581 = vunpack.c.h.b16 %v205
    %v582 = vunpack.c.l.b16 %v206
    %v583 = vunpack.c.h.b16 %v206
    %v584 = vunpack.c.l.b16 %v207
    %v585 = vunpack.c.h.b16 %v207
    %v586 = vunpack.c.l.b16 %v208
    %v587 = vunpack.c.h.b16 %v208
    %v588 = vunpack.c.l.b16 %v209
    %v589 = vunpack.c.h.b16 %v209
    %v590 = vunpack.c.l.b16 %v210
    %v591 = vunpack.c.h.b16 %v210
    %v592 = vunpack.c.l.b16 %v211
    %v593 = vunpack.c.h.b16 %v211
    %v594 = vunpack.c.l.b16 %v212
    %v595 = vunpack.c.h.b16 %v212
    %v596 = vunpack.c.l.b16 %v213
    %v597 = vunpack.c.h.b16 %v213
    %v598 = vunpack.c.l.b16 %v214
    %v599 = vunpack.c.h.b16 %v214
    %v600 = vunpack.c.l.b16 %v215
    %v601 = vunpack.c.h.b16 %v215
    %v602 = vunpack.c.l.b16 %v216
    %v603 = vunpack.c.h.b16 %v216
    %v604 = vunpack.c.l.b16 %v217
    %v605 = vunpack.c.h.b16 %v217
    %v606 = vunpack.c.l.b16 %v218
    %v607 = vunpack.c.h.b16 %v218
    %v608 = vunpack.c.l.b16 %v219
    %v609 = vunpack.c.h.b16 %v219
    %v610 = vunpack.c.l.b16 %v220
    %v611 = vunpack.c.h.b16 %v220
    %v612 = vunpack.c.l.b16 %v221
    %v613 = vunpack.c.h.b16 %v221
    %v614 = vunpack.c.l.b16 %v222
    %v615 = vunpack.c.h.b16 %v222
    %v616 = vunpack.c.l.b16 %v223
    %v617 = vunpack.c.h.b16 %v223
    %v618 = vunpack.c.l.b16 %v224
    %v619 = vunpack.c.h.b16 %v224
    %v620 = vunpack.c.l.b16 %v225
    %v621 = vunpack.c.h.b16 %v225
    %v622 = vunpack.c.l.b16 %v226
    %v623 = vunpack.c.h.b16 %v226
    %v624 = vunpack.c.l.b16 %v227
    %v625 = vunpack.c.h.b16 %v227
    %v626 = vunpack.c.l.b16 %v228
    %v627 = vunpack.c.h.b16 %v228
    %v628 = vunpack.c.l.b16 %v229
    %v629 = vunpack.c.h.b16 %v229
    %v630 = vunpack.c.l.b16 %v230
    %v631 = vunpack.c.h.b16 %v230
    %v632 = vunpack.c.l.b16 %v231
    %v633 = vunpack.c.h.b16 %v231
    %v634 = vunpack.c.l.b16 %v232
    %v635 = vunpack.c.h.b16 %v232
    %v636 = vunpack.c.l.b16 %v233
    %v637 = vunpack.c.h.b16 %v233
    %v638 = vunpack.c.l.b16 %v234
    %v639 = vunpack.c.h.b16 %v234
    %v640 = vunpack.c.l.b16 %v235
    %v641 = vunpack.c.h.b16 %v235
    %v642 = vunpack.c.l.b16 %v236
    %v643 = vunpack.c.h.b16 %v236
    %v644 = vunpack.c.l.b16 %v237
    %v645 = vunpack.c.h.b16 %v237
    %v646 = vunpack.c.l.b16 %v238
    %v647 = vunpack.c.h.b16 %v238
    %v648 = vunpack.c.l.b16 %v239
    %v649 = vunpack.c.h.b16 %v239
    %v650 = vunpack.c.l.b16 %v240
    %v651 = vunpack.c.h.b16 %v240
    %v652 = vunpack.c.l.b16 %v241
    %v653 = vunpack.c.h.b16 %v241
    %v654 = vunpack.c.l.b16 %v242
    %v655 = vunpack.c.h.b16 %v242
    %v656 = vunpack.c.l.b16 %v243
    %v657 = vunpack.c.h.b16 %v243
    %v658 = vunpack.c.l.b16 %v244
    %v659 = vunpack.c.h.b16 %v244
    %v660 = vunpack.c.l.b16 %v245
    %v661 = vunpack.c.h.b16 %v245
    %v662 = vunpack.c.l.b16 %v246
    %v663 = vunpack.c.h.b16 %v246
    %v664 = vunpack.c.l.b16 %v247
    %v665 = vunpack.c.h.b16 %v247
    %v666 = vunpack.c.l.b16 %v248
    %v667 = vunpack.c.h.b16 %v248
    %v668 = vunpack.c.l.b16 %v249
    %v669 = vunpack.c.h.b16 %v249
    %v670 = vunpack.c.l.b16 %v250
    %v671 = vunpack.c.h.b16 %v250
    %v672 = vunpack.c.l.b16 %v251
    %v673 = vunpack.c.h.b16 %v251
    %v674 = vunpack.c.l.b16 %v252
    %v675 = vunpack.c.h.b16 %v252
    %v676 = vunpack.c.l.b16 %v253
    %v677 = vunpack.c.h.b16 %v253
    %v678 = vunpack.c.l.b16 %v254
    %v679 = vunpack.c.h.b16 %v254
    %v680 = vunpack.c.l.b16 %v255
    %v681 = vunpack.c.h.b16 %v255
    %v682 = vunpack.c.l.b16 %v256
    %v683 = vunpack.c.h.b16 %v256
    %v684 = vunpack.c.l.b16 %v257
    %v685 = vunpack.c.h.b16 %v257
    %v686 = vunpack.c.l.b16 %v258
    %v687 = vunpack.c.h.b16 %v258
    %v688 = vunpack.c.l.b16 %v259
    %v689 = vunpack.c.h.b16 %v259
    %v690 = vunpack.c.l.b16 %v260
    %v691 = vunpack.c.h.b16 %v260
    %v692 = vunpack.c.l.b16 %v261
    %v693 = vunpack.c.h.b16 %v261
    %v694 = vunpack.c.l.b16 %v262
    %v695 = vunpack.c.h.b16 %v262
    %v696 = vpack.c.b16 %v448, %v440
    %v697 = vpack.c.b16 %v449, %v441
    %v698 = vpack.c.b16 %v450, %v442
    %v699 = vpack.c.b16 %v451, %v443
    %v700 = vpack.c.b16 %v452, %v444
    %v701 = vpack.c.b16 %v453, %v445
    %v702 = vpack.c.b16 %v454, %v446
    %v703 = vpack.c.b16 %v455, %v447
    %v704 = vpack.c.b16 %v464, %v456
    %v705 = vpack.c.b16 %v465, %v457
    %v706 = vpack.c.b16 %v466, %v458
    %v707 = vpack.c.b16 %v467, %v459
    %v708 = vpack.c.b16 %v468, %v460
    %v709 = vpack.c.b16 %v469, %v461
    %v710 = vpack.c.b16 %v470, %v462
    %v711 = vpack.c.b16 %v471, %v463
    %v712 = vpack.c.b16 %v480, %v472
    %v713 = vpack.c.b16 %v481, %v473
    %v714 = vpack.c.b16 %v482, %v474
    %v715 = vpack.c.b16 %v483, %v475
    %v716 = vpack.c.b16 %v484, %v476
    %v717 = vpack.c.b16 %v485, %v477
    %v718 = vpack.c.b16 %v486, %v478
    %v719 = vpack.c.b16 %v487, %v479
    %v720 = vpack.c.b16 %v496, %v488
    %v721 = vpack.c.b16 %v497, %v489
    %v722 = vpack.c.b16 %v498, %v490
    %v723 = vpack.c.b16 %v499, %v491
    %v724 = vpack.c.b16 %v500, %v492
    %v725 = vpack.c.b16 %v501, %v493
    %v726 = vpack.c.b16 %v502, %v494
    %v727 = vpack.c.b16 %v503, %v495
    %v728 = vpack.c.b16 %v512, %v504
    %v729 = vpack.c.b16 %v513, %v505
    %v730 = vpack.c.b16 %v514, %v506
    %v731 = vpack.c.b16 %v515, %v507
    %v732 = vpack.c.b16 %v516, %v508
    %v733 = vpack.c.b16 %v517, %v509
    %v734 = vpack.c.b16 %v518, %v510
    %v735 = vpack.c.b16 %v519, %v511
    %v736 = vpack.c.b16 %v528, %v520
    %v737 = vpack.c.b16 %v529, %v521
    %v738 = vpack.c.b16 %v530, %v522
    %v739 = vpack.c.b16 %v531, %v523
    %v740 = vpack.c.b16 %v532, %v524
    %v741 = vpack.c.b16 %v533, %v525
    %v742 = vpack.c.b16 %v534, %v526
    %v743 = vpack.c.b16 %v535, %v527
    %v744 = vpack.c.b16 %v544, %v536
    %v745 = vpack.c.b16 %v545, %v537
    %v746 = vpack.c.b16 %v546, %v538
    %v747 = vpack.c.b16 %v547, %v539
    %v748 = vpack.c.b16 %v548, %v540
    %v749 = vpack.c.b16 %v549, %v541
    %v750 = vpack.c.b16 %v550, %v542
    %v751 = vpack.c.b16 %v551, %v543
    %v752 = vpack.c.b16 %v560, %v552
    %v753 = vpack.c.b16 %v561, %v553
    %v754 = vpack.c.b16 %v562, %v554
    %v755 = vpack.c.b16 %v563, %v555
    %v756 = vpack.c.b16 %v564, %v556
    %v757 = vpack.c.b16 %v565, %v557
    %v758 = vpack.c.b16 %v566, %v558
    %v759 = vpack.c.b16 %v567, %v559
    %v760 = vpack.c.b16 %v576, %v568
    %v761 = vpack.c.b16 %v577, %v569
    %v762 = vpack.c.b16 %v578, %v570
    %v763 = vpack.c.b16 %v579, %v571
    %v764 = vpack.c.b16 %v580, %v572
    %v765 = vpack.c.b16 %v581, %v573
    %v766 = vpack.c.b16 %v582, %v574
    %v767 = vpack.c.b16 %v583, %v575
    %v768 = vpack.c.b16 %v592, %v584
    %v769 = vpack.c.b16 %v593, %v585
    %v770 = vpack.c.b16 %v594, %v586
    %v771 = vpack.c.b16 %v595, %v587
    %v772 = vpack.c.b16 %v596, %v588
    %v773 = vpack.c.b16 %v597, %v589
    %v774 = vpack.c.b16 %v598, %v590
    %v775 = vpack.c.b16 %v599, %v591
    %v776 = vpack.c.b16 %v608, %v600
    %v777 = vpack.c.b16 %v609, %v601
    %v778 = vpack.c.b16 %v610, %v602
    %v779 = vpack.c.b16 %v611, %v603
    %v780 = vpack.c.b16 %v612, %v604
    %v781 = vpack.c.b16 %v613, %v605
    %v782 = vpack.c.b16 %v614, %v606
    %v783 = vpack.c.b16 %v615, %v607
    %v784 = vpack.c.b16 %v624, %v616
    %v785 = vpack.c.b16 %v625, %v617
    %v786 = vpack.c.b16 %v626, %v618
    %v787 = vpack.c.b16 %v627, %v619
    %v788 = vpack.c.b16 %v628, %v620
    %v789 = vpack.c.b16 %v629, %v621
    %v790 = vpack.c.b16 %v630, %v622
    %v791 = vpack.c.b16 %v631, %v623
    %v792 = vpack.c.b16 %v640, %v632
    %v793 = vpack.c.b16 %v641, %v633
    %v794 = vpack.c.b16 %v642, %v634
    %v795 = vpack.c.b16 %v643, %v635
    %v796 = vpack.c.b16 %v644, %v636
    %v797 = vpack.c.b16 %v645, %v637
    %v798 = vpack.c.b16 %v646, %v638
    %v799 = vpack.c.b16 %v647, %v639
    %v800 = vpack.c.b16 %v656, %v648
    %v801 = vpack.c.b16 %v657, %v649
    %v802 = vpack.c.b16 %v658, %v650
    %v803 = vpack.c.b16 %v659, %v651
    %v804 = vpack.c.b16 %v660, %v652
    %v805 = vpack.c.b16 %v661, %v653
    %v806 = vpack.c.b16 %v662, %v654
    %v807 = vpack.c.b16 %v663, %v655
    %v808 = vpack.c.b16 %v672, %v664
    %v809 = vpack.c.b16 %v673, %v665
    %v810 = vpack.c.b16 %v674, %v666
    %v811 = vpack.c.b16 %v675, %v667
    %v812 = vpack.c.b16 %v676, %v668
    %v813 = vpack.c.b16 %v677, %v669
    %v814 = vpack.c.b16 %v678, %v670
    %v815 = vpack.c.b16 %v679, %v671
    %v816 = vpack.c.b16 %v688, %v680
    %v817 = vpack.c.b16 %v689, %v681
    %v818 = vpack.c.b16 %v690, %v682
    %v819 = vpack.c.b16 %v691, %v683
    %v820 = vpack.c.b16 %v692, %v684
    %v821 = vpack.c.b16 %v693, %v685
    %v822 = vpack.c.b16 %v694, %v686
    %v823 = vpack.c.b16 %v695, %v687
    %952 = vmatprep.subr.bf16.mxu0 %v753
    %953 = vmatpush1.bf16.msra.mxu0 %v752
    %954 = vmatprep.subr.bf16.mxu0 %v745
    %955 = vmatpush1.bf16.msra.mxu0 %v744
    %956 = vmatprep.subr.bf16.mxu0 %v737
    %957 = vmatpush1.bf16.msra.mxu0 %v736
    %958 = vmatprep.subr.bf16.mxu0 %v729
    %959 = vmatpush1.bf16.msra.mxu0 %v728
    %960 = vmatprep.subr.bf16.mxu0 %v721
    %961 = vmatpush1.bf16.msra.mxu0 %v720
    %962 = vmatprep.subr.bf16.mxu0 %v713
    %963 = vmatpush1.bf16.msra.mxu0 %v712
    %964 = vmatprep.subr.bf16.mxu0 %v705
    %965 = vmatpush1.bf16.msra.mxu0 %v704
    %966 = vmatprep.subr.bf16.mxu0 %v697
    %967 = vmatpush1.bf16.msra.mxu0 %v696
    %968 = vmatprep.subr.bf16.mxu0 %v817
    %969 = vmatpush2.bf16.msra.mxu0 %v816
    %970 = vmatprep.subr.bf16.mxu0 %v809
    %971 = vmatpush2.bf16.msra.mxu0 %v808
    %972 = vmatprep.subr.bf16.mxu0 %v801
    %973 = vmatpush2.bf16.msra.mxu0 %v800
    %974 = vmatprep.subr.bf16.mxu0 %v793
    %975 = vmatpush2.bf16.msra.mxu0 %v792
    %976 = vmatprep.subr.bf16.mxu0 %v785
    %977 = vmatpush2.bf16.msra.mxu0 %v784
    %978 = vmatprep.subr.bf16.mxu0 %v777
    %979 = vmatpush2.bf16.msra.mxu0 %v776
    %980 = vmatprep.subr.bf16.mxu0 %v769
    %981 = vmatpush2.bf16.msra.mxu0 %v768
    %982 = vmatprep.subr.bf16.mxu0 %v761
    %983 = vmatpush2.bf16.msra.mxu0 %v760
    %984 = vmatprep.mubr.bf16.mxu0 %v309
    %985 = vmatmul.mubr.bf16.gmra.mxu0 %v308
    %v986 = vpop.f32.mrf.mxu0
    %v987 = vadd.f32 %v268, %v986
    %v988 = vpop.f32.mrf.mxu0
    %v989 = vadd.f32 %v272, %v988
    %v990 = vpop.f32.mrf.mxu0
    %v991 = vpop.f32.mrf.mxu0
    %992 = vdwg.mxu0
    %993 = vmatprep.subr.bf16.mxu0 %v755
    %994 = vmatpush1.bf16.msra.mxu0 %v754
    %995 = vmatprep.subr.bf16.mxu0 %v747
    %996 = vmatpush1.bf16.msra.mxu0 %v746
    %997 = vmatprep.subr.bf16.mxu0 %v739
    %998 = vmatpush1.bf16.msra.mxu0 %v738
    %999 = vmatprep.subr.bf16.mxu0 %v731
    %1000 = vmatpush1.bf16.msra.mxu0 %v730
    %1001 = vmatprep.subr.bf16.mxu0 %v723
    %1002 = vmatpush1.bf16.msra.mxu0 %v722
    %1003 = vmatprep.subr.bf16.mxu0 %v715
    %1004 = vmatpush1.bf16.msra.mxu0 %v714
    %1005 = vmatprep.subr.bf16.mxu0 %v707
    %1006 = vmatpush1.bf16.msra.mxu0 %v706
    %1007 = vmatprep.subr.bf16.mxu0 %v699
    %1008 = vmatpush1.bf16.msra.mxu0 %v698
    %1009 = vmatprep.subr.bf16.mxu0 %v819
    %1010 = vmatpush2.bf16.msra.mxu0 %v818
    %1011 = vmatprep.subr.bf16.mxu0 %v811
    %1012 = vmatpush2.bf16.msra.mxu0 %v810
    %1013 = vmatprep.subr.bf16.mxu0 %v803
    %1014 = vmatpush2.bf16.msra.mxu0 %v802
    %1015 = vmatprep.subr.bf16.mxu0 %v795
    %1016 = vmatpush2.bf16.msra.mxu0 %v794
    %1017 = vmatprep.subr.bf16.mxu0 %v787
    %1018 = vmatpush2.bf16.msra.mxu0 %v786
    %1019 = vmatprep.subr.bf16.mxu0 %v779
    %1020 = vmatpush2.bf16.msra.mxu0 %v778
    %1021 = vmatprep.subr.bf16.mxu0 %v771
    %1022 = vmatpush2.bf16.msra.mxu0 %v770
    %1023 = vmatprep.subr.bf16.mxu0 %v763
    %1024 = vmatpush2.bf16.msra.mxu0 %v762
    %1025 = vmatprep.mubr.bf16.mxu0 %v309
    %1026 = vmatmul.mubr.bf16.gmra.mxu0 %v308
    %v1027 = vpop.f32.mrf.mxu0
    %v1028 = vadd.f32 %v276, %v1027
    %v1029 = vpop.f32.mrf.mxu0
    %v1030 = vadd.f32 %v280, %v1029
    %v1031 = vpop.f32.mrf.mxu0
    %v1032 = vpop.f32.mrf.mxu0
    %1033 = vdwg.mxu0
    %1034 = vmatprep.subr.bf16.mxu0 %v757
    %1035 = vmatpush1.bf16.msra.mxu0 %v756
    %1036 = vmatprep.subr.bf16.mxu0 %v749
    %1037 = vmatpush1.bf16.msra.mxu0 %v748
    %1038 = vmatprep.subr.bf16.mxu0 %v741
    %1039 = vmatpush1.bf16.msra.mxu0 %v740
    %1040 = vmatprep.subr.bf16.mxu0 %v733
    %1041 = vmatpush1.bf16.msra.mxu0 %v732
    %1042 = vmatprep.subr.bf16.mxu0 %v725
    %1043 = vmatpush1.bf16.msra.mxu0 %v724
    %1044 = vmatprep.subr.bf16.mxu0 %v717
    %1045 = vmatpush1.bf16.msra.mxu0 %v716
    %1046 = vmatprep.subr.bf16.mxu0 %v709
    %1047 = vmatpush1.bf16.msra.mxu0 %v708
    %1048 = vmatprep.subr.bf16.mxu0 %v701
    %1049 = vmatpush1.bf16.msra.mxu0 %v700
    %1050 = vmatprep.subr.bf16.mxu0 %v821
    %1051 = vmatpush2.bf16.msra.mxu0 %v820
    %1052 = vmatprep.subr.bf16.mxu0 %v813
    %1053 = vmatpush2.bf16.msra.mxu0 %v812
    %1054 = vmatprep.subr.bf16.mxu0 %v805
    %1055 = vmatpush2.bf16.msra.mxu0 %v804
    %1056 = vmatprep.subr.bf16.mxu0 %v797
    %1057 = vmatpush2.bf16.msra.mxu0 %v796
    %1058 = vmatprep.subr.bf16.mxu0 %v789
    %1059 = vmatpush2.bf16.msra.mxu0 %v788
    %1060 = vmatprep.subr.bf16.mxu0 %v781
    %1061 = vmatpush2.bf16.msra.mxu0 %v780
    %1062 = vmatprep.subr.bf16.mxu0 %v773
    %1063 = vmatpush2.bf16.msra.mxu0 %v772
    %1064 = vmatprep.subr.bf16.mxu0 %v765
    %1065 = vmatpush2.bf16.msra.mxu0 %v764
    %1066 = vmatprep.mubr.bf16.mxu0 %v309
    %1067 = vmatmul.mubr.bf16.gmra.mxu0 %v308
    %v1068 = vpop.f32.mrf.mxu0
    %v1069 = vadd.f32 %v284, %v1068
    %v1070 = vpop.f32.mrf.mxu0
    %v1071 = vadd.f32 %v288, %v1070
    %v1072 = vpop.f32.mrf.mxu0
    %v1073 = vpop.f32.mrf.mxu0
    %1074 = vdwg.mxu0
    %1075 = vmatprep.subr.bf16.mxu0 %v759
    %1076 = vmatpush1.bf16.msra.mxu0 %v758
    %1077 = vmatprep.subr.bf16.mxu0 %v751
    %1078 = vmatpush1.bf16.msra.mxu0 %v750
    %1079 = vmatprep.subr.bf16.mxu0 %v743
    %1080 = vmatpush1.bf16.msra.mxu0 %v742
    %1081 = vmatprep.subr.bf16.mxu0 %v735
    %1082 = vmatpush1.bf16.msra.mxu0 %v734
    %1083 = vmatprep.subr.bf16.mxu0 %v727
    %1084 = vmatpush1.bf16.msra.mxu0 %v726
    %1085 = vmatprep.subr.bf16.mxu0 %v719
    %1086 = vmatpush1.bf16.msra.mxu0 %v718
    %1087 = vmatprep.subr.bf16.mxu0 %v711
    %1088 = vmatpush1.bf16.msra.mxu0 %v710
    %1089 = vmatprep.subr.bf16.mxu0 %v703
    %1090 = vmatpush1.bf16.msra.mxu0 %v702
    %1091 = vmatprep.subr.bf16.mxu0 %v823
    %1092 = vmatpush2.bf16.msra.mxu0 %v822
    %1093 = vmatprep.subr.bf16.mxu0 %v815
    %1094 = vmatpush2.bf16.msra.mxu0 %v814
    %1095 = vmatprep.subr.bf16.mxu0 %v807
    %1096 = vmatpush2.bf16.msra.mxu0 %v806
    %1097 = vmatprep.subr.bf16.mxu0 %v799
    %1098 = vmatpush2.bf16.msra.mxu0 %v798
    %1099 = vmatprep.subr.bf16.mxu0 %v791
    %1100 = vmatpush2.bf16.msra.mxu0 %v790
    %1101 = vmatprep.subr.bf16.mxu0 %v783
    %1102 = vmatpush2.bf16.msra.mxu0 %v782
    %1103 = vmatprep.subr.bf16.mxu0 %v775
    %1104 = vmatpush2.bf16.msra.mxu0 %v774
    %1105 = vmatprep.subr.bf16.mxu0 %v767
    %1106 = vmatpush2.bf16.msra.mxu0 %v766
    %1107 = vmatprep.mubr.bf16.mxu0 %v309
    %1108 = vmatmul.mubr.bf16.gmra.mxu0 %v308
    %v1109 = vpop.f32.mrf.mxu0
    %v1110 = vadd.f32 %v292, %v1109
    %v1111 = vpop.f32.mrf.mxu0
    %v1112 = vadd.f32 %v296, %v1111
    %v1113 = vpop.f32.mrf.mxu0
    %v1114 = vpop.f32.mrf.mxu0
    %1115 = vdwg.mxu0
    %vm1116 = vcmp.gt.f32.partialorder %v987, 0.0
    %vm1117 = vcmp.gt.f32.partialorder %v989, 0.0
    %vm1118 = vcmp.gt.f32.partialorder %v1028, 0.0
    %vm1119 = vcmp.gt.f32.partialorder %v1030, 0.0
    %vm1120 = vcmp.gt.f32.partialorder %v1069, 0.0
    %vm1121 = vcmp.gt.f32.partialorder %v1071, 0.0
    %vm1122 = vcmp.gt.f32.partialorder %v1110, 0.0
    %vm1123 = vcmp.gt.f32.partialorder %v1112, 0.0
    %v1124 = vmul.f32 %v987, 0.01
    %v1125 = vmul.f32 %v989, 0.01
    %v1126 = vmul.f32 %v1028, 0.01
    %v1127 = vmul.f32 %v1030, 0.01
    %v1128 = vmul.f32 %v1069, 0.01
    %v1129 = vmul.f32 %v1071, 0.01
    %v1130 = vmul.f32 %v1110, 0.01
    %v1131 = vmul.f32 %v1112, 0.01
    %v1132 = vsel %vm1116, %v987, %v1124
    %v1133 = vsel %vm1117, %v989, %v1125
    %v1134 = vsel %vm1118, %v1028, %v1126
    %v1135 = vsel %vm1119, %v1030, %v1127
    %v1136 = vsel %vm1120, %v1069, %v1128
    %v1137 = vsel %vm1121, %v1071, %v1129
    %v1138 = vsel %vm1122, %v1110, %v1130
    %v1139 = vsel %vm1123, %v1112, %v1131
    %v1140 = vpack.c.bf16 %v1132, %v1132
    %v1141 = vpack.c.bf16 %v1133, %v1133
    %v1142 = vpack.c.bf16 %v1134, %v1134
    %v1143 = vpack.c.bf16 %v1135, %v1135
    %v1144 = vpack.c.bf16 %v1136, %v1136
    %v1145 = vpack.c.bf16 %v1137, %v1137
    %v1146 = vpack.c.bf16 %v1138, %v1138
    %v1147 = vpack.c.bf16 %v1139, %v1139
    %v1148 = vld [vmem:[#allocation6] sm:$0xff]
    %v1149 = vld [vmem:[#allocation6 + $0x8] sm:$0xff]
    %v1150 = vld [vmem:[#allocation6 + $0x10] sm:$0xff]
    %v1151 = vld [vmem:[#allocation6 + $0x18] sm:$0xff]
    %v1152 = vld [vmem:[#allocation6 + $0x20] sm:$0xff]
    %v1153 = vld [vmem:[#allocation6 + $0x28] sm:$0xff]
    %v1154 = vld [vmem:[#allocation6 + $0x30] sm:$0xff]
    %v1155 = vld [vmem:[#allocation6 + $0x38] sm:$0xff]
    %v1156 = vld [vmem:[#allocation6 + $0x40] sm:$0xff]
    %v1157 = vld [vmem:[#allocation6 + $0x48] sm:$0xff]
    %v1158 = vld [vmem:[#allocation6 + $0x50] sm:$0xff]
    %v1159 = vld [vmem:[#allocation6 + $0x58] sm:$0xff]
    %v1160 = vld [vmem:[#allocation6 + $0x60] sm:$0xff]
    %v1161 = vld [vmem:[#allocation6 + $0x68] sm:$0xff]
    %v1162 = vld [vmem:[#allocation6 + $0x70] sm:$0xff]
    %v1163 = vld [vmem:[#allocation6 + $0x78] sm:$0xff]
    %v1164 = vld [vmem:[#allocation6 + $0x80] sm:$0xff]
    %v1165 = vld [vmem:[#allocation6 + $0x88] sm:$0xff]
    %v1166 = vld [vmem:[#allocation6 + $0x90] sm:$0xff]
    %v1167 = vld [vmem:[#allocation6 + $0x98] sm:$0xff]
    %v1168 = vld [vmem:[#allocation6 + $0xa0] sm:$0xff]
    %v1169 = vld [vmem:[#allocation6 + $0xa8] sm:$0xff]
    %v1170 = vld [vmem:[#allocation6 + $0xb0] sm:$0xff]
    %v1171 = vld [vmem:[#allocation6 + $0xb8] sm:$0xff]
    %v1172 = vld [vmem:[#allocation6 + $0xc0] sm:$0xff]
    %v1173 = vld [vmem:[#allocation6 + $0xc8] sm:$0xff]
    %v1174 = vld [vmem:[#allocation6 + $0xd0] sm:$0xff]
    %v1175 = vld [vmem:[#allocation6 + $0xd8] sm:$0xff]
    %v1176 = vld [vmem:[#allocation6 + $0xe0] sm:$0xff]
    %v1177 = vld [vmem:[#allocation6 + $0xe8] sm:$0xff]
    %v1178 = vld [vmem:[#allocation6 + $0xf0] sm:$0xff]
    %v1179 = vld [vmem:[#allocation6 + $0xf8] sm:$0xff]
    %v1180 = vld [vmem:[#allocation6 + $0x100] sm:$0xff]
    %v1181 = vld [vmem:[#allocation6 + $0x108] sm:$0xff]
    %v1182 = vld [vmem:[#allocation6 + $0x110] sm:$0xff]
    %v1183 = vld [vmem:[#allocation6 + $0x118] sm:$0xff]
    %v1184 = vld [vmem:[#allocation6 + $0x120] sm:$0xff]
    %v1185 = vld [vmem:[#allocation6 + $0x128] sm:$0xff]
    %v1186 = vld [vmem:[#allocation6 + $0x130] sm:$0xff]
    %v1187 = vld [vmem:[#allocation6 + $0x138] sm:$0xff]
    %v1188 = vld [vmem:[#allocation6 + $0x140] sm:$0xff]
    %v1189 = vld [vmem:[#allocation6 + $0x148] sm:$0xff]
    %v1190 = vld [vmem:[#allocation6 + $0x150] sm:$0xff]
    %v1191 = vld [vmem:[#allocation6 + $0x158] sm:$0xff]
    %v1192 = vld [vmem:[#allocation6 + $0x160] sm:$0xff]
    %v1193 = vld [vmem:[#allocation6 + $0x168] sm:$0xff]
    %v1194 = vld [vmem:[#allocation6 + $0x170] sm:$0xff]
    %v1195 = vld [vmem:[#allocation6 + $0x178] sm:$0xff]
    %v1196 = vld [vmem:[#allocation6 + $0x180] sm:$0xff]
    %v1197 = vld [vmem:[#allocation6 + $0x188] sm:$0xff]
    %v1198 = vld [vmem:[#allocation6 + $0x190] sm:$0xff]
    %v1199 = vld [vmem:[#allocation6 + $0x198] sm:$0xff]
    %v1200 = vld [vmem:[#allocation6 + $0x1a0] sm:$0xff]
    %v1201 = vld [vmem:[#allocation6 + $0x1a8] sm:$0xff]
    %v1202 = vld [vmem:[#allocation6 + $0x1b0] sm:$0xff]
    %v1203 = vld [vmem:[#allocation6 + $0x1b8] sm:$0xff]
    %v1204 = vld [vmem:[#allocation6 + $0x1c0] sm:$0xff]
    %v1205 = vld [vmem:[#allocation6 + $0x1c8] sm:$0xff]
    %v1206 = vld [vmem:[#allocation6 + $0x1d0] sm:$0xff]
    %v1207 = vld [vmem:[#allocation6 + $0x1d8] sm:$0xff]
    %v1208 = vld [vmem:[#allocation6 + $0x1e0] sm:$0xff]
    %v1209 = vld [vmem:[#allocation6 + $0x1e8] sm:$0xff]
    %v1210 = vld [vmem:[#allocation6 + $0x1f0] sm:$0xff]
    %v1211 = vld [vmem:[#allocation6 + $0x1f8] sm:$0xff]
    %v1212 = vld [vmem:[#allocation6 + $0x200] sm:$0xff]
    %v1213 = vld [vmem:[#allocation6 + $0x208] sm:$0xff]
    %v1214 = vld [vmem:[#allocation6 + $0x210] sm:$0xff]
    %v1215 = vld [vmem:[#allocation6 + $0x218] sm:$0xff]
    %v1216 = vld [vmem:[#allocation6 + $0x220] sm:$0xff]
    %v1217 = vld [vmem:[#allocation6 + $0x228] sm:$0xff]
    %v1218 = vld [vmem:[#allocation6 + $0x230] sm:$0xff]
    %v1219 = vld [vmem:[#allocation6 + $0x238] sm:$0xff]
    %v1220 = vld [vmem:[#allocation6 + $0x240] sm:$0xff]
    %v1221 = vld [vmem:[#allocation6 + $0x248] sm:$0xff]
    %v1222 = vld [vmem:[#allocation6 + $0x250] sm:$0xff]
    %v1223 = vld [vmem:[#allocation6 + $0x258] sm:$0xff]
    %v1224 = vld [vmem:[#allocation6 + $0x260] sm:$0xff]
    %v1225 = vld [vmem:[#allocation6 + $0x268] sm:$0xff]
    %v1226 = vld [vmem:[#allocation6 + $0x270] sm:$0xff]
    %v1227 = vld [vmem:[#allocation6 + $0x278] sm:$0xff]
    %v1228 = vld [vmem:[#allocation6 + $0x280] sm:$0xff]
    %v1229 = vld [vmem:[#allocation6 + $0x288] sm:$0xff]
    %v1230 = vld [vmem:[#allocation6 + $0x290] sm:$0xff]
    %v1231 = vld [vmem:[#allocation6 + $0x298] sm:$0xff]
    %v1232 = vld [vmem:[#allocation6 + $0x2a0] sm:$0xff]
    %v1233 = vld [vmem:[#allocation6 + $0x2a8] sm:$0xff]
    %v1234 = vld [vmem:[#allocation6 + $0x2b0] sm:$0xff]
    %v1235 = vld [vmem:[#allocation6 + $0x2b8] sm:$0xff]
    %v1236 = vld [vmem:[#allocation6 + $0x2c0] sm:$0xff]
    %v1237 = vld [vmem:[#allocation6 + $0x2c8] sm:$0xff]
    %v1238 = vld [vmem:[#allocation6 + $0x2d0] sm:$0xff]
    %v1239 = vld [vmem:[#allocation6 + $0x2d8] sm:$0xff]
    %v1240 = vld [vmem:[#allocation6 + $0x2e0] sm:$0xff]
    %v1241 = vld [vmem:[#allocation6 + $0x2e8] sm:$0xff]
    %v1242 = vld [vmem:[#allocation6 + $0x2f0] sm:$0xff]
    %v1243 = vld [vmem:[#allocation6 + $0x2f8] sm:$0xff]
    %v1244 = vld [vmem:[#allocation6 + $0x300] sm:$0xff]
    %v1245 = vld [vmem:[#allocation6 + $0x308] sm:$0xff]
    %v1246 = vld [vmem:[#allocation6 + $0x310] sm:$0xff]
    %v1247 = vld [vmem:[#allocation6 + $0x318] sm:$0xff]
    %v1248 = vld [vmem:[#allocation6 + $0x320] sm:$0xff]
    %v1249 = vld [vmem:[#allocation6 + $0x328] sm:$0xff]
    %v1250 = vld [vmem:[#allocation6 + $0x330] sm:$0xff]
    %v1251 = vld [vmem:[#allocation6 + $0x338] sm:$0xff]
    %v1252 = vld [vmem:[#allocation6 + $0x340] sm:$0xff]
    %v1253 = vld [vmem:[#allocation6 + $0x348] sm:$0xff]
    %v1254 = vld [vmem:[#allocation6 + $0x350] sm:$0xff]
    %v1255 = vld [vmem:[#allocation6 + $0x358] sm:$0xff]
    %v1256 = vld [vmem:[#allocation6 + $0x360] sm:$0xff]
    %v1257 = vld [vmem:[#allocation6 + $0x368] sm:$0xff]
    %v1258 = vld [vmem:[#allocation6 + $0x370] sm:$0xff]
    %v1259 = vld [vmem:[#allocation6 + $0x378] sm:$0xff]
    %v1260 = vld [vmem:[#allocation6 + $0x380] sm:$0xff]
    %v1261 = vld [vmem:[#allocation6 + $0x388] sm:$0xff]
    %v1262 = vld [vmem:[#allocation6 + $0x390] sm:$0xff]
    %v1263 = vld [vmem:[#allocation6 + $0x398] sm:$0xff]
    %v1264 = vld [vmem:[#allocation6 + $0x3a0] sm:$0xff]
    %v1265 = vld [vmem:[#allocation6 + $0x3a8] sm:$0xff]
    %v1266 = vld [vmem:[#allocation6 + $0x3b0] sm:$0xff]
    %v1267 = vld [vmem:[#allocation6 + $0x3b8] sm:$0xff]
    %v1268 = vld [vmem:[#allocation6 + $0x3c0] sm:$0xff]
    %v1269 = vld [vmem:[#allocation6 + $0x3c8] sm:$0xff]
    %v1270 = vld [vmem:[#allocation6 + $0x3d0] sm:$0xff]
    %v1271 = vld [vmem:[#allocation6 + $0x3d8] sm:$0xff]
    %v1272 = vld [vmem:[#allocation6 + $0x3e0] sm:$0xff]
    %v1273 = vld [vmem:[#allocation6 + $0x3e8] sm:$0xff]
    %v1274 = vld [vmem:[#allocation6 + $0x3f0] sm:$0xff]
    %v1275 = vld [vmem:[#allocation6 + $0x3f8] sm:$0xff]
    %v1276 = vld [vmem:[#allocation6 + $0x400] sm:$0xff]
    %v1277 = vld [vmem:[#allocation6 + $0x408] sm:$0xff]
    %v1278 = vld [vmem:[#allocation6 + $0x410] sm:$0xff]
    %v1279 = vld [vmem:[#allocation6 + $0x418] sm:$0xff]
    %v1280 = vld [vmem:[#allocation6 + $0x420] sm:$0xff]
    %v1281 = vld [vmem:[#allocation6 + $0x428] sm:$0xff]
    %v1282 = vld [vmem:[#allocation6 + $0x430] sm:$0xff]
    %v1283 = vld [vmem:[#allocation6 + $0x438] sm:$0xff]
    %v1284 = vld [vmem:[#allocation6 + $0x440] sm:$0xff]
    %v1285 = vld [vmem:[#allocation6 + $0x448] sm:$0xff]
    %v1286 = vld [vmem:[#allocation6 + $0x450] sm:$0xff]
    %v1287 = vld [vmem:[#allocation6 + $0x458] sm:$0xff]
    %v1288 = vld [vmem:[#allocation6 + $0x460] sm:$0xff]
    %v1289 = vld [vmem:[#allocation6 + $0x468] sm:$0xff]
    %v1290 = vld [vmem:[#allocation6 + $0x470] sm:$0xff]
    %v1291 = vld [vmem:[#allocation6 + $0x478] sm:$0xff]
    %v1292 = vld [vmem:[#allocation6 + $0x480] sm:$0xff]
    %v1293 = vld [vmem:[#allocation6 + $0x488] sm:$0xff]
    %v1294 = vld [vmem:[#allocation6 + $0x490] sm:$0xff]
    %v1295 = vld [vmem:[#allocation6 + $0x498] sm:$0xff]
    %v1296 = vld [vmem:[#allocation6 + $0x4a0] sm:$0xff]
    %v1297 = vld [vmem:[#allocation6 + $0x4a8] sm:$0xff]
    %v1298 = vld [vmem:[#allocation6 + $0x4b0] sm:$0xff]
    %v1299 = vld [vmem:[#allocation6 + $0x4b8] sm:$0xff]
    %v1300 = vld [vmem:[#allocation6 + $0x4c0] sm:$0xff]
    %v1301 = vld [vmem:[#allocation6 + $0x4c8] sm:$0xff]
    %v1302 = vld [vmem:[#allocation6 + $0x4d0] sm:$0xff]
    %v1303 = vld [vmem:[#allocation6 + $0x4d8] sm:$0xff]
    %v1304 = vld [vmem:[#allocation6 + $0x4e0] sm:$0xff]
    %v1305 = vld [vmem:[#allocation6 + $0x4e8] sm:$0xff]
    %v1306 = vld [vmem:[#allocation6 + $0x4f0] sm:$0xff]
    %v1307 = vld [vmem:[#allocation6 + $0x4f8] sm:$0xff]
    %v1308 = vld [vmem:[#allocation6 + $0x500] sm:$0xff]
    %v1309 = vld [vmem:[#allocation6 + $0x508] sm:$0xff]
    %v1310 = vld [vmem:[#allocation6 + $0x510] sm:$0xff]
    %v1311 = vld [vmem:[#allocation6 + $0x518] sm:$0xff]
    %v1312 = vld [vmem:[#allocation6 + $0x520] sm:$0xff]
    %v1313 = vld [vmem:[#allocation6 + $0x528] sm:$0xff]
    %v1314 = vld [vmem:[#allocation6 + $0x530] sm:$0xff]
    %v1315 = vld [vmem:[#allocation6 + $0x538] sm:$0xff]
    %v1316 = vld [vmem:[#allocation6 + $0x540] sm:$0xff]
    %v1317 = vld [vmem:[#allocation6 + $0x548] sm:$0xff]
    %v1318 = vld [vmem:[#allocation6 + $0x550] sm:$0xff]
    %v1319 = vld [vmem:[#allocation6 + $0x558] sm:$0xff]
    %v1320 = vld [vmem:[#allocation6 + $0x560] sm:$0xff]
    %v1321 = vld [vmem:[#allocation6 + $0x568] sm:$0xff]
    %v1322 = vld [vmem:[#allocation6 + $0x570] sm:$0xff]
    %v1323 = vld [vmem:[#allocation6 + $0x578] sm:$0xff]
    %v1324 = vld [vmem:[#allocation6 + $0x580] sm:$0xff]
    %v1325 = vld [vmem:[#allocation6 + $0x588] sm:$0xff]
    %v1326 = vld [vmem:[#allocation6 + $0x590] sm:$0xff]
    %v1327 = vld [vmem:[#allocation6 + $0x598] sm:$0xff]
    %v1328 = vld [vmem:[#allocation6 + $0x5a0] sm:$0xff]
    %v1329 = vld [vmem:[#allocation6 + $0x5a8] sm:$0xff]
    %v1330 = vld [vmem:[#allocation6 + $0x5b0] sm:$0xff]
    %v1331 = vld [vmem:[#allocation6 + $0x5b8] sm:$0xff]
    %v1332 = vld [vmem:[#allocation6 + $0x5c0] sm:$0xff]
    %v1333 = vld [vmem:[#allocation6 + $0x5c8] sm:$0xff]
    %v1334 = vld [vmem:[#allocation6 + $0x5d0] sm:$0xff]
    %v1335 = vld [vmem:[#allocation6 + $0x5d8] sm:$0xff]
    %v1336 = vld [vmem:[#allocation6 + $0x5e0] sm:$0xff]
    %v1337 = vld [vmem:[#allocation6 + $0x5e8] sm:$0xff]
    %v1338 = vld [vmem:[#allocation6 + $0x5f0] sm:$0xff]
    %v1339 = vld [vmem:[#allocation6 + $0x5f8] sm:$0xff]
    %v1340 = vld [vmem:[#allocation6 + $0x600] sm:$0xff]
    %v1341 = vld [vmem:[#allocation6 + $0x608] sm:$0xff]
    %v1342 = vld [vmem:[#allocation6 + $0x610] sm:$0xff]
    %v1343 = vld [vmem:[#allocation6 + $0x618] sm:$0xff]
    %v1344 = vld [vmem:[#allocation6 + $0x620] sm:$0xff]
    %v1345 = vld [vmem:[#allocation6 + $0x628] sm:$0xff]
    %v1346 = vld [vmem:[#allocation6 + $0x630] sm:$0xff]
    %v1347 = vld [vmem:[#allocation6 + $0x638] sm:$0xff]
    %v1348 = vld [vmem:[#allocation6 + $0x640] sm:$0xff]
    %v1349 = vld [vmem:[#allocation6 + $0x648] sm:$0xff]
    %v1350 = vld [vmem:[#allocation6 + $0x650] sm:$0xff]
    %v1351 = vld [vmem:[#allocation6 + $0x658] sm:$0xff]
    %v1352 = vld [vmem:[#allocation6 + $0x660] sm:$0xff]
    %v1353 = vld [vmem:[#allocation6 + $0x668] sm:$0xff]
    %v1354 = vld [vmem:[#allocation6 + $0x670] sm:$0xff]
    %v1355 = vld [vmem:[#allocation6 + $0x678] sm:$0xff]
    %v1356 = vld [vmem:[#allocation6 + $0x680] sm:$0xff]
    %v1357 = vld [vmem:[#allocation6 + $0x688] sm:$0xff]
    %v1358 = vld [vmem:[#allocation6 + $0x690] sm:$0xff]
    %v1359 = vld [vmem:[#allocation6 + $0x698] sm:$0xff]
    %v1360 = vld [vmem:[#allocation6 + $0x6a0] sm:$0xff]
    %v1361 = vld [vmem:[#allocation6 + $0x6a8] sm:$0xff]
    %v1362 = vld [vmem:[#allocation6 + $0x6b0] sm:$0xff]
    %v1363 = vld [vmem:[#allocation6 + $0x6b8] sm:$0xff]
    %v1364 = vld [vmem:[#allocation6 + $0x6c0] sm:$0xff]
    %v1365 = vld [vmem:[#allocation6 + $0x6c8] sm:$0xff]
    %v1366 = vld [vmem:[#allocation6 + $0x6d0] sm:$0xff]
    %v1367 = vld [vmem:[#allocation6 + $0x6d8] sm:$0xff]
    %v1368 = vld [vmem:[#allocation6 + $0x6e0] sm:$0xff]
    %v1369 = vld [vmem:[#allocation6 + $0x6e8] sm:$0xff]
    %v1370 = vld [vmem:[#allocation6 + $0x6f0] sm:$0xff]
    %v1371 = vld [vmem:[#allocation6 + $0x6f8] sm:$0xff]
    %v1372 = vld [vmem:[#allocation6 + $0x700] sm:$0xff]
    %v1373 = vld [vmem:[#allocation6 + $0x708] sm:$0xff]
    %v1374 = vld [vmem:[#allocation6 + $0x710] sm:$0xff]
    %v1375 = vld [vmem:[#allocation6 + $0x718] sm:$0xff]
    %v1376 = vld [vmem:[#allocation6 + $0x720] sm:$0xff]
    %v1377 = vld [vmem:[#allocation6 + $0x728] sm:$0xff]
    %v1378 = vld [vmem:[#allocation6 + $0x730] sm:$0xff]
    %v1379 = vld [vmem:[#allocation6 + $0x738] sm:$0xff]
    %v1380 = vld [vmem:[#allocation6 + $0x740] sm:$0xff]
    %v1381 = vld [vmem:[#allocation6 + $0x748] sm:$0xff]
    %v1382 = vld [vmem:[#allocation6 + $0x750] sm:$0xff]
    %v1383 = vld [vmem:[#allocation6 + $0x758] sm:$0xff]
    %v1384 = vld [vmem:[#allocation6 + $0x760] sm:$0xff]
    %v1385 = vld [vmem:[#allocation6 + $0x768] sm:$0xff]
    %v1386 = vld [vmem:[#allocation6 + $0x770] sm:$0xff]
    %v1387 = vld [vmem:[#allocation6 + $0x778] sm:$0xff]
    %v1388 = vld [vmem:[#allocation6 + $0x780] sm:$0xff]
    %v1389 = vld [vmem:[#allocation6 + $0x788] sm:$0xff]
    %v1390 = vld [vmem:[#allocation6 + $0x790] sm:$0xff]
    %v1391 = vld [vmem:[#allocation6 + $0x798] sm:$0xff]
    %v1392 = vld [vmem:[#allocation6 + $0x7a0] sm:$0xff]
    %v1393 = vld [vmem:[#allocation6 + $0x7a8] sm:$0xff]
    %v1394 = vld [vmem:[#allocation6 + $0x7b0] sm:$0xff]
    %v1395 = vld [vmem:[#allocation6 + $0x7b8] sm:$0xff]
    %v1396 = vld [vmem:[#allocation6 + $0x7c0] sm:$0xff]
    %v1397 = vld [vmem:[#allocation6 + $0x7c8] sm:$0xff]
    %v1398 = vld [vmem:[#allocation6 + $0x7d0] sm:$0xff]
    %v1399 = vld [vmem:[#allocation6 + $0x7d8] sm:$0xff]
    %v1400 = vld [vmem:[#allocation6 + $0x7e0] sm:$0xff]
    %v1401 = vld [vmem:[#allocation6 + $0x7e8] sm:$0xff]
    %v1402 = vld [vmem:[#allocation6 + $0x7f0] sm:$0xff]
    %v1403 = vld [vmem:[#allocation6 + $0x7f8] sm:$0xff]
    %v1404 = vld [vmem:[#allocation6 + $0x800] sm:$0xff]
    %v1405 = vld [vmem:[#allocation6 + $0x808] sm:$0xff]
    %v1406 = vld [vmem:[#allocation6 + $0x810] sm:$0xff]
    %v1407 = vld [vmem:[#allocation6 + $0x818] sm:$0xff]
    %v1408 = vld [vmem:[#allocation6 + $0x820] sm:$0xff]
    %v1409 = vld [vmem:[#allocation6 + $0x828] sm:$0xff]
    %v1410 = vld [vmem:[#allocation6 + $0x830] sm:$0xff]
    %v1411 = vld [vmem:[#allocation6 + $0x838] sm:$0xff]
    %v1412 = vld [vmem:[#allocation6 + $0x840] sm:$0xff]
    %v1413 = vld [vmem:[#allocation6 + $0x848] sm:$0xff]
    %v1414 = vld [vmem:[#allocation6 + $0x850] sm:$0xff]
    %v1415 = vld [vmem:[#allocation6 + $0x858] sm:$0xff]
    %v1416 = vld [vmem:[#allocation6 + $0x860] sm:$0xff]
    %v1417 = vld [vmem:[#allocation6 + $0x868] sm:$0xff]
    %v1418 = vld [vmem:[#allocation6 + $0x870] sm:$0xff]
    %v1419 = vld [vmem:[#allocation6 + $0x878] sm:$0xff]
    %v1420 = vld [vmem:[#allocation6 + $0x880] sm:$0xff]
    %v1421 = vld [vmem:[#allocation6 + $0x888] sm:$0xff]
    %v1422 = vld [vmem:[#allocation6 + $0x890] sm:$0xff]
    %v1423 = vld [vmem:[#allocation6 + $0x898] sm:$0xff]
    %v1424 = vld [vmem:[#allocation6 + $0x8a0] sm:$0xff]
    %v1425 = vld [vmem:[#allocation6 + $0x8a8] sm:$0xff]
    %v1426 = vld [vmem:[#allocation6 + $0x8b0] sm:$0xff]
    %v1427 = vld [vmem:[#allocation6 + $0x8b8] sm:$0xff]
    %v1428 = vld [vmem:[#allocation6 + $0x8c0] sm:$0xff]
    %v1429 = vld [vmem:[#allocation6 + $0x8c8] sm:$0xff]
    %v1430 = vld [vmem:[#allocation6 + $0x8d0] sm:$0xff]
    %v1431 = vld [vmem:[#allocation6 + $0x8d8] sm:$0xff]
    %v1432 = vld [vmem:[#allocation6 + $0x8e0] sm:$0xff]
    %v1433 = vld [vmem:[#allocation6 + $0x8e8] sm:$0xff]
    %v1434 = vld [vmem:[#allocation6 + $0x8f0] sm:$0xff]
    %v1435 = vld [vmem:[#allocation6 + $0x8f8] sm:$0xff]
    %v1436 = vld [vmem:[#allocation6 + $0x900] sm:$0xff]
    %v1437 = vld [vmem:[#allocation6 + $0x908] sm:$0xff]
    %v1438 = vld [vmem:[#allocation6 + $0x910] sm:$0xff]
    %v1439 = vld [vmem:[#allocation6 + $0x918] sm:$0xff]
    %v1440 = vld [vmem:[#allocation6 + $0x920] sm:$0xff]
    %v1441 = vld [vmem:[#allocation6 + $0x928] sm:$0xff]
    %v1442 = vld [vmem:[#allocation6 + $0x930] sm:$0xff]
    %v1443 = vld [vmem:[#allocation6 + $0x938] sm:$0xff]
    %v1444 = vld [vmem:[#allocation6 + $0x940] sm:$0xff]
    %v1445 = vld [vmem:[#allocation6 + $0x948] sm:$0xff]
    %v1446 = vld [vmem:[#allocation6 + $0x950] sm:$0xff]
    %v1447 = vld [vmem:[#allocation6 + $0x958] sm:$0xff]
    %v1448 = vld [vmem:[#allocation6 + $0x960] sm:$0xff]
    %v1449 = vld [vmem:[#allocation6 + $0x968] sm:$0xff]
    %v1450 = vld [vmem:[#allocation6 + $0x970] sm:$0xff]
    %v1451 = vld [vmem:[#allocation6 + $0x978] sm:$0xff]
    %v1452 = vld [vmem:[#allocation6 + $0x980] sm:$0xff]
    %v1453 = vld [vmem:[#allocation6 + $0x988] sm:$0xff]
    %v1454 = vld [vmem:[#allocation6 + $0x990] sm:$0xff]
    %v1455 = vld [vmem:[#allocation6 + $0x998] sm:$0xff]
    %v1456 = vld [vmem:[#allocation6 + $0x9a0] sm:$0xff]
    %v1457 = vld [vmem:[#allocation6 + $0x9a8] sm:$0xff]
    %v1458 = vld [vmem:[#allocation6 + $0x9b0] sm:$0xff]
    %v1459 = vld [vmem:[#allocation6 + $0x9b8] sm:$0xff]
    %v1460 = vld [vmem:[#allocation6 + $0x9c0] sm:$0xff]
    %v1461 = vld [vmem:[#allocation6 + $0x9c8] sm:$0xff]
    %v1462 = vld [vmem:[#allocation6 + $0x9d0] sm:$0xff]
    %v1463 = vld [vmem:[#allocation6 + $0x9d8] sm:$0xff]
    %v1464 = vld [vmem:[#allocation6 + $0x9e0] sm:$0xff]
    %v1465 = vld [vmem:[#allocation6 + $0x9e8] sm:$0xff]
    %v1466 = vld [vmem:[#allocation6 + $0x9f0] sm:$0xff]
    %v1467 = vld [vmem:[#allocation6 + $0x9f8] sm:$0xff]
    %v1468 = vld [vmem:[#allocation6 + $0xa00] sm:$0xff]
    %v1469 = vld [vmem:[#allocation6 + $0xa08] sm:$0xff]
    %v1470 = vld [vmem:[#allocation6 + $0xa10] sm:$0xff]
    %v1471 = vld [vmem:[#allocation6 + $0xa18] sm:$0xff]
    %v1472 = vld [vmem:[#allocation6 + $0xa20] sm:$0xff]
    %v1473 = vld [vmem:[#allocation6 + $0xa28] sm:$0xff]
    %v1474 = vld [vmem:[#allocation6 + $0xa30] sm:$0xff]
    %v1475 = vld [vmem:[#allocation6 + $0xa38] sm:$0xff]
    %v1476 = vld [vmem:[#allocation6 + $0xa40] sm:$0xff]
    %v1477 = vld [vmem:[#allocation6 + $0xa48] sm:$0xff]
    %v1478 = vld [vmem:[#allocation6 + $0xa50] sm:$0xff]
    %v1479 = vld [vmem:[#allocation6 + $0xa58] sm:$0xff]
    %v1480 = vld [vmem:[#allocation6 + $0xa60] sm:$0xff]
    %v1481 = vld [vmem:[#allocation6 + $0xa68] sm:$0xff]
    %v1482 = vld [vmem:[#allocation6 + $0xa70] sm:$0xff]
    %v1483 = vld [vmem:[#allocation6 + $0xa78] sm:$0xff]
    %v1484 = vld [vmem:[#allocation6 + $0xa80] sm:$0xff]
    %v1485 = vld [vmem:[#allocation6 + $0xa88] sm:$0xff]
    %v1486 = vld [vmem:[#allocation6 + $0xa90] sm:$0xff]
    %v1487 = vld [vmem:[#allocation6 + $0xa98] sm:$0xff]
    %v1488 = vld [vmem:[#allocation6 + $0xaa0] sm:$0xff]
    %v1489 = vld [vmem:[#allocation6 + $0xaa8] sm:$0xff]
    %v1490 = vld [vmem:[#allocation6 + $0xab0] sm:$0xff]
    %v1491 = vld [vmem:[#allocation6 + $0xab8] sm:$0xff]
    %v1492 = vld [vmem:[#allocation6 + $0xac0] sm:$0xff]
    %v1493 = vld [vmem:[#allocation6 + $0xac8] sm:$0xff]
    %v1494 = vld [vmem:[#allocation6 + $0xad0] sm:$0xff]
    %v1495 = vld [vmem:[#allocation6 + $0xad8] sm:$0xff]
    %v1496 = vld [vmem:[#allocation6 + $0xae0] sm:$0xff]
    %v1497 = vld [vmem:[#allocation6 + $0xae8] sm:$0xff]
    %v1498 = vld [vmem:[#allocation6 + $0xaf0] sm:$0xff]
    %v1499 = vld [vmem:[#allocation6 + $0xaf8] sm:$0xff]
    %v1500 = vld [vmem:[#allocation6 + $0xb00] sm:$0xff]
    %v1501 = vld [vmem:[#allocation6 + $0xb08] sm:$0xff]
    %v1502 = vld [vmem:[#allocation6 + $0xb10] sm:$0xff]
    %v1503 = vld [vmem:[#allocation6 + $0xb18] sm:$0xff]
    %v1504 = vld [vmem:[#allocation6 + $0xb20] sm:$0xff]
    %v1505 = vld [vmem:[#allocation6 + $0xb28] sm:$0xff]
    %v1506 = vld [vmem:[#allocation6 + $0xb30] sm:$0xff]
    %v1507 = vld [vmem:[#allocation6 + $0xb38] sm:$0xff]
    %v1508 = vld [vmem:[#allocation6 + $0xb40] sm:$0xff]
    %v1509 = vld [vmem:[#allocation6 + $0xb48] sm:$0xff]
    %v1510 = vld [vmem:[#allocation6 + $0xb50] sm:$0xff]
    %v1511 = vld [vmem:[#allocation6 + $0xb58] sm:$0xff]
    %v1512 = vld [vmem:[#allocation6 + $0xb60] sm:$0xff]
    %v1513 = vld [vmem:[#allocation6 + $0xb68] sm:$0xff]
    %v1514 = vld [vmem:[#allocation6 + $0xb70] sm:$0xff]
    %v1515 = vld [vmem:[#allocation6 + $0xb78] sm:$0xff]
    %v1516 = vld [vmem:[#allocation6 + $0xb80] sm:$0xff]
    %v1517 = vld [vmem:[#allocation6 + $0xb88] sm:$0xff]
    %v1518 = vld [vmem:[#allocation6 + $0xb90] sm:$0xff]
    %v1519 = vld [vmem:[#allocation6 + $0xb98] sm:$0xff]
    %v1520 = vld [vmem:[#allocation6 + $0xba0] sm:$0xff]
    %v1521 = vld [vmem:[#allocation6 + $0xba8] sm:$0xff]
    %v1522 = vld [vmem:[#allocation6 + $0xbb0] sm:$0xff]
    %v1523 = vld [vmem:[#allocation6 + $0xbb8] sm:$0xff]
    %v1524 = vld [vmem:[#allocation6 + $0xbc0] sm:$0xff]
    %v1525 = vld [vmem:[#allocation6 + $0xbc8] sm:$0xff]
    %v1526 = vld [vmem:[#allocation6 + $0xbd0] sm:$0xff]
    %v1527 = vld [vmem:[#allocation6 + $0xbd8] sm:$0xff]
    %v1528 = vld [vmem:[#allocation6 + $0xbe0] sm:$0xff]
    %v1529 = vld [vmem:[#allocation6 + $0xbe8] sm:$0xff]
    %v1530 = vld [vmem:[#allocation6 + $0xbf0] sm:$0xff]
    %v1531 = vld [vmem:[#allocation6 + $0xbf8] sm:$0xff]
    %v1532 = vld [vmem:[#allocation6 + $0xc00] sm:$0xff]
    %v1533 = vld [vmem:[#allocation6 + $0xc08] sm:$0xff]
    %v1534 = vld [vmem:[#allocation6 + $0xc10] sm:$0xff]
    %v1535 = vld [vmem:[#allocation6 + $0xc18] sm:$0xff]
    %v1536 = vld [vmem:[#allocation6 + $0xc20] sm:$0xff]
    %v1537 = vld [vmem:[#allocation6 + $0xc28] sm:$0xff]
    %v1538 = vld [vmem:[#allocation6 + $0xc30] sm:$0xff]
    %v1539 = vld [vmem:[#allocation6 + $0xc38] sm:$0xff]
    %v1540 = vld [vmem:[#allocation6 + $0xc40] sm:$0xff]
    %v1541 = vld [vmem:[#allocation6 + $0xc48] sm:$0xff]
    %v1542 = vld [vmem:[#allocation6 + $0xc50] sm:$0xff]
    %v1543 = vld [vmem:[#allocation6 + $0xc58] sm:$0xff]
    %v1544 = vld [vmem:[#allocation6 + $0xc60] sm:$0xff]
    %v1545 = vld [vmem:[#allocation6 + $0xc68] sm:$0xff]
    %v1546 = vld [vmem:[#allocation6 + $0xc70] sm:$0xff]
    %v1547 = vld [vmem:[#allocation6 + $0xc78] sm:$0xff]
    %v1548 = vld [vmem:[#allocation6 + $0xc80] sm:$0xff]
    %v1549 = vld [vmem:[#allocation6 + $0xc88] sm:$0xff]
    %v1550 = vld [vmem:[#allocation6 + $0xc90] sm:$0xff]
    %v1551 = vld [vmem:[#allocation6 + $0xc98] sm:$0xff]
    %v1552 = vld [vmem:[#allocation6 + $0xca0] sm:$0xff]
    %v1553 = vld [vmem:[#allocation6 + $0xca8] sm:$0xff]
    %v1554 = vld [vmem:[#allocation6 + $0xcb0] sm:$0xff]
    %v1555 = vld [vmem:[#allocation6 + $0xcb8] sm:$0xff]
    %v1556 = vld [vmem:[#allocation6 + $0xcc0] sm:$0xff]
    %v1557 = vld [vmem:[#allocation6 + $0xcc8] sm:$0xff]
    %v1558 = vld [vmem:[#allocation6 + $0xcd0] sm:$0xff]
    %v1559 = vld [vmem:[#allocation6 + $0xcd8] sm:$0xff]
    %v1560 = vld [vmem:[#allocation6 + $0xce0] sm:$0xff]
    %v1561 = vld [vmem:[#allocation6 + $0xce8] sm:$0xff]
    %v1562 = vld [vmem:[#allocation6 + $0xcf0] sm:$0xff]
    %v1563 = vld [vmem:[#allocation6 + $0xcf8] sm:$0xff]
    %v1564 = vld [vmem:[#allocation6 + $0xd00] sm:$0xff]
    %v1565 = vld [vmem:[#allocation6 + $0xd08] sm:$0xff]
    %v1566 = vld [vmem:[#allocation6 + $0xd10] sm:$0xff]
    %v1567 = vld [vmem:[#allocation6 + $0xd18] sm:$0xff]
    %v1568 = vld [vmem:[#allocation6 + $0xd20] sm:$0xff]
    %v1569 = vld [vmem:[#allocation6 + $0xd28] sm:$0xff]
    %v1570 = vld [vmem:[#allocation6 + $0xd30] sm:$0xff]
    %v1571 = vld [vmem:[#allocation6 + $0xd38] sm:$0xff]
    %v1572 = vld [vmem:[#allocation6 + $0xd40] sm:$0xff]
    %v1573 = vld [vmem:[#allocation6 + $0xd48] sm:$0xff]
    %v1574 = vld [vmem:[#allocation6 + $0xd50] sm:$0xff]
    %v1575 = vld [vmem:[#allocation6 + $0xd58] sm:$0xff]
    %v1576 = vld [vmem:[#allocation6 + $0xd60] sm:$0xff]
    %v1577 = vld [vmem:[#allocation6 + $0xd68] sm:$0xff]
    %v1578 = vld [vmem:[#allocation6 + $0xd70] sm:$0xff]
    %v1579 = vld [vmem:[#allocation6 + $0xd78] sm:$0xff]
    %v1580 = vld [vmem:[#allocation6 + $0xd80] sm:$0xff]
    %v1581 = vld [vmem:[#allocation6 + $0xd88] sm:$0xff]
    %v1582 = vld [vmem:[#allocation6 + $0xd90] sm:$0xff]
    %v1583 = vld [vmem:[#allocation6 + $0xd98] sm:$0xff]
    %v1584 = vld [vmem:[#allocation6 + $0xda0] sm:$0xff]
    %v1585 = vld [vmem:[#allocation6 + $0xda8] sm:$0xff]
    %v1586 = vld [vmem:[#allocation6 + $0xdb0] sm:$0xff]
    %v1587 = vld [vmem:[#allocation6 + $0xdb8] sm:$0xff]
    %v1588 = vld [vmem:[#allocation6 + $0xdc0] sm:$0xff]
    %v1589 = vld [vmem:[#allocation6 + $0xdc8] sm:$0xff]
    %v1590 = vld [vmem:[#allocation6 + $0xdd0] sm:$0xff]
    %v1591 = vld [vmem:[#allocation6 + $0xdd8] sm:$0xff]
    %v1592 = vld [vmem:[#allocation6 + $0xde0] sm:$0xff]
    %v1593 = vld [vmem:[#allocation6 + $0xde8] sm:$0xff]
    %v1594 = vld [vmem:[#allocation6 + $0xdf0] sm:$0xff]
    %v1595 = vld [vmem:[#allocation6 + $0xdf8] sm:$0xff]
    %v1596 = vld [vmem:[#allocation6 + $0xe00] sm:$0xff]
    %v1597 = vld [vmem:[#allocation6 + $0xe08] sm:$0xff]
    %v1598 = vld [vmem:[#allocation6 + $0xe10] sm:$0xff]
    %v1599 = vld [vmem:[#allocation6 + $0xe18] sm:$0xff]
    %v1600 = vld [vmem:[#allocation6 + $0xe20] sm:$0xff]
    %v1601 = vld [vmem:[#allocation6 + $0xe28] sm:$0xff]
    %v1602 = vld [vmem:[#allocation6 + $0xe30] sm:$0xff]
    %v1603 = vld [vmem:[#allocation6 + $0xe38] sm:$0xff]
    %v1604 = vld [vmem:[#allocation6 + $0xe40] sm:$0xff]
    %v1605 = vld [vmem:[#allocation6 + $0xe48] sm:$0xff]
    %v1606 = vld [vmem:[#allocation6 + $0xe50] sm:$0xff]
    %v1607 = vld [vmem:[#allocation6 + $0xe58] sm:$0xff]
    %v1608 = vld [vmem:[#allocation6 + $0xe60] sm:$0xff]
    %v1609 = vld [vmem:[#allocation6 + $0xe68] sm:$0xff]
    %v1610 = vld [vmem:[#allocation6 + $0xe70] sm:$0xff]
    %v1611 = vld [vmem:[#allocation6 + $0xe78] sm:$0xff]
    %v1612 = vld [vmem:[#allocation6 + $0xe80] sm:$0xff]
    %v1613 = vld [vmem:[#allocation6 + $0xe88] sm:$0xff]
    %v1614 = vld [vmem:[#allocation6 + $0xe90] sm:$0xff]
    %v1615 = vld [vmem:[#allocation6 + $0xe98] sm:$0xff]
    %v1616 = vld [vmem:[#allocation6 + $0xea0] sm:$0xff]
    %v1617 = vld [vmem:[#allocation6 + $0xea8] sm:$0xff]
    %v1618 = vld [vmem:[#allocation6 + $0xeb0] sm:$0xff]
    %v1619 = vld [vmem:[#allocation6 + $0xeb8] sm:$0xff]
    %v1620 = vld [vmem:[#allocation6 + $0xec0] sm:$0xff]
    %v1621 = vld [vmem:[#allocation6 + $0xec8] sm:$0xff]
    %v1622 = vld [vmem:[#allocation6 + $0xed0] sm:$0xff]
    %v1623 = vld [vmem:[#allocation6 + $0xed8] sm:$0xff]
    %v1624 = vld [vmem:[#allocation6 + $0xee0] sm:$0xff]
    %v1625 = vld [vmem:[#allocation6 + $0xee8] sm:$0xff]
    %v1626 = vld [vmem:[#allocation6 + $0xef0] sm:$0xff]
    %v1627 = vld [vmem:[#allocation6 + $0xef8] sm:$0xff]
    %v1628 = vld [vmem:[#allocation6 + $0xf00] sm:$0xff]
    %v1629 = vld [vmem:[#allocation6 + $0xf08] sm:$0xff]
    %v1630 = vld [vmem:[#allocation6 + $0xf10] sm:$0xff]
    %v1631 = vld [vmem:[#allocation6 + $0xf18] sm:$0xff]
    %v1632 = vld [vmem:[#allocation6 + $0xf20] sm:$0xff]
    %v1633 = vld [vmem:[#allocation6 + $0xf28] sm:$0xff]
    %v1634 = vld [vmem:[#allocation6 + $0xf30] sm:$0xff]
    %v1635 = vld [vmem:[#allocation6 + $0xf38] sm:$0xff]
    %v1636 = vld [vmem:[#allocation6 + $0xf40] sm:$0xff]
    %v1637 = vld [vmem:[#allocation6 + $0xf48] sm:$0xff]
    %v1638 = vld [vmem:[#allocation6 + $0xf50] sm:$0xff]
    %v1639 = vld [vmem:[#allocation6 + $0xf58] sm:$0xff]
    %v1640 = vld [vmem:[#allocation6 + $0xf60] sm:$0xff]
    %v1641 = vld [vmem:[#allocation6 + $0xf68] sm:$0xff]
    %v1642 = vld [vmem:[#allocation6 + $0xf70] sm:$0xff]
    %v1643 = vld [vmem:[#allocation6 + $0xf78] sm:$0xff]
    %v1644 = vld [vmem:[#allocation6 + $0xf80] sm:$0xff]
    %v1645 = vld [vmem:[#allocation6 + $0xf88] sm:$0xff]
    %v1646 = vld [vmem:[#allocation6 + $0xf90] sm:$0xff]
    %v1647 = vld [vmem:[#allocation6 + $0xf98] sm:$0xff]
    %v1648 = vld [vmem:[#allocation6 + $0xfa0] sm:$0xff]
    %v1649 = vld [vmem:[#allocation6 + $0xfa8] sm:$0xff]
    %v1650 = vld [vmem:[#allocation6 + $0xfb0] sm:$0xff]
    %v1651 = vld [vmem:[#allocation6 + $0xfb8] sm:$0xff]
    %v1652 = vld [vmem:[#allocation6 + $0xfc0] sm:$0xff]
    %v1653 = vld [vmem:[#allocation6 + $0xfc8] sm:$0xff]
    %v1654 = vld [vmem:[#allocation6 + $0xfd0] sm:$0xff]
    %v1655 = vld [vmem:[#allocation6 + $0xfd8] sm:$0xff]
    %v1656 = vld [vmem:[#allocation6 + $0xfe0] sm:$0xff]
    %v1657 = vld [vmem:[#allocation6 + $0xfe8] sm:$0xff]
    %v1658 = vld [vmem:[#allocation6 + $0xff0] sm:$0xff]
    %v1659 = vld [vmem:[#allocation6 + $0xff8] sm:$0xff]
    %v1660 = vld [vmem:[#allocation7] sm:$0xff]
    %v1662 = vlaneseq
    %v1663 = vshrl.u32 %v1662, 7
    %v1664 = vsub.s32 0, %v1663
    %v1665 = vrot.slane %v1660, %v1664
    %v1666 = vlaneseq
    %v1667 = vshrl.u32 %v1666, 7
    %v1668 = vsub.s32 1, %v1667
    %v1669 = vrot.slane %v1660, %v1668
    %v1670 = vlaneseq
    %v1671 = vshrl.u32 %v1670, 7
    %v1672 = vsub.s32 2, %v1671
    %v1673 = vrot.slane %v1660, %v1672
    %v1674 = vlaneseq
    %v1675 = vshrl.u32 %v1674, 7
    %v1676 = vsub.s32 3, %v1675
    %v1677 = vrot.slane %v1660, %v1676
    %v1678 = vlaneseq
    %v1679 = vshrl.u32 %v1678, 7
    %v1680 = vsub.s32 4, %v1679
    %v1681 = vrot.slane %v1660, %v1680
    %v1682 = vlaneseq
    %v1683 = vshrl.u32 %v1682, 7
    %v1684 = vsub.s32 5, %v1683
    %v1685 = vrot.slane %v1660, %v1684
    %v1686 = vlaneseq
    %v1687 = vshrl.u32 %v1686, 7
    %v1688 = vsub.s32 6, %v1687
    %v1689 = vrot.slane %v1660, %v1688
    %v1690 = vlaneseq
    %v1691 = vshrl.u32 %v1690, 7
    %v1692 = vsub.s32 7, %v1691
    %v1693 = vrot.slane %v1660, %v1692
    %v2214 = vunpack.c.l.b16 %v1148
    %v2215 = vunpack.c.h.b16 %v1148
    %v2216 = vunpack.c.l.b16 %v1149
    %v2217 = vunpack.c.h.b16 %v1149
    %v2218 = vunpack.c.l.b16 %v1150
    %v2219 = vunpack.c.h.b16 %v1150
    %v2220 = vunpack.c.l.b16 %v1151
    %v2221 = vunpack.c.h.b16 %v1151
    %v2222 = vunpack.c.l.b16 %v1152
    %v2223 = vunpack.c.h.b16 %v1152
    %v2224 = vunpack.c.l.b16 %v1153
    %v2225 = vunpack.c.h.b16 %v1153
    %v2226 = vunpack.c.l.b16 %v1154
    %v2227 = vunpack.c.h.b16 %v1154
    %v2228 = vunpack.c.l.b16 %v1155
    %v2229 = vunpack.c.h.b16 %v1155
    %v2230 = vunpack.c.l.b16 %v1156
    %v2231 = vunpack.c.h.b16 %v1156
    %v2232 = vunpack.c.l.b16 %v1157
    %v2233 = vunpack.c.h.b16 %v1157
    %v2234 = vunpack.c.l.b16 %v1158
    %v2235 = vunpack.c.h.b16 %v1158
    %v2236 = vunpack.c.l.b16 %v1159
    %v2237 = vunpack.c.h.b16 %v1159
    %v2238 = vunpack.c.l.b16 %v1160
    %v2239 = vunpack.c.h.b16 %v1160
    %v2240 = vunpack.c.l.b16 %v1161
    %v2241 = vunpack.c.h.b16 %v1161
    %v2242 = vunpack.c.l.b16 %v1162
    %v2243 = vunpack.c.h.b16 %v1162
    %v2244 = vunpack.c.l.b16 %v1163
    %v2245 = vunpack.c.h.b16 %v1163
    %v2246 = vunpack.c.l.b16 %v1164
    %v2247 = vunpack.c.h.b16 %v1164
    %v2248 = vunpack.c.l.b16 %v1165
    %v2249 = vunpack.c.h.b16 %v1165
    %v2250 = vunpack.c.l.b16 %v1166
    %v2251 = vunpack.c.h.b16 %v1166
    %v2252 = vunpack.c.l.b16 %v1167
    %v2253 = vunpack.c.h.b16 %v1167
    %v2254 = vunpack.c.l.b16 %v1168
    %v2255 = vunpack.c.h.b16 %v1168
    %v2256 = vunpack.c.l.b16 %v1169
    %v2257 = vunpack.c.h.b16 %v1169
    %v2258 = vunpack.c.l.b16 %v1170
    %v2259 = vunpack.c.h.b16 %v1170
    %v2260 = vunpack.c.l.b16 %v1171
    %v2261 = vunpack.c.h.b16 %v1171
    %v2262 = vunpack.c.l.b16 %v1172
    %v2263 = vunpack.c.h.b16 %v1172
    %v2264 = vunpack.c.l.b16 %v1173
    %v2265 = vunpack.c.h.b16 %v1173
    %v2266 = vunpack.c.l.b16 %v1174
    %v2267 = vunpack.c.h.b16 %v1174
    %v2268 = vunpack.c.l.b16 %v1175
    %v2269 = vunpack.c.h.b16 %v1175
    %v2270 = vunpack.c.l.b16 %v1176
    %v2271 = vunpack.c.h.b16 %v1176
    %v2272 = vunpack.c.l.b16 %v1177
    %v2273 = vunpack.c.h.b16 %v1177
    %v2274 = vunpack.c.l.b16 %v1178
    %v2275 = vunpack.c.h.b16 %v1178
    %v2276 = vunpack.c.l.b16 %v1179
    %v2277 = vunpack.c.h.b16 %v1179
    %v2278 = vunpack.c.l.b16 %v1180
    %v2279 = vunpack.c.h.b16 %v1180
    %v2280 = vunpack.c.l.b16 %v1181
    %v2281 = vunpack.c.h.b16 %v1181
    %v2282 = vunpack.c.l.b16 %v1182
    %v2283 = vunpack.c.h.b16 %v1182
    %v2284 = vunpack.c.l.b16 %v1183
    %v2285 = vunpack.c.h.b16 %v1183
    %v2286 = vunpack.c.l.b16 %v1184
    %v2287 = vunpack.c.h.b16 %v1184
    %v2288 = vunpack.c.l.b16 %v1185
    %v2289 = vunpack.c.h.b16 %v1185
    %v2290 = vunpack.c.l.b16 %v1186
    %v2291 = vunpack.c.h.b16 %v1186
    %v2292 = vunpack.c.l.b16 %v1187
    %v2293 = vunpack.c.h.b16 %v1187
    %v2294 = vunpack.c.l.b16 %v1188
    %v2295 = vunpack.c.h.b16 %v1188
    %v2296 = vunpack.c.l.b16 %v1189
    %v2297 = vunpack.c.h.b16 %v1189
    %v2298 = vunpack.c.l.b16 %v1190
    %v2299 = vunpack.c.h.b16 %v1190
    %v2300 = vunpack.c.l.b16 %v1191
    %v2301 = vunpack.c.h.b16 %v1191
    %v2302 = vunpack.c.l.b16 %v1192
    %v2303 = vunpack.c.h.b16 %v1192
    %v2304 = vunpack.c.l.b16 %v1193
    %v2305 = vunpack.c.h.b16 %v1193
    %v2306 = vunpack.c.l.b16 %v1194
    %v2307 = vunpack.c.h.b16 %v1194
    %v2308 = vunpack.c.l.b16 %v1195
    %v2309 = vunpack.c.h.b16 %v1195
    %v2310 = vunpack.c.l.b16 %v1196
    %v2311 = vunpack.c.h.b16 %v1196
    %v2312 = vunpack.c.l.b16 %v1197
    %v2313 = vunpack.c.h.b16 %v1197
    %v2314 = vunpack.c.l.b16 %v1198
    %v2315 = vunpack.c.h.b16 %v1198
    %v2316 = vunpack.c.l.b16 %v1199
    %v2317 = vunpack.c.h.b16 %v1199
    %v2318 = vunpack.c.l.b16 %v1200
    %v2319 = vunpack.c.h.b16 %v1200
    %v2320 = vunpack.c.l.b16 %v1201
    %v2321 = vunpack.c.h.b16 %v1201
    %v2322 = vunpack.c.l.b16 %v1202
    %v2323 = vunpack.c.h.b16 %v1202
    %v2324 = vunpack.c.l.b16 %v1203
    %v2325 = vunpack.c.h.b16 %v1203
    %v2326 = vunpack.c.l.b16 %v1204
    %v2327 = vunpack.c.h.b16 %v1204
    %v2328 = vunpack.c.l.b16 %v1205
    %v2329 = vunpack.c.h.b16 %v1205
    %v2330 = vunpack.c.l.b16 %v1206
    %v2331 = vunpack.c.h.b16 %v1206
    %v2332 = vunpack.c.l.b16 %v1207
    %v2333 = vunpack.c.h.b16 %v1207
    %v2334 = vunpack.c.l.b16 %v1208
    %v2335 = vunpack.c.h.b16 %v1208
    %v2336 = vunpack.c.l.b16 %v1209
    %v2337 = vunpack.c.h.b16 %v1209
    %v2338 = vunpack.c.l.b16 %v1210
    %v2339 = vunpack.c.h.b16 %v1210
    %v2340 = vunpack.c.l.b16 %v1211
    %v2341 = vunpack.c.h.b16 %v1211
    %v2342 = vunpack.c.l.b16 %v1212
    %v2343 = vunpack.c.h.b16 %v1212
    %v2344 = vunpack.c.l.b16 %v1213
    %v2345 = vunpack.c.h.b16 %v1213
    %v2346 = vunpack.c.l.b16 %v1214
    %v2347 = vunpack.c.h.b16 %v1214
    %v2348 = vunpack.c.l.b16 %v1215
    %v2349 = vunpack.c.h.b16 %v1215
    %v2350 = vunpack.c.l.b16 %v1216
    %v2351 = vunpack.c.h.b16 %v1216
    %v2352 = vunpack.c.l.b16 %v1217
    %v2353 = vunpack.c.h.b16 %v1217
    %v2354 = vunpack.c.l.b16 %v1218
    %v2355 = vunpack.c.h.b16 %v1218
    %v2356 = vunpack.c.l.b16 %v1219
    %v2357 = vunpack.c.h.b16 %v1219
    %v2358 = vunpack.c.l.b16 %v1220
    %v2359 = vunpack.c.h.b16 %v1220
    %v2360 = vunpack.c.l.b16 %v1221
    %v2361 = vunpack.c.h.b16 %v1221
    %v2362 = vunpack.c.l.b16 %v1222
    %v2363 = vunpack.c.h.b16 %v1222
    %v2364 = vunpack.c.l.b16 %v1223
    %v2365 = vunpack.c.h.b16 %v1223
    %v2366 = vunpack.c.l.b16 %v1224
    %v2367 = vunpack.c.h.b16 %v1224
    %v2368 = vunpack.c.l.b16 %v1225
    %v2369 = vunpack.c.h.b16 %v1225
    %v2370 = vunpack.c.l.b16 %v1226
    %v2371 = vunpack.c.h.b16 %v1226
    %v2372 = vunpack.c.l.b16 %v1227
    %v2373 = vunpack.c.h.b16 %v1227
    %v2374 = vunpack.c.l.b16 %v1228
    %v2375 = vunpack.c.h.b16 %v1228
    %v2376 = vunpack.c.l.b16 %v1229
    %v2377 = vunpack.c.h.b16 %v1229
    %v2378 = vunpack.c.l.b16 %v1230
    %v2379 = vunpack.c.h.b16 %v1230
    %v2380 = vunpack.c.l.b16 %v1231
    %v2381 = vunpack.c.h.b16 %v1231
    %v2382 = vunpack.c.l.b16 %v1232
    %v2383 = vunpack.c.h.b16 %v1232
    %v2384 = vunpack.c.l.b16 %v1233
    %v2385 = vunpack.c.h.b16 %v1233
    %v2386 = vunpack.c.l.b16 %v1234
    %v2387 = vunpack.c.h.b16 %v1234
    %v2388 = vunpack.c.l.b16 %v1235
    %v2389 = vunpack.c.h.b16 %v1235
    %v2390 = vunpack.c.l.b16 %v1236
    %v2391 = vunpack.c.h.b16 %v1236
    %v2392 = vunpack.c.l.b16 %v1237
    %v2393 = vunpack.c.h.b16 %v1237
    %v2394 = vunpack.c.l.b16 %v1238
    %v2395 = vunpack.c.h.b16 %v1238
    %v2396 = vunpack.c.l.b16 %v1239
    %v2397 = vunpack.c.h.b16 %v1239
    %v2398 = vunpack.c.l.b16 %v1240
    %v2399 = vunpack.c.h.b16 %v1240
    %v2400 = vunpack.c.l.b16 %v1241
    %v2401 = vunpack.c.h.b16 %v1241
    %v2402 = vunpack.c.l.b16 %v1242
    %v2403 = vunpack.c.h.b16 %v1242
    %v2404 = vunpack.c.l.b16 %v1243
    %v2405 = vunpack.c.h.b16 %v1243
    %v2406 = vunpack.c.l.b16 %v1244
    %v2407 = vunpack.c.h.b16 %v1244
    %v2408 = vunpack.c.l.b16 %v1245
    %v2409 = vunpack.c.h.b16 %v1245
    %v2410 = vunpack.c.l.b16 %v1246
    %v2411 = vunpack.c.h.b16 %v1246
    %v2412 = vunpack.c.l.b16 %v1247
    %v2413 = vunpack.c.h.b16 %v1247
    %v2414 = vunpack.c.l.b16 %v1248
    %v2415 = vunpack.c.h.b16 %v1248
    %v2416 = vunpack.c.l.b16 %v1249
    %v2417 = vunpack.c.h.b16 %v1249
    %v2418 = vunpack.c.l.b16 %v1250
    %v2419 = vunpack.c.h.b16 %v1250
    %v2420 = vunpack.c.l.b16 %v1251
    %v2421 = vunpack.c.h.b16 %v1251
    %v2422 = vunpack.c.l.b16 %v1252
    %v2423 = vunpack.c.h.b16 %v1252
    %v2424 = vunpack.c.l.b16 %v1253
    %v2425 = vunpack.c.h.b16 %v1253
    %v2426 = vunpack.c.l.b16 %v1254
    %v2427 = vunpack.c.h.b16 %v1254
    %v2428 = vunpack.c.l.b16 %v1255
    %v2429 = vunpack.c.h.b16 %v1255
    %v2430 = vunpack.c.l.b16 %v1256
    %v2431 = vunpack.c.h.b16 %v1256
    %v2432 = vunpack.c.l.b16 %v1257
    %v2433 = vunpack.c.h.b16 %v1257
    %v2434 = vunpack.c.l.b16 %v1258
    %v2435 = vunpack.c.h.b16 %v1258
    %v2436 = vunpack.c.l.b16 %v1259
    %v2437 = vunpack.c.h.b16 %v1259
    %v2438 = vunpack.c.l.b16 %v1260
    %v2439 = vunpack.c.h.b16 %v1260
    %v2440 = vunpack.c.l.b16 %v1261
    %v2441 = vunpack.c.h.b16 %v1261
    %v2442 = vunpack.c.l.b16 %v1262
    %v2443 = vunpack.c.h.b16 %v1262
    %v2444 = vunpack.c.l.b16 %v1263
    %v2445 = vunpack.c.h.b16 %v1263
    %v2446 = vunpack.c.l.b16 %v1264
    %v2447 = vunpack.c.h.b16 %v1264
    %v2448 = vunpack.c.l.b16 %v1265
    %v2449 = vunpack.c.h.b16 %v1265
    %v2450 = vunpack.c.l.b16 %v1266
    %v2451 = vunpack.c.h.b16 %v1266
    %v2452 = vunpack.c.l.b16 %v1267
    %v2453 = vunpack.c.h.b16 %v1267
    %v2454 = vunpack.c.l.b16 %v1268
    %v2455 = vunpack.c.h.b16 %v1268
    %v2456 = vunpack.c.l.b16 %v1269
    %v2457 = vunpack.c.h.b16 %v1269
    %v2458 = vunpack.c.l.b16 %v1270
    %v2459 = vunpack.c.h.b16 %v1270
    %v2460 = vunpack.c.l.b16 %v1271
    %v2461 = vunpack.c.h.b16 %v1271
    %v2462 = vunpack.c.l.b16 %v1272
    %v2463 = vunpack.c.h.b16 %v1272
    %v2464 = vunpack.c.l.b16 %v1273
    %v2465 = vunpack.c.h.b16 %v1273
    %v2466 = vunpack.c.l.b16 %v1274
    %v2467 = vunpack.c.h.b16 %v1274
    %v2468 = vunpack.c.l.b16 %v1275
    %v2469 = vunpack.c.h.b16 %v1275
    %v2470 = vunpack.c.l.b16 %v1276
    %v2471 = vunpack.c.h.b16 %v1276
    %v2472 = vunpack.c.l.b16 %v1277
    %v2473 = vunpack.c.h.b16 %v1277
    %v2474 = vunpack.c.l.b16 %v1278
    %v2475 = vunpack.c.h.b16 %v1278
    %v2476 = vunpack.c.l.b16 %v1279
    %v2477 = vunpack.c.h.b16 %v1279
    %v2478 = vunpack.c.l.b16 %v1280
    %v2479 = vunpack.c.h.b16 %v1280
    %v2480 = vunpack.c.l.b16 %v1281
    %v2481 = vunpack.c.h.b16 %v1281
    %v2482 = vunpack.c.l.b16 %v1282
    %v2483 = vunpack.c.h.b16 %v1282
    %v2484 = vunpack.c.l.b16 %v1283
    %v2485 = vunpack.c.h.b16 %v1283
    %v2486 = vunpack.c.l.b16 %v1284
    %v2487 = vunpack.c.h.b16 %v1284
    %v2488 = vunpack.c.l.b16 %v1285
    %v2489 = vunpack.c.h.b16 %v1285
    %v2490 = vunpack.c.l.b16 %v1286
    %v2491 = vunpack.c.h.b16 %v1286
    %v2492 = vunpack.c.l.b16 %v1287
    %v2493 = vunpack.c.h.b16 %v1287
    %v2494 = vunpack.c.l.b16 %v1288
    %v2495 = vunpack.c.h.b16 %v1288
    %v2496 = vunpack.c.l.b16 %v1289
    %v2497 = vunpack.c.h.b16 %v1289
    %v2498 = vunpack.c.l.b16 %v1290
    %v2499 = vunpack.c.h.b16 %v1290
    %v2500 = vunpack.c.l.b16 %v1291
    %v2501 = vunpack.c.h.b16 %v1291
    %v2502 = vunpack.c.l.b16 %v1292
    %v2503 = vunpack.c.h.b16 %v1292
    %v2504 = vunpack.c.l.b16 %v1293
    %v2505 = vunpack.c.h.b16 %v1293
    %v2506 = vunpack.c.l.b16 %v1294
    %v2507 = vunpack.c.h.b16 %v1294
    %v2508 = vunpack.c.l.b16 %v1295
    %v2509 = vunpack.c.h.b16 %v1295
    %v2510 = vunpack.c.l.b16 %v1296
    %v2511 = vunpack.c.h.b16 %v1296
    %v2512 = vunpack.c.l.b16 %v1297
    %v2513 = vunpack.c.h.b16 %v1297
    %v2514 = vunpack.c.l.b16 %v1298
    %v2515 = vunpack.c.h.b16 %v1298
    %v2516 = vunpack.c.l.b16 %v1299
    %v2517 = vunpack.c.h.b16 %v1299
    %v2518 = vunpack.c.l.b16 %v1300
    %v2519 = vunpack.c.h.b16 %v1300
    %v2520 = vunpack.c.l.b16 %v1301
    %v2521 = vunpack.c.h.b16 %v1301
    %v2522 = vunpack.c.l.b16 %v1302
    %v2523 = vunpack.c.h.b16 %v1302
    %v2524 = vunpack.c.l.b16 %v1303
    %v2525 = vunpack.c.h.b16 %v1303
    %v2526 = vunpack.c.l.b16 %v1304
    %v2527 = vunpack.c.h.b16 %v1304
    %v2528 = vunpack.c.l.b16 %v1305
    %v2529 = vunpack.c.h.b16 %v1305
    %v2530 = vunpack.c.l.b16 %v1306
    %v2531 = vunpack.c.h.b16 %v1306
    %v2532 = vunpack.c.l.b16 %v1307
    %v2533 = vunpack.c.h.b16 %v1307
    %v2534 = vunpack.c.l.b16 %v1308
    %v2535 = vunpack.c.h.b16 %v1308
    %v2536 = vunpack.c.l.b16 %v1309
    %v2537 = vunpack.c.h.b16 %v1309
    %v2538 = vunpack.c.l.b16 %v1310
    %v2539 = vunpack.c.h.b16 %v1310
    %v2540 = vunpack.c.l.b16 %v1311
    %v2541 = vunpack.c.h.b16 %v1311
    %v2542 = vunpack.c.l.b16 %v1312
    %v2543 = vunpack.c.h.b16 %v1312
    %v2544 = vunpack.c.l.b16 %v1313
    %v2545 = vunpack.c.h.b16 %v1313
    %v2546 = vunpack.c.l.b16 %v1314
    %v2547 = vunpack.c.h.b16 %v1314
    %v2548 = vunpack.c.l.b16 %v1315
    %v2549 = vunpack.c.h.b16 %v1315
    %v2550 = vunpack.c.l.b16 %v1316
    %v2551 = vunpack.c.h.b16 %v1316
    %v2552 = vunpack.c.l.b16 %v1317
    %v2553 = vunpack.c.h.b16 %v1317
    %v2554 = vunpack.c.l.b16 %v1318
    %v2555 = vunpack.c.h.b16 %v1318
    %v2556 = vunpack.c.l.b16 %v1319
    %v2557 = vunpack.c.h.b16 %v1319
    %v2558 = vunpack.c.l.b16 %v1320
    %v2559 = vunpack.c.h.b16 %v1320
    %v2560 = vunpack.c.l.b16 %v1321
    %v2561 = vunpack.c.h.b16 %v1321
    %v2562 = vunpack.c.l.b16 %v1322
    %v2563 = vunpack.c.h.b16 %v1322
    %v2564 = vunpack.c.l.b16 %v1323
    %v2565 = vunpack.c.h.b16 %v1323
    %v2566 = vunpack.c.l.b16 %v1324
    %v2567 = vunpack.c.h.b16 %v1324
    %v2568 = vunpack.c.l.b16 %v1325
    %v2569 = vunpack.c.h.b16 %v1325
    %v2570 = vunpack.c.l.b16 %v1326
    %v2571 = vunpack.c.h.b16 %v1326
    %v2572 = vunpack.c.l.b16 %v1327
    %v2573 = vunpack.c.h.b16 %v1327
    %v2574 = vunpack.c.l.b16 %v1328
    %v2575 = vunpack.c.h.b16 %v1328
    %v2576 = vunpack.c.l.b16 %v1329
    %v2577 = vunpack.c.h.b16 %v1329
    %v2578 = vunpack.c.l.b16 %v1330
    %v2579 = vunpack.c.h.b16 %v1330
    %v2580 = vunpack.c.l.b16 %v1331
    %v2581 = vunpack.c.h.b16 %v1331
    %v2582 = vunpack.c.l.b16 %v1332
    %v2583 = vunpack.c.h.b16 %v1332
    %v2584 = vunpack.c.l.b16 %v1333
    %v2585 = vunpack.c.h.b16 %v1333
    %v2586 = vunpack.c.l.b16 %v1334
    %v2587 = vunpack.c.h.b16 %v1334
    %v2588 = vunpack.c.l.b16 %v1335
    %v2589 = vunpack.c.h.b16 %v1335
    %v2590 = vunpack.c.l.b16 %v1336
    %v2591 = vunpack.c.h.b16 %v1336
    %v2592 = vunpack.c.l.b16 %v1337
    %v2593 = vunpack.c.h.b16 %v1337
    %v2594 = vunpack.c.l.b16 %v1338
    %v2595 = vunpack.c.h.b16 %v1338
    %v2596 = vunpack.c.l.b16 %v1339
    %v2597 = vunpack.c.h.b16 %v1339
    %v2598 = vunpack.c.l.b16 %v1340
    %v2599 = vunpack.c.h.b16 %v1340
    %v2600 = vunpack.c.l.b16 %v1341
    %v2601 = vunpack.c.h.b16 %v1341
    %v2602 = vunpack.c.l.b16 %v1342
    %v2603 = vunpack.c.h.b16 %v1342
    %v2604 = vunpack.c.l.b16 %v1343
    %v2605 = vunpack.c.h.b16 %v1343
    %v2606 = vunpack.c.l.b16 %v1344
    %v2607 = vunpack.c.h.b16 %v1344
    %v2608 = vunpack.c.l.b16 %v1345
    %v2609 = vunpack.c.h.b16 %v1345
    %v2610 = vunpack.c.l.b16 %v1346
    %v2611 = vunpack.c.h.b16 %v1346
    %v2612 = vunpack.c.l.b16 %v1347
    %v2613 = vunpack.c.h.b16 %v1347
    %v2614 = vunpack.c.l.b16 %v1348
    %v2615 = vunpack.c.h.b16 %v1348
    %v2616 = vunpack.c.l.b16 %v1349
    %v2617 = vunpack.c.h.b16 %v1349
    %v2618 = vunpack.c.l.b16 %v1350
    %v2619 = vunpack.c.h.b16 %v1350
    %v2620 = vunpack.c.l.b16 %v1351
    %v2621 = vunpack.c.h.b16 %v1351
    %v2622 = vunpack.c.l.b16 %v1352
    %v2623 = vunpack.c.h.b16 %v1352
    %v2624 = vunpack.c.l.b16 %v1353
    %v2625 = vunpack.c.h.b16 %v1353
    %v2626 = vunpack.c.l.b16 %v1354
    %v2627 = vunpack.c.h.b16 %v1354
    %v2628 = vunpack.c.l.b16 %v1355
    %v2629 = vunpack.c.h.b16 %v1355
    %v2630 = vunpack.c.l.b16 %v1356
    %v2631 = vunpack.c.h.b16 %v1356
    %v2632 = vunpack.c.l.b16 %v1357
    %v2633 = vunpack.c.h.b16 %v1357
    %v2634 = vunpack.c.l.b16 %v1358
    %v2635 = vunpack.c.h.b16 %v1358
    %v2636 = vunpack.c.l.b16 %v1359
    %v2637 = vunpack.c.h.b16 %v1359
    %v2638 = vunpack.c.l.b16 %v1360
    %v2639 = vunpack.c.h.b16 %v1360
    %v2640 = vunpack.c.l.b16 %v1361
    %v2641 = vunpack.c.h.b16 %v1361
    %v2642 = vunpack.c.l.b16 %v1362
    %v2643 = vunpack.c.h.b16 %v1362
    %v2644 = vunpack.c.l.b16 %v1363
    %v2645 = vunpack.c.h.b16 %v1363
    %v2646 = vunpack.c.l.b16 %v1364
    %v2647 = vunpack.c.h.b16 %v1364
    %v2648 = vunpack.c.l.b16 %v1365
    %v2649 = vunpack.c.h.b16 %v1365
    %v2650 = vunpack.c.l.b16 %v1366
    %v2651 = vunpack.c.h.b16 %v1366
    %v2652 = vunpack.c.l.b16 %v1367
    %v2653 = vunpack.c.h.b16 %v1367
    %v2654 = vunpack.c.l.b16 %v1368
    %v2655 = vunpack.c.h.b16 %v1368
    %v2656 = vunpack.c.l.b16 %v1369
    %v2657 = vunpack.c.h.b16 %v1369
    %v2658 = vunpack.c.l.b16 %v1370
    %v2659 = vunpack.c.h.b16 %v1370
    %v2660 = vunpack.c.l.b16 %v1371
    %v2661 = vunpack.c.h.b16 %v1371
    %v2662 = vunpack.c.l.b16 %v1372
    %v2663 = vunpack.c.h.b16 %v1372
    %v2664 = vunpack.c.l.b16 %v1373
    %v2665 = vunpack.c.h.b16 %v1373
    %v2666 = vunpack.c.l.b16 %v1374
    %v2667 = vunpack.c.h.b16 %v1374
    %v2668 = vunpack.c.l.b16 %v1375
    %v2669 = vunpack.c.h.b16 %v1375
    %v2670 = vunpack.c.l.b16 %v1376
    %v2671 = vunpack.c.h.b16 %v1376
    %v2672 = vunpack.c.l.b16 %v1377
    %v2673 = vunpack.c.h.b16 %v1377
    %v2674 = vunpack.c.l.b16 %v1378
    %v2675 = vunpack.c.h.b16 %v1378
    %v2676 = vunpack.c.l.b16 %v1379
    %v2677 = vunpack.c.h.b16 %v1379
    %v2678 = vunpack.c.l.b16 %v1380
    %v2679 = vunpack.c.h.b16 %v1380
    %v2680 = vunpack.c.l.b16 %v1381
    %v2681 = vunpack.c.h.b16 %v1381
    %v2682 = vunpack.c.l.b16 %v1382
    %v2683 = vunpack.c.h.b16 %v1382
    %v2684 = vunpack.c.l.b16 %v1383
    %v2685 = vunpack.c.h.b16 %v1383
    %v2686 = vunpack.c.l.b16 %v1384
    %v2687 = vunpack.c.h.b16 %v1384
    %v2688 = vunpack.c.l.b16 %v1385
    %v2689 = vunpack.c.h.b16 %v1385
    %v2690 = vunpack.c.l.b16 %v1386
    %v2691 = vunpack.c.h.b16 %v1386
    %v2692 = vunpack.c.l.b16 %v1387
    %v2693 = vunpack.c.h.b16 %v1387
    %v2694 = vunpack.c.l.b16 %v1388
    %v2695 = vunpack.c.h.b16 %v1388
    %v2696 = vunpack.c.l.b16 %v1389
    %v2697 = vunpack.c.h.b16 %v1389
    %v2698 = vunpack.c.l.b16 %v1390
    %v2699 = vunpack.c.h.b16 %v1390
    %v2700 = vunpack.c.l.b16 %v1391
    %v2701 = vunpack.c.h.b16 %v1391
    %v2702 = vunpack.c.l.b16 %v1392
    %v2703 = vunpack.c.h.b16 %v1392
    %v2704 = vunpack.c.l.b16 %v1393
    %v2705 = vunpack.c.h.b16 %v1393
    %v2706 = vunpack.c.l.b16 %v1394
    %v2707 = vunpack.c.h.b16 %v1394
    %v2708 = vunpack.c.l.b16 %v1395
    %v2709 = vunpack.c.h.b16 %v1395
    %v2710 = vunpack.c.l.b16 %v1396
    %v2711 = vunpack.c.h.b16 %v1396
    %v2712 = vunpack.c.l.b16 %v1397
    %v2713 = vunpack.c.h.b16 %v1397
    %v2714 = vunpack.c.l.b16 %v1398
    %v2715 = vunpack.c.h.b16 %v1398
    %v2716 = vunpack.c.l.b16 %v1399
    %v2717 = vunpack.c.h.b16 %v1399
    %v2718 = vunpack.c.l.b16 %v1400
    %v2719 = vunpack.c.h.b16 %v1400
    %v2720 = vunpack.c.l.b16 %v1401
    %v2721 = vunpack.c.h.b16 %v1401
    %v2722 = vunpack.c.l.b16 %v1402
    %v2723 = vunpack.c.h.b16 %v1402
    %v2724 = vunpack.c.l.b16 %v1403
    %v2725 = vunpack.c.h.b16 %v1403
    %v2726 = vunpack.c.l.b16 %v1404
    %v2727 = vunpack.c.h.b16 %v1404
    %v2728 = vunpack.c.l.b16 %v1405
    %v2729 = vunpack.c.h.b16 %v1405
    %v2730 = vunpack.c.l.b16 %v1406
    %v2731 = vunpack.c.h.b16 %v1406
    %v2732 = vunpack.c.l.b16 %v1407
    %v2733 = vunpack.c.h.b16 %v1407
    %v2734 = vunpack.c.l.b16 %v1408
    %v2735 = vunpack.c.h.b16 %v1408
    %v2736 = vunpack.c.l.b16 %v1409
    %v2737 = vunpack.c.h.b16 %v1409
    %v2738 = vunpack.c.l.b16 %v1410
    %v2739 = vunpack.c.h.b16 %v1410
    %v2740 = vunpack.c.l.b16 %v1411
    %v2741 = vunpack.c.h.b16 %v1411
    %v2742 = vunpack.c.l.b16 %v1412
    %v2743 = vunpack.c.h.b16 %v1412
    %v2744 = vunpack.c.l.b16 %v1413
    %v2745 = vunpack.c.h.b16 %v1413
    %v2746 = vunpack.c.l.b16 %v1414
    %v2747 = vunpack.c.h.b16 %v1414
    %v2748 = vunpack.c.l.b16 %v1415
    %v2749 = vunpack.c.h.b16 %v1415
    %v2750 = vunpack.c.l.b16 %v1416
    %v2751 = vunpack.c.h.b16 %v1416
    %v2752 = vunpack.c.l.b16 %v1417
    %v2753 = vunpack.c.h.b16 %v1417
    %v2754 = vunpack.c.l.b16 %v1418
    %v2755 = vunpack.c.h.b16 %v1418
    %v2756 = vunpack.c.l.b16 %v1419
    %v2757 = vunpack.c.h.b16 %v1419
    %v2758 = vunpack.c.l.b16 %v1420
    %v2759 = vunpack.c.h.b16 %v1420
    %v2760 = vunpack.c.l.b16 %v1421
    %v2761 = vunpack.c.h.b16 %v1421
    %v2762 = vunpack.c.l.b16 %v1422
    %v2763 = vunpack.c.h.b16 %v1422
    %v2764 = vunpack.c.l.b16 %v1423
    %v2765 = vunpack.c.h.b16 %v1423
    %v2766 = vunpack.c.l.b16 %v1424
    %v2767 = vunpack.c.h.b16 %v1424
    %v2768 = vunpack.c.l.b16 %v1425
    %v2769 = vunpack.c.h.b16 %v1425
    %v2770 = vunpack.c.l.b16 %v1426
    %v2771 = vunpack.c.h.b16 %v1426
    %v2772 = vunpack.c.l.b16 %v1427
    %v2773 = vunpack.c.h.b16 %v1427
    %v2774 = vunpack.c.l.b16 %v1428
    %v2775 = vunpack.c.h.b16 %v1428
    %v2776 = vunpack.c.l.b16 %v1429
    %v2777 = vunpack.c.h.b16 %v1429
    %v2778 = vunpack.c.l.b16 %v1430
    %v2779 = vunpack.c.h.b16 %v1430
    %v2780 = vunpack.c.l.b16 %v1431
    %v2781 = vunpack.c.h.b16 %v1431
    %v2782 = vunpack.c.l.b16 %v1432
    %v2783 = vunpack.c.h.b16 %v1432
    %v2784 = vunpack.c.l.b16 %v1433
    %v2785 = vunpack.c.h.b16 %v1433
    %v2786 = vunpack.c.l.b16 %v1434
    %v2787 = vunpack.c.h.b16 %v1434
    %v2788 = vunpack.c.l.b16 %v1435
    %v2789 = vunpack.c.h.b16 %v1435
    %v2790 = vunpack.c.l.b16 %v1436
    %v2791 = vunpack.c.h.b16 %v1436
    %v2792 = vunpack.c.l.b16 %v1437
    %v2793 = vunpack.c.h.b16 %v1437
    %v2794 = vunpack.c.l.b16 %v1438
    %v2795 = vunpack.c.h.b16 %v1438
    %v2796 = vunpack.c.l.b16 %v1439
    %v2797 = vunpack.c.h.b16 %v1439
    %v2798 = vunpack.c.l.b16 %v1440
    %v2799 = vunpack.c.h.b16 %v1440
    %v2800 = vunpack.c.l.b16 %v1441
    %v2801 = vunpack.c.h.b16 %v1441
    %v2802 = vunpack.c.l.b16 %v1442
    %v2803 = vunpack.c.h.b16 %v1442
    %v2804 = vunpack.c.l.b16 %v1443
    %v2805 = vunpack.c.h.b16 %v1443
    %v2806 = vunpack.c.l.b16 %v1444
    %v2807 = vunpack.c.h.b16 %v1444
    %v2808 = vunpack.c.l.b16 %v1445
    %v2809 = vunpack.c.h.b16 %v1445
    %v2810 = vunpack.c.l.b16 %v1446
    %v2811 = vunpack.c.h.b16 %v1446
    %v2812 = vunpack.c.l.b16 %v1447
    %v2813 = vunpack.c.h.b16 %v1447
    %v2814 = vunpack.c.l.b16 %v1448
    %v2815 = vunpack.c.h.b16 %v1448
    %v2816 = vunpack.c.l.b16 %v1449
    %v2817 = vunpack.c.h.b16 %v1449
    %v2818 = vunpack.c.l.b16 %v1450
    %v2819 = vunpack.c.h.b16 %v1450
    %v2820 = vunpack.c.l.b16 %v1451
    %v2821 = vunpack.c.h.b16 %v1451
    %v2822 = vunpack.c.l.b16 %v1452
    %v2823 = vunpack.c.h.b16 %v1452
    %v2824 = vunpack.c.l.b16 %v1453
    %v2825 = vunpack.c.h.b16 %v1453
    %v2826 = vunpack.c.l.b16 %v1454
    %v2827 = vunpack.c.h.b16 %v1454
    %v2828 = vunpack.c.l.b16 %v1455
    %v2829 = vunpack.c.h.b16 %v1455
    %v2830 = vunpack.c.l.b16 %v1456
    %v2831 = vunpack.c.h.b16 %v1456
    %v2832 = vunpack.c.l.b16 %v1457
    %v2833 = vunpack.c.h.b16 %v1457
    %v2834 = vunpack.c.l.b16 %v1458
    %v2835 = vunpack.c.h.b16 %v1458
    %v2836 = vunpack.c.l.b16 %v1459
    %v2837 = vunpack.c.h.b16 %v1459
    %v2838 = vunpack.c.l.b16 %v1460
    %v2839 = vunpack.c.h.b16 %v1460
    %v2840 = vunpack.c.l.b16 %v1461
    %v2841 = vunpack.c.h.b16 %v1461
    %v2842 = vunpack.c.l.b16 %v1462
    %v2843 = vunpack.c.h.b16 %v1462
    %v2844 = vunpack.c.l.b16 %v1463
    %v2845 = vunpack.c.h.b16 %v1463
    %v2846 = vunpack.c.l.b16 %v1464
    %v2847 = vunpack.c.h.b16 %v1464
    %v2848 = vunpack.c.l.b16 %v1465
    %v2849 = vunpack.c.h.b16 %v1465
    %v2850 = vunpack.c.l.b16 %v1466
    %v2851 = vunpack.c.h.b16 %v1466
    %v2852 = vunpack.c.l.b16 %v1467
    %v2853 = vunpack.c.h.b16 %v1467
    %v2854 = vunpack.c.l.b16 %v1468
    %v2855 = vunpack.c.h.b16 %v1468
    %v2856 = vunpack.c.l.b16 %v1469
    %v2857 = vunpack.c.h.b16 %v1469
    %v2858 = vunpack.c.l.b16 %v1470
    %v2859 = vunpack.c.h.b16 %v1470
    %v2860 = vunpack.c.l.b16 %v1471
    %v2861 = vunpack.c.h.b16 %v1471
    %v2862 = vunpack.c.l.b16 %v1472
    %v2863 = vunpack.c.h.b16 %v1472
    %v2864 = vunpack.c.l.b16 %v1473
    %v2865 = vunpack.c.h.b16 %v1473
    %v2866 = vunpack.c.l.b16 %v1474
    %v2867 = vunpack.c.h.b16 %v1474
    %v2868 = vunpack.c.l.b16 %v1475
    %v2869 = vunpack.c.h.b16 %v1475
    %v2870 = vunpack.c.l.b16 %v1476
    %v2871 = vunpack.c.h.b16 %v1476
    %v2872 = vunpack.c.l.b16 %v1477
    %v2873 = vunpack.c.h.b16 %v1477
    %v2874 = vunpack.c.l.b16 %v1478
    %v2875 = vunpack.c.h.b16 %v1478
    %v2876 = vunpack.c.l.b16 %v1479
    %v2877 = vunpack.c.h.b16 %v1479
    %v2878 = vunpack.c.l.b16 %v1480
    %v2879 = vunpack.c.h.b16 %v1480
    %v2880 = vunpack.c.l.b16 %v1481
    %v2881 = vunpack.c.h.b16 %v1481
    %v2882 = vunpack.c.l.b16 %v1482
    %v2883 = vunpack.c.h.b16 %v1482
    %v2884 = vunpack.c.l.b16 %v1483
    %v2885 = vunpack.c.h.b16 %v1483
    %v2886 = vunpack.c.l.b16 %v1484
    %v2887 = vunpack.c.h.b16 %v1484
    %v2888 = vunpack.c.l.b16 %v1485
    %v2889 = vunpack.c.h.b16 %v1485
    %v2890 = vunpack.c.l.b16 %v1486
    %v2891 = vunpack.c.h.b16 %v1486
    %v2892 = vunpack.c.l.b16 %v1487
    %v2893 = vunpack.c.h.b16 %v1487
    %v2894 = vunpack.c.l.b16 %v1488
    %v2895 = vunpack.c.h.b16 %v1488
    %v2896 = vunpack.c.l.b16 %v1489
    %v2897 = vunpack.c.h.b16 %v1489
    %v2898 = vunpack.c.l.b16 %v1490
    %v2899 = vunpack.c.h.b16 %v1490
    %v2900 = vunpack.c.l.b16 %v1491
    %v2901 = vunpack.c.h.b16 %v1491
    %v2902 = vunpack.c.l.b16 %v1492
    %v2903 = vunpack.c.h.b16 %v1492
    %v2904 = vunpack.c.l.b16 %v1493
    %v2905 = vunpack.c.h.b16 %v1493
    %v2906 = vunpack.c.l.b16 %v1494
    %v2907 = vunpack.c.h.b16 %v1494
    %v2908 = vunpack.c.l.b16 %v1495
    %v2909 = vunpack.c.h.b16 %v1495
    %v2910 = vunpack.c.l.b16 %v1496
    %v2911 = vunpack.c.h.b16 %v1496
    %v2912 = vunpack.c.l.b16 %v1497
    %v2913 = vunpack.c.h.b16 %v1497
    %v2914 = vunpack.c.l.b16 %v1498
    %v2915 = vunpack.c.h.b16 %v1498
    %v2916 = vunpack.c.l.b16 %v1499
    %v2917 = vunpack.c.h.b16 %v1499
    %v2918 = vunpack.c.l.b16 %v1500
    %v2919 = vunpack.c.h.b16 %v1500
    %v2920 = vunpack.c.l.b16 %v1501
    %v2921 = vunpack.c.h.b16 %v1501
    %v2922 = vunpack.c.l.b16 %v1502
    %v2923 = vunpack.c.h.b16 %v1502
    %v2924 = vunpack.c.l.b16 %v1503
    %v2925 = vunpack.c.h.b16 %v1503
    %v2926 = vunpack.c.l.b16 %v1504
    %v2927 = vunpack.c.h.b16 %v1504
    %v2928 = vunpack.c.l.b16 %v1505
    %v2929 = vunpack.c.h.b16 %v1505
    %v2930 = vunpack.c.l.b16 %v1506
    %v2931 = vunpack.c.h.b16 %v1506
    %v2932 = vunpack.c.l.b16 %v1507
    %v2933 = vunpack.c.h.b16 %v1507
    %v2934 = vunpack.c.l.b16 %v1508
    %v2935 = vunpack.c.h.b16 %v1508
    %v2936 = vunpack.c.l.b16 %v1509
    %v2937 = vunpack.c.h.b16 %v1509
    %v2938 = vunpack.c.l.b16 %v1510
    %v2939 = vunpack.c.h.b16 %v1510
    %v2940 = vunpack.c.l.b16 %v1511
    %v2941 = vunpack.c.h.b16 %v1511
    %v2942 = vunpack.c.l.b16 %v1512
    %v2943 = vunpack.c.h.b16 %v1512
    %v2944 = vunpack.c.l.b16 %v1513
    %v2945 = vunpack.c.h.b16 %v1513
    %v2946 = vunpack.c.l.b16 %v1514
    %v2947 = vunpack.c.h.b16 %v1514
    %v2948 = vunpack.c.l.b16 %v1515
    %v2949 = vunpack.c.h.b16 %v1515
    %v2950 = vunpack.c.l.b16 %v1516
    %v2951 = vunpack.c.h.b16 %v1516
    %v2952 = vunpack.c.l.b16 %v1517
    %v2953 = vunpack.c.h.b16 %v1517
    %v2954 = vunpack.c.l.b16 %v1518
    %v2955 = vunpack.c.h.b16 %v1518
    %v2956 = vunpack.c.l.b16 %v1519
    %v2957 = vunpack.c.h.b16 %v1519
    %v2958 = vunpack.c.l.b16 %v1520
    %v2959 = vunpack.c.h.b16 %v1520
    %v2960 = vunpack.c.l.b16 %v1521
    %v2961 = vunpack.c.h.b16 %v1521
    %v2962 = vunpack.c.l.b16 %v1522
    %v2963 = vunpack.c.h.b16 %v1522
    %v2964 = vunpack.c.l.b16 %v1523
    %v2965 = vunpack.c.h.b16 %v1523
    %v2966 = vunpack.c.l.b16 %v1524
    %v2967 = vunpack.c.h.b16 %v1524
    %v2968 = vunpack.c.l.b16 %v1525
    %v2969 = vunpack.c.h.b16 %v1525
    %v2970 = vunpack.c.l.b16 %v1526
    %v2971 = vunpack.c.h.b16 %v1526
    %v2972 = vunpack.c.l.b16 %v1527
    %v2973 = vunpack.c.h.b16 %v1527
    %v2974 = vunpack.c.l.b16 %v1528
    %v2975 = vunpack.c.h.b16 %v1528
    %v2976 = vunpack.c.l.b16 %v1529
    %v2977 = vunpack.c.h.b16 %v1529
    %v2978 = vunpack.c.l.b16 %v1530
    %v2979 = vunpack.c.h.b16 %v1530
    %v2980 = vunpack.c.l.b16 %v1531
    %v2981 = vunpack.c.h.b16 %v1531
    %v2982 = vunpack.c.l.b16 %v1532
    %v2983 = vunpack.c.h.b16 %v1532
    %v2984 = vunpack.c.l.b16 %v1533
    %v2985 = vunpack.c.h.b16 %v1533
    %v2986 = vunpack.c.l.b16 %v1534
    %v2987 = vunpack.c.h.b16 %v1534
    %v2988 = vunpack.c.l.b16 %v1535
    %v2989 = vunpack.c.h.b16 %v1535
    %v2990 = vunpack.c.l.b16 %v1536
    %v2991 = vunpack.c.h.b16 %v1536
    %v2992 = vunpack.c.l.b16 %v1537
    %v2993 = vunpack.c.h.b16 %v1537
    %v2994 = vunpack.c.l.b16 %v1538
    %v2995 = vunpack.c.h.b16 %v1538
    %v2996 = vunpack.c.l.b16 %v1539
    %v2997 = vunpack.c.h.b16 %v1539
    %v2998 = vunpack.c.l.b16 %v1540
    %v2999 = vunpack.c.h.b16 %v1540
    %v3000 = vunpack.c.l.b16 %v1541
    %v3001 = vunpack.c.h.b16 %v1541
    %v3002 = vunpack.c.l.b16 %v1542
    %v3003 = vunpack.c.h.b16 %v1542
    %v3004 = vunpack.c.l.b16 %v1543
    %v3005 = vunpack.c.h.b16 %v1543
    %v3006 = vunpack.c.l.b16 %v1544
    %v3007 = vunpack.c.h.b16 %v1544
    %v3008 = vunpack.c.l.b16 %v1545
    %v3009 = vunpack.c.h.b16 %v1545
    %v3010 = vunpack.c.l.b16 %v1546
    %v3011 = vunpack.c.h.b16 %v1546
    %v3012 = vunpack.c.l.b16 %v1547
    %v3013 = vunpack.c.h.b16 %v1547
    %v3014 = vunpack.c.l.b16 %v1548
    %v3015 = vunpack.c.h.b16 %v1548
    %v3016 = vunpack.c.l.b16 %v1549
    %v3017 = vunpack.c.h.b16 %v1549
    %v3018 = vunpack.c.l.b16 %v1550
    %v3019 = vunpack.c.h.b16 %v1550
    %v3020 = vunpack.c.l.b16 %v1551
    %v3021 = vunpack.c.h.b16 %v1551
    %v3022 = vunpack.c.l.b16 %v1552
    %v3023 = vunpack.c.h.b16 %v1552
    %v3024 = vunpack.c.l.b16 %v1553
    %v3025 = vunpack.c.h.b16 %v1553
    %v3026 = vunpack.c.l.b16 %v1554
    %v3027 = vunpack.c.h.b16 %v1554
    %v3028 = vunpack.c.l.b16 %v1555
    %v3029 = vunpack.c.h.b16 %v1555
    %v3030 = vunpack.c.l.b16 %v1556
    %v3031 = vunpack.c.h.b16 %v1556
    %v3032 = vunpack.c.l.b16 %v1557
    %v3033 = vunpack.c.h.b16 %v1557
    %v3034 = vunpack.c.l.b16 %v1558
    %v3035 = vunpack.c.h.b16 %v1558
    %v3036 = vunpack.c.l.b16 %v1559
    %v3037 = vunpack.c.h.b16 %v1559
    %v3038 = vunpack.c.l.b16 %v1560
    %v3039 = vunpack.c.h.b16 %v1560
    %v3040 = vunpack.c.l.b16 %v1561
    %v3041 = vunpack.c.h.b16 %v1561
    %v3042 = vunpack.c.l.b16 %v1562
    %v3043 = vunpack.c.h.b16 %v1562
    %v3044 = vunpack.c.l.b16 %v1563
    %v3045 = vunpack.c.h.b16 %v1563
    %v3046 = vunpack.c.l.b16 %v1564
    %v3047 = vunpack.c.h.b16 %v1564
    %v3048 = vunpack.c.l.b16 %v1565
    %v3049 = vunpack.c.h.b16 %v1565
    %v3050 = vunpack.c.l.b16 %v1566
    %v3051 = vunpack.c.h.b16 %v1566
    %v3052 = vunpack.c.l.b16 %v1567
    %v3053 = vunpack.c.h.b16 %v1567
    %v3054 = vunpack.c.l.b16 %v1568
    %v3055 = vunpack.c.h.b16 %v1568
    %v3056 = vunpack.c.l.b16 %v1569
    %v3057 = vunpack.c.h.b16 %v1569
    %v3058 = vunpack.c.l.b16 %v1570
    %v3059 = vunpack.c.h.b16 %v1570
    %v3060 = vunpack.c.l.b16 %v1571
    %v3061 = vunpack.c.h.b16 %v1571
    %v3062 = vunpack.c.l.b16 %v1572
    %v3063 = vunpack.c.h.b16 %v1572
    %v3064 = vunpack.c.l.b16 %v1573
    %v3065 = vunpack.c.h.b16 %v1573
    %v3066 = vunpack.c.l.b16 %v1574
    %v3067 = vunpack.c.h.b16 %v1574
    %v3068 = vunpack.c.l.b16 %v1575
    %v3069 = vunpack.c.h.b16 %v1575
    %v3070 = vunpack.c.l.b16 %v1576
    %v3071 = vunpack.c.h.b16 %v1576
    %v3072 = vunpack.c.l.b16 %v1577
    %v3073 = vunpack.c.h.b16 %v1577
    %v3074 = vunpack.c.l.b16 %v1578
    %v3075 = vunpack.c.h.b16 %v1578
    %v3076 = vunpack.c.l.b16 %v1579
    %v3077 = vunpack.c.h.b16 %v1579
    %v3078 = vunpack.c.l.b16 %v1580
    %v3079 = vunpack.c.h.b16 %v1580
    %v3080 = vunpack.c.l.b16 %v1581
    %v3081 = vunpack.c.h.b16 %v1581
    %v3082 = vunpack.c.l.b16 %v1582
    %v3083 = vunpack.c.h.b16 %v1582
    %v3084 = vunpack.c.l.b16 %v1583
    %v3085 = vunpack.c.h.b16 %v1583
    %v3086 = vunpack.c.l.b16 %v1584
    %v3087 = vunpack.c.h.b16 %v1584
    %v3088 = vunpack.c.l.b16 %v1585
    %v3089 = vunpack.c.h.b16 %v1585
    %v3090 = vunpack.c.l.b16 %v1586
    %v3091 = vunpack.c.h.b16 %v1586
    %v3092 = vunpack.c.l.b16 %v1587
    %v3093 = vunpack.c.h.b16 %v1587
    %v3094 = vunpack.c.l.b16 %v1588
    %v3095 = vunpack.c.h.b16 %v1588
    %v3096 = vunpack.c.l.b16 %v1589
    %v3097 = vunpack.c.h.b16 %v1589
    %v3098 = vunpack.c.l.b16 %v1590
    %v3099 = vunpack.c.h.b16 %v1590
    %v3100 = vunpack.c.l.b16 %v1591
    %v3101 = vunpack.c.h.b16 %v1591
    %v3102 = vunpack.c.l.b16 %v1592
    %v3103 = vunpack.c.h.b16 %v1592
    %v3104 = vunpack.c.l.b16 %v1593
    %v3105 = vunpack.c.h.b16 %v1593
    %v3106 = vunpack.c.l.b16 %v1594
    %v3107 = vunpack.c.h.b16 %v1594
    %v3108 = vunpack.c.l.b16 %v1595
    %v3109 = vunpack.c.h.b16 %v1595
    %v3110 = vunpack.c.l.b16 %v1596
    %v3111 = vunpack.c.h.b16 %v1596
    %v3112 = vunpack.c.l.b16 %v1597
    %v3113 = vunpack.c.h.b16 %v1597
    %v3114 = vunpack.c.l.b16 %v1598
    %v3115 = vunpack.c.h.b16 %v1598
    %v3116 = vunpack.c.l.b16 %v1599
    %v3117 = vunpack.c.h.b16 %v1599
    %v3118 = vunpack.c.l.b16 %v1600
    %v3119 = vunpack.c.h.b16 %v1600
    %v3120 = vunpack.c.l.b16 %v1601
    %v3121 = vunpack.c.h.b16 %v1601
    %v3122 = vunpack.c.l.b16 %v1602
    %v3123 = vunpack.c.h.b16 %v1602
    %v3124 = vunpack.c.l.b16 %v1603
    %v3125 = vunpack.c.h.b16 %v1603
    %v3126 = vunpack.c.l.b16 %v1604
    %v3127 = vunpack.c.h.b16 %v1604
    %v3128 = vunpack.c.l.b16 %v1605
    %v3129 = vunpack.c.h.b16 %v1605
    %v3130 = vunpack.c.l.b16 %v1606
    %v3131 = vunpack.c.h.b16 %v1606
    %v3132 = vunpack.c.l.b16 %v1607
    %v3133 = vunpack.c.h.b16 %v1607
    %v3134 = vunpack.c.l.b16 %v1608
    %v3135 = vunpack.c.h.b16 %v1608
    %v3136 = vunpack.c.l.b16 %v1609
    %v3137 = vunpack.c.h.b16 %v1609
    %v3138 = vunpack.c.l.b16 %v1610
    %v3139 = vunpack.c.h.b16 %v1610
    %v3140 = vunpack.c.l.b16 %v1611
    %v3141 = vunpack.c.h.b16 %v1611
    %v3142 = vunpack.c.l.b16 %v1612
    %v3143 = vunpack.c.h.b16 %v1612
    %v3144 = vunpack.c.l.b16 %v1613
    %v3145 = vunpack.c.h.b16 %v1613
    %v3146 = vunpack.c.l.b16 %v1614
    %v3147 = vunpack.c.h.b16 %v1614
    %v3148 = vunpack.c.l.b16 %v1615
    %v3149 = vunpack.c.h.b16 %v1615
    %v3150 = vunpack.c.l.b16 %v1616
    %v3151 = vunpack.c.h.b16 %v1616
    %v3152 = vunpack.c.l.b16 %v1617
    %v3153 = vunpack.c.h.b16 %v1617
    %v3154 = vunpack.c.l.b16 %v1618
    %v3155 = vunpack.c.h.b16 %v1618
    %v3156 = vunpack.c.l.b16 %v1619
    %v3157 = vunpack.c.h.b16 %v1619
    %v3158 = vunpack.c.l.b16 %v1620
    %v3159 = vunpack.c.h.b16 %v1620
    %v3160 = vunpack.c.l.b16 %v1621
    %v3161 = vunpack.c.h.b16 %v1621
    %v3162 = vunpack.c.l.b16 %v1622
    %v3163 = vunpack.c.h.b16 %v1622
    %v3164 = vunpack.c.l.b16 %v1623
    %v3165 = vunpack.c.h.b16 %v1623
    %v3166 = vunpack.c.l.b16 %v1624
    %v3167 = vunpack.c.h.b16 %v1624
    %v3168 = vunpack.c.l.b16 %v1625
    %v3169 = vunpack.c.h.b16 %v1625
    %v3170 = vunpack.c.l.b16 %v1626
    %v3171 = vunpack.c.h.b16 %v1626
    %v3172 = vunpack.c.l.b16 %v1627
    %v3173 = vunpack.c.h.b16 %v1627
    %v3174 = vunpack.c.l.b16 %v1628
    %v3175 = vunpack.c.h.b16 %v1628
    %v3176 = vunpack.c.l.b16 %v1629
    %v3177 = vunpack.c.h.b16 %v1629
    %v3178 = vunpack.c.l.b16 %v1630
    %v3179 = vunpack.c.h.b16 %v1630
    %v3180 = vunpack.c.l.b16 %v1631
    %v3181 = vunpack.c.h.b16 %v1631
    %v3182 = vunpack.c.l.b16 %v1632
    %v3183 = vunpack.c.h.b16 %v1632
    %v3184 = vunpack.c.l.b16 %v1633
    %v3185 = vunpack.c.h.b16 %v1633
    %v3186 = vunpack.c.l.b16 %v1634
    %v3187 = vunpack.c.h.b16 %v1634
    %v3188 = vunpack.c.l.b16 %v1635
    %v3189 = vunpack.c.h.b16 %v1635
    %v3190 = vunpack.c.l.b16 %v1636
    %v3191 = vunpack.c.h.b16 %v1636
    %v3192 = vunpack.c.l.b16 %v1637
    %v3193 = vunpack.c.h.b16 %v1637
    %v3194 = vunpack.c.l.b16 %v1638
    %v3195 = vunpack.c.h.b16 %v1638
    %v3196 = vunpack.c.l.b16 %v1639
    %v3197 = vunpack.c.h.b16 %v1639
    %v3198 = vunpack.c.l.b16 %v1640
    %v3199 = vunpack.c.h.b16 %v1640
    %v3200 = vunpack.c.l.b16 %v1641
    %v3201 = vunpack.c.h.b16 %v1641
    %v3202 = vunpack.c.l.b16 %v1642
    %v3203 = vunpack.c.h.b16 %v1642
    %v3204 = vunpack.c.l.b16 %v1643
    %v3205 = vunpack.c.h.b16 %v1643
    %v3206 = vunpack.c.l.b16 %v1644
    %v3207 = vunpack.c.h.b16 %v1644
    %v3208 = vunpack.c.l.b16 %v1645
    %v3209 = vunpack.c.h.b16 %v1645
    %v3210 = vunpack.c.l.b16 %v1646
    %v3211 = vunpack.c.h.b16 %v1646
    %v3212 = vunpack.c.l.b16 %v1647
    %v3213 = vunpack.c.h.b16 %v1647
    %v3214 = vunpack.c.l.b16 %v1648
    %v3215 = vunpack.c.h.b16 %v1648
    %v3216 = vunpack.c.l.b16 %v1649
    %v3217 = vunpack.c.h.b16 %v1649
    %v3218 = vunpack.c.l.b16 %v1650
    %v3219 = vunpack.c.h.b16 %v1650
    %v3220 = vunpack.c.l.b16 %v1651
    %v3221 = vunpack.c.h.b16 %v1651
    %v3222 = vunpack.c.l.b16 %v1652
    %v3223 = vunpack.c.h.b16 %v1652
    %v3224 = vunpack.c.l.b16 %v1653
    %v3225 = vunpack.c.h.b16 %v1653
    %v3226 = vunpack.c.l.b16 %v1654
    %v3227 = vunpack.c.h.b16 %v1654
    %v3228 = vunpack.c.l.b16 %v1655
    %v3229 = vunpack.c.h.b16 %v1655
    %v3230 = vunpack.c.l.b16 %v1656
    %v3231 = vunpack.c.h.b16 %v1656
    %v3232 = vunpack.c.l.b16 %v1657
    %v3233 = vunpack.c.h.b16 %v1657
    %v3234 = vunpack.c.l.b16 %v1658
    %v3235 = vunpack.c.h.b16 %v1658
    %v3236 = vunpack.c.l.b16 %v1659
    %v3237 = vunpack.c.h.b16 %v1659
    %v3238 = vpack.c.b16 %v2222, %v2214
    %v3239 = vpack.c.b16 %v2223, %v2215
    %v3240 = vpack.c.b16 %v2224, %v2216
    %v3241 = vpack.c.b16 %v2225, %v2217
    %v3242 = vpack.c.b16 %v2226, %v2218
    %v3243 = vpack.c.b16 %v2227, %v2219
    %v3244 = vpack.c.b16 %v2228, %v2220
    %v3245 = vpack.c.b16 %v2229, %v2221
    %v3246 = vpack.c.b16 %v2238, %v2230
    %v3247 = vpack.c.b16 %v2239, %v2231
    %v3248 = vpack.c.b16 %v2240, %v2232
    %v3249 = vpack.c.b16 %v2241, %v2233
    %v3250 = vpack.c.b16 %v2242, %v2234
    %v3251 = vpack.c.b16 %v2243, %v2235
    %v3252 = vpack.c.b16 %v2244, %v2236
    %v3253 = vpack.c.b16 %v2245, %v2237
    %v3254 = vpack.c.b16 %v2254, %v2246
    %v3255 = vpack.c.b16 %v2255, %v2247
    %v3256 = vpack.c.b16 %v2256, %v2248
    %v3257 = vpack.c.b16 %v2257, %v2249
    %v3258 = vpack.c.b16 %v2258, %v2250
    %v3259 = vpack.c.b16 %v2259, %v2251
    %v3260 = vpack.c.b16 %v2260, %v2252
    %v3261 = vpack.c.b16 %v2261, %v2253
    %v3262 = vpack.c.b16 %v2270, %v2262
    %v3263 = vpack.c.b16 %v2271, %v2263
    %v3264 = vpack.c.b16 %v2272, %v2264
    %v3265 = vpack.c.b16 %v2273, %v2265
    %v3266 = vpack.c.b16 %v2274, %v2266
    %v3267 = vpack.c.b16 %v2275, %v2267
    %v3268 = vpack.c.b16 %v2276, %v2268
    %v3269 = vpack.c.b16 %v2277, %v2269
    %v3270 = vpack.c.b16 %v2286, %v2278
    %v3271 = vpack.c.b16 %v2287, %v2279
    %v3272 = vpack.c.b16 %v2288, %v2280
    %v3273 = vpack.c.b16 %v2289, %v2281
    %v3274 = vpack.c.b16 %v2290, %v2282
    %v3275 = vpack.c.b16 %v2291, %v2283
    %v3276 = vpack.c.b16 %v2292, %v2284
    %v3277 = vpack.c.b16 %v2293, %v2285
    %v3278 = vpack.c.b16 %v2302, %v2294
    %v3279 = vpack.c.b16 %v2303, %v2295
    %v3280 = vpack.c.b16 %v2304, %v2296
    %v3281 = vpack.c.b16 %v2305, %v2297
    %v3282 = vpack.c.b16 %v2306, %v2298
    %v3283 = vpack.c.b16 %v2307, %v2299
    %v3284 = vpack.c.b16 %v2308, %v2300
    %v3285 = vpack.c.b16 %v2309, %v2301
    %v3286 = vpack.c.b16 %v2318, %v2310
    %v3287 = vpack.c.b16 %v2319, %v2311
    %v3288 = vpack.c.b16 %v2320, %v2312
    %v3289 = vpack.c.b16 %v2321, %v2313
    %v3290 = vpack.c.b16 %v2322, %v2314
    %v3291 = vpack.c.b16 %v2323, %v2315
    %v3292 = vpack.c.b16 %v2324, %v2316
    %v3293 = vpack.c.b16 %v2325, %v2317
    %v3294 = vpack.c.b16 %v2334, %v2326
    %v3295 = vpack.c.b16 %v2335, %v2327
    %v3296 = vpack.c.b16 %v2336, %v2328
    %v3297 = vpack.c.b16 %v2337, %v2329
    %v3298 = vpack.c.b16 %v2338, %v2330
    %v3299 = vpack.c.b16 %v2339, %v2331
    %v3300 = vpack.c.b16 %v2340, %v2332
    %v3301 = vpack.c.b16 %v2341, %v2333
    %v3302 = vpack.c.b16 %v2350, %v2342
    %v3303 = vpack.c.b16 %v2351, %v2343
    %v3304 = vpack.c.b16 %v2352, %v2344
    %v3305 = vpack.c.b16 %v2353, %v2345
    %v3306 = vpack.c.b16 %v2354, %v2346
    %v3307 = vpack.c.b16 %v2355, %v2347
    %v3308 = vpack.c.b16 %v2356, %v2348
    %v3309 = vpack.c.b16 %v2357, %v2349
    %v3310 = vpack.c.b16 %v2366, %v2358
    %v3311 = vpack.c.b16 %v2367, %v2359
    %v3312 = vpack.c.b16 %v2368, %v2360
    %v3313 = vpack.c.b16 %v2369, %v2361
    %v3314 = vpack.c.b16 %v2370, %v2362
    %v3315 = vpack.c.b16 %v2371, %v2363
    %v3316 = vpack.c.b16 %v2372, %v2364
    %v3317 = vpack.c.b16 %v2373, %v2365
    %v3318 = vpack.c.b16 %v2382, %v2374
    %v3319 = vpack.c.b16 %v2383, %v2375
    %v3320 = vpack.c.b16 %v2384, %v2376
    %v3321 = vpack.c.b16 %v2385, %v2377
    %v3322 = vpack.c.b16 %v2386, %v2378
    %v3323 = vpack.c.b16 %v2387, %v2379
    %v3324 = vpack.c.b16 %v2388, %v2380
    %v3325 = vpack.c.b16 %v2389, %v2381
    %v3326 = vpack.c.b16 %v2398, %v2390
    %v3327 = vpack.c.b16 %v2399, %v2391
    %v3328 = vpack.c.b16 %v2400, %v2392
    %v3329 = vpack.c.b16 %v2401, %v2393
    %v3330 = vpack.c.b16 %v2402, %v2394
    %v3331 = vpack.c.b16 %v2403, %v2395
    %v3332 = vpack.c.b16 %v2404, %v2396
    %v3333 = vpack.c.b16 %v2405, %v2397
    %v3334 = vpack.c.b16 %v2414, %v2406
    %v3335 = vpack.c.b16 %v2415, %v2407
    %v3336 = vpack.c.b16 %v2416, %v2408
    %v3337 = vpack.c.b16 %v2417, %v2409
    %v3338 = vpack.c.b16 %v2418, %v2410
    %v3339 = vpack.c.b16 %v2419, %v2411
    %v3340 = vpack.c.b16 %v2420, %v2412
    %v3341 = vpack.c.b16 %v2421, %v2413
    %v3342 = vpack.c.b16 %v2430, %v2422
    %v3343 = vpack.c.b16 %v2431, %v2423
    %v3344 = vpack.c.b16 %v2432, %v2424
    %v3345 = vpack.c.b16 %v2433, %v2425
    %v3346 = vpack.c.b16 %v2434, %v2426
    %v3347 = vpack.c.b16 %v2435, %v2427
    %v3348 = vpack.c.b16 %v2436, %v2428
    %v3349 = vpack.c.b16 %v2437, %v2429
    %v3350 = vpack.c.b16 %v2446, %v2438
    %v3351 = vpack.c.b16 %v2447, %v2439
    %v3352 = vpack.c.b16 %v2448, %v2440
    %v3353 = vpack.c.b16 %v2449, %v2441
    %v3354 = vpack.c.b16 %v2450, %v2442
    %v3355 = vpack.c.b16 %v2451, %v2443
    %v3356 = vpack.c.b16 %v2452, %v2444
    %v3357 = vpack.c.b16 %v2453, %v2445
    %v3358 = vpack.c.b16 %v2462, %v2454
    %v3359 = vpack.c.b16 %v2463, %v2455
    %v3360 = vpack.c.b16 %v2464, %v2456
    %v3361 = vpack.c.b16 %v2465, %v2457
    %v3362 = vpack.c.b16 %v2466, %v2458
    %v3363 = vpack.c.b16 %v2467, %v2459
    %v3364 = vpack.c.b16 %v2468, %v2460
    %v3365 = vpack.c.b16 %v2469, %v2461
    %v3366 = vpack.c.b16 %v2478, %v2470
    %v3367 = vpack.c.b16 %v2479, %v2471
    %v3368 = vpack.c.b16 %v2480, %v2472
    %v3369 = vpack.c.b16 %v2481, %v2473
    %v3370 = vpack.c.b16 %v2482, %v2474
    %v3371 = vpack.c.b16 %v2483, %v2475
    %v3372 = vpack.c.b16 %v2484, %v2476
    %v3373 = vpack.c.b16 %v2485, %v2477
    %v3374 = vpack.c.b16 %v2494, %v2486
    %v3375 = vpack.c.b16 %v2495, %v2487
    %v3376 = vpack.c.b16 %v2496, %v2488
    %v3377 = vpack.c.b16 %v2497, %v2489
    %v3378 = vpack.c.b16 %v2498, %v2490
    %v3379 = vpack.c.b16 %v2499, %v2491
    %v3380 = vpack.c.b16 %v2500, %v2492
    %v3381 = vpack.c.b16 %v2501, %v2493
    %v3382 = vpack.c.b16 %v2510, %v2502
    %v3383 = vpack.c.b16 %v2511, %v2503
    %v3384 = vpack.c.b16 %v2512, %v2504
    %v3385 = vpack.c.b16 %v2513, %v2505
    %v3386 = vpack.c.b16 %v2514, %v2506
    %v3387 = vpack.c.b16 %v2515, %v2507
    %v3388 = vpack.c.b16 %v2516, %v2508
    %v3389 = vpack.c.b16 %v2517, %v2509
    %v3390 = vpack.c.b16 %v2526, %v2518
    %v3391 = vpack.c.b16 %v2527, %v2519
    %v3392 = vpack.c.b16 %v2528, %v2520
    %v3393 = vpack.c.b16 %v2529, %v2521
    %v3394 = vpack.c.b16 %v2530, %v2522
    %v3395 = vpack.c.b16 %v2531, %v2523
    %v3396 = vpack.c.b16 %v2532, %v2524
    %v3397 = vpack.c.b16 %v2533, %v2525
    %v3398 = vpack.c.b16 %v2542, %v2534
    %v3399 = vpack.c.b16 %v2543, %v2535
    %v3400 = vpack.c.b16 %v2544, %v2536
    %v3401 = vpack.c.b16 %v2545, %v2537
    %v3402 = vpack.c.b16 %v2546, %v2538
    %v3403 = vpack.c.b16 %v2547, %v2539
    %v3404 = vpack.c.b16 %v2548, %v2540
    %v3405 = vpack.c.b16 %v2549, %v2541
    %v3406 = vpack.c.b16 %v2558, %v2550
    %v3407 = vpack.c.b16 %v2559, %v2551
    %v3408 = vpack.c.b16 %v2560, %v2552
    %v3409 = vpack.c.b16 %v2561, %v2553
    %v3410 = vpack.c.b16 %v2562, %v2554
    %v3411 = vpack.c.b16 %v2563, %v2555
    %v3412 = vpack.c.b16 %v2564, %v2556
    %v3413 = vpack.c.b16 %v2565, %v2557
    %v3414 = vpack.c.b16 %v2574, %v2566
    %v3415 = vpack.c.b16 %v2575, %v2567
    %v3416 = vpack.c.b16 %v2576, %v2568
    %v3417 = vpack.c.b16 %v2577, %v2569
    %v3418 = vpack.c.b16 %v2578, %v2570
    %v3419 = vpack.c.b16 %v2579, %v2571
    %v3420 = vpack.c.b16 %v2580, %v2572
    %v3421 = vpack.c.b16 %v2581, %v2573
    %v3422 = vpack.c.b16 %v2590, %v2582
    %v3423 = vpack.c.b16 %v2591, %v2583
    %v3424 = vpack.c.b16 %v2592, %v2584
    %v3425 = vpack.c.b16 %v2593, %v2585
    %v3426 = vpack.c.b16 %v2594, %v2586
    %v3427 = vpack.c.b16 %v2595, %v2587
    %v3428 = vpack.c.b16 %v2596, %v2588
    %v3429 = vpack.c.b16 %v2597, %v2589
    %v3430 = vpack.c.b16 %v2606, %v2598
    %v3431 = vpack.c.b16 %v2607, %v2599
    %v3432 = vpack.c.b16 %v2608, %v2600
    %v3433 = vpack.c.b16 %v2609, %v2601
    %v3434 = vpack.c.b16 %v2610, %v2602
    %v3435 = vpack.c.b16 %v2611, %v2603
    %v3436 = vpack.c.b16 %v2612, %v2604
    %v3437 = vpack.c.b16 %v2613, %v2605
    %v3438 = vpack.c.b16 %v2622, %v2614
    %v3439 = vpack.c.b16 %v2623, %v2615
    %v3440 = vpack.c.b16 %v2624, %v2616
    %v3441 = vpack.c.b16 %v2625, %v2617
    %v3442 = vpack.c.b16 %v2626, %v2618
    %v3443 = vpack.c.b16 %v2627, %v2619
    %v3444 = vpack.c.b16 %v2628, %v2620
    %v3445 = vpack.c.b16 %v2629, %v2621
    %v3446 = vpack.c.b16 %v2638, %v2630
    %v3447 = vpack.c.b16 %v2639, %v2631
    %v3448 = vpack.c.b16 %v2640, %v2632
    %v3449 = vpack.c.b16 %v2641, %v2633
    %v3450 = vpack.c.b16 %v2642, %v2634
    %v3451 = vpack.c.b16 %v2643, %v2635
    %v3452 = vpack.c.b16 %v2644, %v2636
    %v3453 = vpack.c.b16 %v2645, %v2637
    %v3454 = vpack.c.b16 %v2654, %v2646
    %v3455 = vpack.c.b16 %v2655, %v2647
    %v3456 = vpack.c.b16 %v2656, %v2648
    %v3457 = vpack.c.b16 %v2657, %v2649
    %v3458 = vpack.c.b16 %v2658, %v2650
    %v3459 = vpack.c.b16 %v2659, %v2651
    %v3460 = vpack.c.b16 %v2660, %v2652
    %v3461 = vpack.c.b16 %v2661, %v2653
    %v3462 = vpack.c.b16 %v2670, %v2662
    %v3463 = vpack.c.b16 %v2671, %v2663
    %v3464 = vpack.c.b16 %v2672, %v2664
    %v3465 = vpack.c.b16 %v2673, %v2665
    %v3466 = vpack.c.b16 %v2674, %v2666
    %v3467 = vpack.c.b16 %v2675, %v2667
    %v3468 = vpack.c.b16 %v2676, %v2668
    %v3469 = vpack.c.b16 %v2677, %v2669
    %v3470 = vpack.c.b16 %v2686, %v2678
    %v3471 = vpack.c.b16 %v2687, %v2679
    %v3472 = vpack.c.b16 %v2688, %v2680
    %v3473 = vpack.c.b16 %v2689, %v2681
    %v3474 = vpack.c.b16 %v2690, %v2682
    %v3475 = vpack.c.b16 %v2691, %v2683
    %v3476 = vpack.c.b16 %v2692, %v2684
    %v3477 = vpack.c.b16 %v2693, %v2685
    %v3478 = vpack.c.b16 %v2702, %v2694
    %v3479 = vpack.c.b16 %v2703, %v2695
    %v3480 = vpack.c.b16 %v2704, %v2696
    %v3481 = vpack.c.b16 %v2705, %v2697
    %v3482 = vpack.c.b16 %v2706, %v2698
    %v3483 = vpack.c.b16 %v2707, %v2699
    %v3484 = vpack.c.b16 %v2708, %v2700
    %v3485 = vpack.c.b16 %v2709, %v2701
    %v3486 = vpack.c.b16 %v2718, %v2710
    %v3487 = vpack.c.b16 %v2719, %v2711
    %v3488 = vpack.c.b16 %v2720, %v2712
    %v3489 = vpack.c.b16 %v2721, %v2713
    %v3490 = vpack.c.b16 %v2722, %v2714
    %v3491 = vpack.c.b16 %v2723, %v2715
    %v3492 = vpack.c.b16 %v2724, %v2716
    %v3493 = vpack.c.b16 %v2725, %v2717
    %v3494 = vpack.c.b16 %v2734, %v2726
    %v3495 = vpack.c.b16 %v2735, %v2727
    %v3496 = vpack.c.b16 %v2736, %v2728
    %v3497 = vpack.c.b16 %v2737, %v2729
    %v3498 = vpack.c.b16 %v2738, %v2730
    %v3499 = vpack.c.b16 %v2739, %v2731
    %v3500 = vpack.c.b16 %v2740, %v2732
    %v3501 = vpack.c.b16 %v2741, %v2733
    %v3502 = vpack.c.b16 %v2750, %v2742
    %v3503 = vpack.c.b16 %v2751, %v2743
    %v3504 = vpack.c.b16 %v2752, %v2744
    %v3505 = vpack.c.b16 %v2753, %v2745
    %v3506 = vpack.c.b16 %v2754, %v2746
    %v3507 = vpack.c.b16 %v2755, %v2747
    %v3508 = vpack.c.b16 %v2756, %v2748
    %v3509 = vpack.c.b16 %v2757, %v2749
    %v3510 = vpack.c.b16 %v2766, %v2758
    %v3511 = vpack.c.b16 %v2767, %v2759
    %v3512 = vpack.c.b16 %v2768, %v2760
    %v3513 = vpack.c.b16 %v2769, %v2761
    %v3514 = vpack.c.b16 %v2770, %v2762
    %v3515 = vpack.c.b16 %v2771, %v2763
    %v3516 = vpack.c.b16 %v2772, %v2764
    %v3517 = vpack.c.b16 %v2773, %v2765
    %v3518 = vpack.c.b16 %v2782, %v2774
    %v3519 = vpack.c.b16 %v2783, %v2775
    %v3520 = vpack.c.b16 %v2784, %v2776
    %v3521 = vpack.c.b16 %v2785, %v2777
    %v3522 = vpack.c.b16 %v2786, %v2778
    %v3523 = vpack.c.b16 %v2787, %v2779
    %v3524 = vpack.c.b16 %v2788, %v2780
    %v3525 = vpack.c.b16 %v2789, %v2781
    %v3526 = vpack.c.b16 %v2798, %v2790
    %v3527 = vpack.c.b16 %v2799, %v2791
    %v3528 = vpack.c.b16 %v2800, %v2792
    %v3529 = vpack.c.b16 %v2801, %v2793
    %v3530 = vpack.c.b16 %v2802, %v2794
    %v3531 = vpack.c.b16 %v2803, %v2795
    %v3532 = vpack.c.b16 %v2804, %v2796
    %v3533 = vpack.c.b16 %v2805, %v2797
    %v3534 = vpack.c.b16 %v2814, %v2806
    %v3535 = vpack.c.b16 %v2815, %v2807
    %v3536 = vpack.c.b16 %v2816, %v2808
    %v3537 = vpack.c.b16 %v2817, %v2809
    %v3538 = vpack.c.b16 %v2818, %v2810
    %v3539 = vpack.c.b16 %v2819, %v2811
    %v3540 = vpack.c.b16 %v2820, %v2812
    %v3541 = vpack.c.b16 %v2821, %v2813
    %v3542 = vpack.c.b16 %v2830, %v2822
    %v3543 = vpack.c.b16 %v2831, %v2823
    %v3544 = vpack.c.b16 %v2832, %v2824
    %v3545 = vpack.c.b16 %v2833, %v2825
    %v3546 = vpack.c.b16 %v2834, %v2826
    %v3547 = vpack.c.b16 %v2835, %v2827
    %v3548 = vpack.c.b16 %v2836, %v2828
    %v3549 = vpack.c.b16 %v2837, %v2829
    %v3550 = vpack.c.b16 %v2846, %v2838
    %v3551 = vpack.c.b16 %v2847, %v2839
    %v3552 = vpack.c.b16 %v2848, %v2840
    %v3553 = vpack.c.b16 %v2849, %v2841
    %v3554 = vpack.c.b16 %v2850, %v2842
    %v3555 = vpack.c.b16 %v2851, %v2843
    %v3556 = vpack.c.b16 %v2852, %v2844
    %v3557 = vpack.c.b16 %v2853, %v2845
    %v3558 = vpack.c.b16 %v2862, %v2854
    %v3559 = vpack.c.b16 %v2863, %v2855
    %v3560 = vpack.c.b16 %v2864, %v2856
    %v3561 = vpack.c.b16 %v2865, %v2857
    %v3562 = vpack.c.b16 %v2866, %v2858
    %v3563 = vpack.c.b16 %v2867, %v2859
    %v3564 = vpack.c.b16 %v2868, %v2860
    %v3565 = vpack.c.b16 %v2869, %v2861
    %v3566 = vpack.c.b16 %v2878, %v2870
    %v3567 = vpack.c.b16 %v2879, %v2871
    %v3568 = vpack.c.b16 %v2880, %v2872
    %v3569 = vpack.c.b16 %v2881, %v2873
    %v3570 = vpack.c.b16 %v2882, %v2874
    %v3571 = vpack.c.b16 %v2883, %v2875
    %v3572 = vpack.c.b16 %v2884, %v2876
    %v3573 = vpack.c.b16 %v2885, %v2877
    %v3574 = vpack.c.b16 %v2894, %v2886
    %v3575 = vpack.c.b16 %v2895, %v2887
    %v3576 = vpack.c.b16 %v2896, %v2888
    %v3577 = vpack.c.b16 %v2897, %v2889
    %v3578 = vpack.c.b16 %v2898, %v2890
    %v3579 = vpack.c.b16 %v2899, %v2891
    %v3580 = vpack.c.b16 %v2900, %v2892
    %v3581 = vpack.c.b16 %v2901, %v2893
    %v3582 = vpack.c.b16 %v2910, %v2902
    %v3583 = vpack.c.b16 %v2911, %v2903
    %v3584 = vpack.c.b16 %v2912, %v2904
    %v3585 = vpack.c.b16 %v2913, %v2905
    %v3586 = vpack.c.b16 %v2914, %v2906
    %v3587 = vpack.c.b16 %v2915, %v2907
    %v3588 = vpack.c.b16 %v2916, %v2908
    %v3589 = vpack.c.b16 %v2917, %v2909
    %v3590 = vpack.c.b16 %v2926, %v2918
    %v3591 = vpack.c.b16 %v2927, %v2919
    %v3592 = vpack.c.b16 %v2928, %v2920
    %v3593 = vpack.c.b16 %v2929, %v2921
    %v3594 = vpack.c.b16 %v2930, %v2922
    %v3595 = vpack.c.b16 %v2931, %v2923
    %v3596 = vpack.c.b16 %v2932, %v2924
    %v3597 = vpack.c.b16 %v2933, %v2925
    %v3598 = vpack.c.b16 %v2942, %v2934
    %v3599 = vpack.c.b16 %v2943, %v2935
    %v3600 = vpack.c.b16 %v2944, %v2936
    %v3601 = vpack.c.b16 %v2945, %v2937
    %v3602 = vpack.c.b16 %v2946, %v2938
    %v3603 = vpack.c.b16 %v2947, %v2939
    %v3604 = vpack.c.b16 %v2948, %v2940
    %v3605 = vpack.c.b16 %v2949, %v2941
    %v3606 = vpack.c.b16 %v2958, %v2950
    %v3607 = vpack.c.b16 %v2959, %v2951
    %v3608 = vpack.c.b16 %v2960, %v2952
    %v3609 = vpack.c.b16 %v2961, %v2953
    %v3610 = vpack.c.b16 %v2962, %v2954
    %v3611 = vpack.c.b16 %v2963, %v2955
    %v3612 = vpack.c.b16 %v2964, %v2956
    %v3613 = vpack.c.b16 %v2965, %v2957
    %v3614 = vpack.c.b16 %v2974, %v2966
    %v3615 = vpack.c.b16 %v2975, %v2967
    %v3616 = vpack.c.b16 %v2976, %v2968
    %v3617 = vpack.c.b16 %v2977, %v2969
    %v3618 = vpack.c.b16 %v2978, %v2970
    %v3619 = vpack.c.b16 %v2979, %v2971
    %v3620 = vpack.c.b16 %v2980, %v2972
    %v3621 = vpack.c.b16 %v2981, %v2973
    %v3622 = vpack.c.b16 %v2990, %v2982
    %v3623 = vpack.c.b16 %v2991, %v2983
    %v3624 = vpack.c.b16 %v2992, %v2984
    %v3625 = vpack.c.b16 %v2993, %v2985
    %v3626 = vpack.c.b16 %v2994, %v2986
    %v3627 = vpack.c.b16 %v2995, %v2987
    %v3628 = vpack.c.b16 %v2996, %v2988
    %v3629 = vpack.c.b16 %v2997, %v2989
    %v3630 = vpack.c.b16 %v3006, %v2998
    %v3631 = vpack.c.b16 %v3007, %v2999
    %v3632 = vpack.c.b16 %v3008, %v3000
    %v3633 = vpack.c.b16 %v3009, %v3001
    %v3634 = vpack.c.b16 %v3010, %v3002
    %v3635 = vpack.c.b16 %v3011, %v3003
    %v3636 = vpack.c.b16 %v3012, %v3004
    %v3637 = vpack.c.b16 %v3013, %v3005
    %v3638 = vpack.c.b16 %v3022, %v3014
    %v3639 = vpack.c.b16 %v3023, %v3015
    %v3640 = vpack.c.b16 %v3024, %v3016
    %v3641 = vpack.c.b16 %v3025, %v3017
    %v3642 = vpack.c.b16 %v3026, %v3018
    %v3643 = vpack.c.b16 %v3027, %v3019
    %v3644 = vpack.c.b16 %v3028, %v3020
    %v3645 = vpack.c.b16 %v3029, %v3021
    %v3646 = vpack.c.b16 %v3038, %v3030
    %v3647 = vpack.c.b16 %v3039, %v3031
    %v3648 = vpack.c.b16 %v3040, %v3032
    %v3649 = vpack.c.b16 %v3041, %v3033
    %v3650 = vpack.c.b16 %v3042, %v3034
    %v3651 = vpack.c.b16 %v3043, %v3035
    %v3652 = vpack.c.b16 %v3044, %v3036
    %v3653 = vpack.c.b16 %v3045, %v3037
    %v3654 = vpack.c.b16 %v3054, %v3046
    %v3655 = vpack.c.b16 %v3055, %v3047
    %v3656 = vpack.c.b16 %v3056, %v3048
    %v3657 = vpack.c.b16 %v3057, %v3049
    %v3658 = vpack.c.b16 %v3058, %v3050
    %v3659 = vpack.c.b16 %v3059, %v3051
    %v3660 = vpack.c.b16 %v3060, %v3052
    %v3661 = vpack.c.b16 %v3061, %v3053
    %v3662 = vpack.c.b16 %v3070, %v3062
    %v3663 = vpack.c.b16 %v3071, %v3063
    %v3664 = vpack.c.b16 %v3072, %v3064
    %v3665 = vpack.c.b16 %v3073, %v3065
    %v3666 = vpack.c.b16 %v3074, %v3066
    %v3667 = vpack.c.b16 %v3075, %v3067
    %v3668 = vpack.c.b16 %v3076, %v3068
    %v3669 = vpack.c.b16 %v3077, %v3069
    %v3670 = vpack.c.b16 %v3086, %v3078
    %v3671 = vpack.c.b16 %v3087, %v3079
    %v3672 = vpack.c.b16 %v3088, %v3080
    %v3673 = vpack.c.b16 %v3089, %v3081
    %v3674 = vpack.c.b16 %v3090, %v3082
    %v3675 = vpack.c.b16 %v3091, %v3083
    %v3676 = vpack.c.b16 %v3092, %v3084
    %v3677 = vpack.c.b16 %v3093, %v3085
    %v3678 = vpack.c.b16 %v3102, %v3094
    %v3679 = vpack.c.b16 %v3103, %v3095
    %v3680 = vpack.c.b16 %v3104, %v3096
    %v3681 = vpack.c.b16 %v3105, %v3097
    %v3682 = vpack.c.b16 %v3106, %v3098
    %v3683 = vpack.c.b16 %v3107, %v3099
    %v3684 = vpack.c.b16 %v3108, %v3100
    %v3685 = vpack.c.b16 %v3109, %v3101
    %v3686 = vpack.c.b16 %v3118, %v3110
    %v3687 = vpack.c.b16 %v3119, %v3111
    %v3688 = vpack.c.b16 %v3120, %v3112
    %v3689 = vpack.c.b16 %v3121, %v3113
    %v3690 = vpack.c.b16 %v3122, %v3114
    %v3691 = vpack.c.b16 %v3123, %v3115
    %v3692 = vpack.c.b16 %v3124, %v3116
    %v3693 = vpack.c.b16 %v3125, %v3117
    %v3694 = vpack.c.b16 %v3134, %v3126
    %v3695 = vpack.c.b16 %v3135, %v3127
    %v3696 = vpack.c.b16 %v3136, %v3128
    %v3697 = vpack.c.b16 %v3137, %v3129
    %v3698 = vpack.c.b16 %v3138, %v3130
    %v3699 = vpack.c.b16 %v3139, %v3131
    %v3700 = vpack.c.b16 %v3140, %v3132
    %v3701 = vpack.c.b16 %v3141, %v3133
    %v3702 = vpack.c.b16 %v3150, %v3142
    %v3703 = vpack.c.b16 %v3151, %v3143
    %v3704 = vpack.c.b16 %v3152, %v3144
    %v3705 = vpack.c.b16 %v3153, %v3145
    %v3706 = vpack.c.b16 %v3154, %v3146
    %v3707 = vpack.c.b16 %v3155, %v3147
    %v3708 = vpack.c.b16 %v3156, %v3148
    %v3709 = vpack.c.b16 %v3157, %v3149
    %v3710 = vpack.c.b16 %v3166, %v3158
    %v3711 = vpack.c.b16 %v3167, %v3159
    %v3712 = vpack.c.b16 %v3168, %v3160
    %v3713 = vpack.c.b16 %v3169, %v3161
    %v3714 = vpack.c.b16 %v3170, %v3162
    %v3715 = vpack.c.b16 %v3171, %v3163
    %v3716 = vpack.c.b16 %v3172, %v3164
    %v3717 = vpack.c.b16 %v3173, %v3165
    %v3718 = vpack.c.b16 %v3182, %v3174
    %v3719 = vpack.c.b16 %v3183, %v3175
    %v3720 = vpack.c.b16 %v3184, %v3176
    %v3721 = vpack.c.b16 %v3185, %v3177
    %v3722 = vpack.c.b16 %v3186, %v3178
    %v3723 = vpack.c.b16 %v3187, %v3179
    %v3724 = vpack.c.b16 %v3188, %v3180
    %v3725 = vpack.c.b16 %v3189, %v3181
    %v3726 = vpack.c.b16 %v3198, %v3190
    %v3727 = vpack.c.b16 %v3199, %v3191
    %v3728 = vpack.c.b16 %v3200, %v3192
    %v3729 = vpack.c.b16 %v3201, %v3193
    %v3730 = vpack.c.b16 %v3202, %v3194
    %v3731 = vpack.c.b16 %v3203, %v3195
    %v3732 = vpack.c.b16 %v3204, %v3196
    %v3733 = vpack.c.b16 %v3205, %v3197
    %v3734 = vpack.c.b16 %v3214, %v3206
    %v3735 = vpack.c.b16 %v3215, %v3207
    %v3736 = vpack.c.b16 %v3216, %v3208
    %v3737 = vpack.c.b16 %v3217, %v3209
    %v3738 = vpack.c.b16 %v3218, %v3210
    %v3739 = vpack.c.b16 %v3219, %v3211
    %v3740 = vpack.c.b16 %v3220, %v3212
    %v3741 = vpack.c.b16 %v3221, %v3213
    %v3742 = vpack.c.b16 %v3230, %v3222
    %v3743 = vpack.c.b16 %v3231, %v3223
    %v3744 = vpack.c.b16 %v3232, %v3224
    %v3745 = vpack.c.b16 %v3233, %v3225
    %v3746 = vpack.c.b16 %v3234, %v3226
    %v3747 = vpack.c.b16 %v3235, %v3227
    %v3748 = vpack.c.b16 %v3236, %v3228
    %v3749 = vpack.c.b16 %v3237, %v3229
    %4262 = vmatprep.subr.bf16.mxu0 %v3295
    %4263 = vmatpush1.bf16.msra.mxu0 %v3294
    %4264 = vmatprep.subr.bf16.mxu0 %v3287
    %4265 = vmatpush1.bf16.msra.mxu0 %v3286
    %4266 = vmatprep.subr.bf16.mxu0 %v3279
    %4267 = vmatpush1.bf16.msra.mxu0 %v3278
    %4268 = vmatprep.subr.bf16.mxu0 %v3271
    %4269 = vmatpush1.bf16.msra.mxu0 %v3270
    %4270 = vmatprep.subr.bf16.mxu0 %v3263
    %4271 = vmatpush1.bf16.msra.mxu0 %v3262
    %4272 = vmatprep.subr.bf16.mxu0 %v3255
    %4273 = vmatpush1.bf16.msra.mxu0 %v3254
    %4274 = vmatprep.subr.bf16.mxu0 %v3247
    %4275 = vmatpush1.bf16.msra.mxu0 %v3246
    %4276 = vmatprep.subr.bf16.mxu0 %v3239
    %4277 = vmatpush1.bf16.msra.mxu0 %v3238
    %4278 = vmatprep.subr.bf16.mxu0 %v3359
    %4279 = vmatpush2.bf16.msra.mxu0 %v3358
    %4280 = vmatprep.subr.bf16.mxu0 %v3351
    %4281 = vmatpush2.bf16.msra.mxu0 %v3350
    %4282 = vmatprep.subr.bf16.mxu0 %v3343
    %4283 = vmatpush2.bf16.msra.mxu0 %v3342
    %4284 = vmatprep.subr.bf16.mxu0 %v3335
    %4285 = vmatpush2.bf16.msra.mxu0 %v3334
    %4286 = vmatprep.subr.bf16.mxu0 %v3327
    %4287 = vmatpush2.bf16.msra.mxu0 %v3326
    %4288 = vmatprep.subr.bf16.mxu0 %v3319
    %4289 = vmatpush2.bf16.msra.mxu0 %v3318
    %4290 = vmatprep.subr.bf16.mxu0 %v3311
    %4291 = vmatpush2.bf16.msra.mxu0 %v3310
    %4292 = vmatprep.subr.bf16.mxu0 %v3303
    %4293 = vmatpush2.bf16.msra.mxu0 %v3302
    %4294 = vmatprep.mubr.bf16.mxu0 %v1141
    %4295 = vmatmul.mubr.bf16.gmra.mxu0 %v1140
    %v4296 = vpop.f32.mrf.mxu0
    %v4297 = vadd.f32 %v1665, %v4296
    %v4298 = vpop.f32.mrf.mxu0
    %v4299 = vadd.f32 %v1669, %v4298
    %v4300 = vpop.f32.mrf.mxu0
    %v4301 = vpop.f32.mrf.mxu0
    %4302 = vdwg.mxu0
    %4303 = vmatprep.subr.bf16.mxu0 %v3423
    %4304 = vmatpush1.bf16.msra.mxu0 %v3422
    %4305 = vmatprep.subr.bf16.mxu0 %v3415
    %4306 = vmatpush1.bf16.msra.mxu0 %v3414
    %4307 = vmatprep.subr.bf16.mxu0 %v3407
    %4308 = vmatpush1.bf16.msra.mxu0 %v3406
    %4309 = vmatprep.subr.bf16.mxu0 %v3399
    %4310 = vmatpush1.bf16.msra.mxu0 %v3398
    %4311 = vmatprep.subr.bf16.mxu0 %v3391
    %4312 = vmatpush1.bf16.msra.mxu0 %v3390
    %4313 = vmatprep.subr.bf16.mxu0 %v3383
    %4314 = vmatpush1.bf16.msra.mxu0 %v3382
    %4315 = vmatprep.subr.bf16.mxu0 %v3375
    %4316 = vmatpush1.bf16.msra.mxu0 %v3374
    %4317 = vmatprep.subr.bf16.mxu0 %v3367
    %4318 = vmatpush1.bf16.msra.mxu0 %v3366
    %4319 = vmatprep.subr.bf16.mxu0 %v3487
    %4320 = vmatpush2.bf16.msra.mxu0 %v3486
    %4321 = vmatprep.subr.bf16.mxu0 %v3479
    %4322 = vmatpush2.bf16.msra.mxu0 %v3478
    %4323 = vmatprep.subr.bf16.mxu0 %v3471
    %4324 = vmatpush2.bf16.msra.mxu0 %v3470
    %4325 = vmatprep.subr.bf16.mxu0 %v3463
    %4326 = vmatpush2.bf16.msra.mxu0 %v3462
    %4327 = vmatprep.subr.bf16.mxu0 %v3455
    %4328 = vmatpush2.bf16.msra.mxu0 %v3454
    %4329 = vmatprep.subr.bf16.mxu0 %v3447
    %4330 = vmatpush2.bf16.msra.mxu0 %v3446
    %4331 = vmatprep.subr.bf16.mxu0 %v3439
    %4332 = vmatpush2.bf16.msra.mxu0 %v3438
    %4333 = vmatprep.subr.bf16.mxu0 %v3431
    %4334 = vmatpush2.bf16.msra.mxu0 %v3430
    %4335 = vmatprep.mubr.bf16.mxu0 %v1143
    %4336 = vmatmul.mubr.bf16.gmra.mxu0 %v1142
    %v4337 = vpop.f32.mrf.mxu0
    %v4338 = vadd.f32 %v4297, %v4337
    %v4339 = vpop.f32.mrf.mxu0
    %v4340 = vadd.f32 %v4299, %v4339
    %v4341 = vpop.f32.mrf.mxu0
    %v4342 = vpop.f32.mrf.mxu0
    %4343 = vdwg.mxu0
    %4344 = vmatprep.subr.bf16.mxu0 %v3551
    %4345 = vmatpush1.bf16.msra.mxu0 %v3550
    %4346 = vmatprep.subr.bf16.mxu0 %v3543
    %4347 = vmatpush1.bf16.msra.mxu0 %v3542
    %4348 = vmatprep.subr.bf16.mxu0 %v3535
    %4349 = vmatpush1.bf16.msra.mxu0 %v3534
    %4350 = vmatprep.subr.bf16.mxu0 %v3527
    %4351 = vmatpush1.bf16.msra.mxu0 %v3526
    %4352 = vmatprep.subr.bf16.mxu0 %v3519
    %4353 = vmatpush1.bf16.msra.mxu0 %v3518
    %4354 = vmatprep.subr.bf16.mxu0 %v3511
    %4355 = vmatpush1.bf16.msra.mxu0 %v3510
    %4356 = vmatprep.subr.bf16.mxu0 %v3503
    %4357 = vmatpush1.bf16.msra.mxu0 %v3502
    %4358 = vmatprep.subr.bf16.mxu0 %v3495
    %4359 = vmatpush1.bf16.msra.mxu0 %v3494
    %4360 = vmatprep.subr.bf16.mxu0 %v3615
    %4361 = vmatpush2.bf16.msra.mxu0 %v3614
    %4362 = vmatprep.subr.bf16.mxu0 %v3607
    %4363 = vmatpush2.bf16.msra.mxu0 %v3606
    %4364 = vmatprep.subr.bf16.mxu0 %v3599
    %4365 = vmatpush2.bf16.msra.mxu0 %v3598
    %4366 = vmatprep.subr.bf16.mxu0 %v3591
    %4367 = vmatpush2.bf16.msra.mxu0 %v3590
    %4368 = vmatprep.subr.bf16.mxu0 %v3583
    %4369 = vmatpush2.bf16.msra.mxu0 %v3582
    %4370 = vmatprep.subr.bf16.mxu0 %v3575
    %4371 = vmatpush2.bf16.msra.mxu0 %v3574
    %4372 = vmatprep.subr.bf16.mxu0 %v3567
    %4373 = vmatpush2.bf16.msra.mxu0 %v3566
    %4374 = vmatprep.subr.bf16.mxu0 %v3559
    %4375 = vmatpush2.bf16.msra.mxu0 %v3558
    %4376 = vmatprep.mubr.bf16.mxu0 %v1145
    %4377 = vmatmul.mubr.bf16.gmra.mxu0 %v1144
    %v4378 = vpop.f32.mrf.mxu0
    %v4379 = vadd.f32 %v4338, %v4378
    %v4380 = vpop.f32.mrf.mxu0
    %v4381 = vadd.f32 %v4340, %v4380
    %v4382 = vpop.f32.mrf.mxu0
    %v4383 = vpop.f32.mrf.mxu0
    %4384 = vdwg.mxu0
    %4385 = vmatprep.subr.bf16.mxu0 %v3679
    %4386 = vmatpush1.bf16.msra.mxu0 %v3678
    %4387 = vmatprep.subr.bf16.mxu0 %v3671
    %4388 = vmatpush1.bf16.msra.mxu0 %v3670
    %4389 = vmatprep.subr.bf16.mxu0 %v3663
    %4390 = vmatpush1.bf16.msra.mxu0 %v3662
    %4391 = vmatprep.subr.bf16.mxu0 %v3655
    %4392 = vmatpush1.bf16.msra.mxu0 %v3654
    %4393 = vmatprep.subr.bf16.mxu0 %v3647
    %4394 = vmatpush1.bf16.msra.mxu0 %v3646
    %4395 = vmatprep.subr.bf16.mxu0 %v3639
    %4396 = vmatpush1.bf16.msra.mxu0 %v3638
    %4397 = vmatprep.subr.bf16.mxu0 %v3631
    %4398 = vmatpush1.bf16.msra.mxu0 %v3630
    %4399 = vmatprep.subr.bf16.mxu0 %v3623
    %4400 = vmatpush1.bf16.msra.mxu0 %v3622
    %4401 = vmatprep.subr.bf16.mxu0 %v3743
    %4402 = vmatpush2.bf16.msra.mxu0 %v3742
    %4403 = vmatprep.subr.bf16.mxu0 %v3735
    %4404 = vmatpush2.bf16.msra.mxu0 %v3734
    %4405 = vmatprep.subr.bf16.mxu0 %v3727
    %4406 = vmatpush2.bf16.msra.mxu0 %v3726
    %4407 = vmatprep.subr.bf16.mxu0 %v3719
    %4408 = vmatpush2.bf16.msra.mxu0 %v3718
    %4409 = vmatprep.subr.bf16.mxu0 %v3711
    %4410 = vmatpush2.bf16.msra.mxu0 %v3710
    %4411 = vmatprep.subr.bf16.mxu0 %v3703
    %4412 = vmatpush2.bf16.msra.mxu0 %v3702
    %4413 = vmatprep.subr.bf16.mxu0 %v3695
    %4414 = vmatpush2.bf16.msra.mxu0 %v3694
    %4415 = vmatprep.subr.bf16.mxu0 %v3687
    %4416 = vmatpush2.bf16.msra.mxu0 %v3686
    %4417 = vmatprep.mubr.bf16.mxu0 %v1147
    %4418 = vmatmul.mubr.bf16.gmra.mxu0 %v1146
    %v4419 = vpop.f32.mrf.mxu0
    %v4420 = vadd.f32 %v4379, %v4419
    %v4421 = vpop.f32.mrf.mxu0
    %v4422 = vadd.f32 %v4381, %v4421
    %v4423 = vpop.f32.mrf.mxu0
    %v4424 = vpop.f32.mrf.mxu0
    %4425 = vdwg.mxu0
    %4426 = vmatprep.subr.bf16.mxu0 %v3297
    %4427 = vmatpush1.bf16.msra.mxu0 %v3296
    %4428 = vmatprep.subr.bf16.mxu0 %v3289
    %4429 = vmatpush1.bf16.msra.mxu0 %v3288
    %4430 = vmatprep.subr.bf16.mxu0 %v3281
    %4431 = vmatpush1.bf16.msra.mxu0 %v3280
    %4432 = vmatprep.subr.bf16.mxu0 %v3273
    %4433 = vmatpush1.bf16.msra.mxu0 %v3272
    %4434 = vmatprep.subr.bf16.mxu0 %v3265
    %4435 = vmatpush1.bf16.msra.mxu0 %v3264
    %4436 = vmatprep.subr.bf16.mxu0 %v3257
    %4437 = vmatpush1.bf16.msra.mxu0 %v3256
    %4438 = vmatprep.subr.bf16.mxu0 %v3249
    %4439 = vmatpush1.bf16.msra.mxu0 %v3248
    %4440 = vmatprep.subr.bf16.mxu0 %v3241
    %4441 = vmatpush1.bf16.msra.mxu0 %v3240
    %4442 = vmatprep.subr.bf16.mxu0 %v3361
    %4443 = vmatpush2.bf16.msra.mxu0 %v3360
    %4444 = vmatprep.subr.bf16.mxu0 %v3353
    %4445 = vmatpush2.bf16.msra.mxu0 %v3352
    %4446 = vmatprep.subr.bf16.mxu0 %v3345
    %4447 = vmatpush2.bf16.msra.mxu0 %v3344
    %4448 = vmatprep.subr.bf16.mxu0 %v3337
    %4449 = vmatpush2.bf16.msra.mxu0 %v3336
    %4450 = vmatprep.subr.bf16.mxu0 %v3329
    %4451 = vmatpush2.bf16.msra.mxu0 %v3328
    %4452 = vmatprep.subr.bf16.mxu0 %v3321
    %4453 = vmatpush2.bf16.msra.mxu0 %v3320
    %4454 = vmatprep.subr.bf16.mxu0 %v3313
    %4455 = vmatpush2.bf16.msra.mxu0 %v3312
    %4456 = vmatprep.subr.bf16.mxu0 %v3305
    %4457 = vmatpush2.bf16.msra.mxu0 %v3304
    %4458 = vmatprep.mubr.bf16.mxu0 %v1141
    %4459 = vmatmul.mubr.bf16.gmra.mxu0 %v1140
    %v4460 = vpop.f32.mrf.mxu0
    %v4461 = vadd.f32 %v1673, %v4460
    %v4462 = vpop.f32.mrf.mxu0
    %v4463 = vadd.f32 %v1677, %v4462
    %v4464 = vpop.f32.mrf.mxu0
    %v4465 = vpop.f32.mrf.mxu0
    %4466 = vdwg.mxu0
    %4467 = vmatprep.subr.bf16.mxu0 %v3425
    %4468 = vmatpush1.bf16.msra.mxu0 %v3424
    %4469 = vmatprep.subr.bf16.mxu0 %v3417
    %4470 = vmatpush1.bf16.msra.mxu0 %v3416
    %4471 = vmatprep.subr.bf16.mxu0 %v3409
    %4472 = vmatpush1.bf16.msra.mxu0 %v3408
    %4473 = vmatprep.subr.bf16.mxu0 %v3401
    %4474 = vmatpush1.bf16.msra.mxu0 %v3400
    %4475 = vmatprep.subr.bf16.mxu0 %v3393
    %4476 = vmatpush1.bf16.msra.mxu0 %v3392
    %4477 = vmatprep.subr.bf16.mxu0 %v3385
    %4478 = vmatpush1.bf16.msra.mxu0 %v3384
    %4479 = vmatprep.subr.bf16.mxu0 %v3377
    %4480 = vmatpush1.bf16.msra.mxu0 %v3376
    %4481 = vmatprep.subr.bf16.mxu0 %v3369
    %4482 = vmatpush1.bf16.msra.mxu0 %v3368
    %4483 = vmatprep.subr.bf16.mxu0 %v3489
    %4484 = vmatpush2.bf16.msra.mxu0 %v3488
    %4485 = vmatprep.subr.bf16.mxu0 %v3481
    %4486 = vmatpush2.bf16.msra.mxu0 %v3480
    %4487 = vmatprep.subr.bf16.mxu0 %v3473
    %4488 = vmatpush2.bf16.msra.mxu0 %v3472
    %4489 = vmatprep.subr.bf16.mxu0 %v3465
    %4490 = vmatpush2.bf16.msra.mxu0 %v3464
    %4491 = vmatprep.subr.bf16.mxu0 %v3457
    %4492 = vmatpush2.bf16.msra.mxu0 %v3456
    %4493 = vmatprep.subr.bf16.mxu0 %v3449
    %4494 = vmatpush2.bf16.msra.mxu0 %v3448
    %4495 = vmatprep.subr.bf16.mxu0 %v3441
    %4496 = vmatpush2.bf16.msra.mxu0 %v3440
    %4497 = vmatprep.subr.bf16.mxu0 %v3433
    %4498 = vmatpush2.bf16.msra.mxu0 %v3432
    %4499 = vmatprep.mubr.bf16.mxu0 %v1143
    %4500 = vmatmul.mubr.bf16.gmra.mxu0 %v1142
    %v4501 = vpop.f32.mrf.mxu0
    %v4502 = vadd.f32 %v4461, %v4501
    %v4503 = vpop.f32.mrf.mxu0
    %v4504 = vadd.f32 %v4463, %v4503
    %v4505 = vpop.f32.mrf.mxu0
    %v4506 = vpop.f32.mrf.mxu0
    %4507 = vdwg.mxu0
    %4508 = vmatprep.subr.bf16.mxu0 %v3553
    %4509 = vmatpush1.bf16.msra.mxu0 %v3552
    %4510 = vmatprep.subr.bf16.mxu0 %v3545
    %4511 = vmatpush1.bf16.msra.mxu0 %v3544
    %4512 = vmatprep.subr.bf16.mxu0 %v3537
    %4513 = vmatpush1.bf16.msra.mxu0 %v3536
    %4514 = vmatprep.subr.bf16.mxu0 %v3529
    %4515 = vmatpush1.bf16.msra.mxu0 %v3528
    %4516 = vmatprep.subr.bf16.mxu0 %v3521
    %4517 = vmatpush1.bf16.msra.mxu0 %v3520
    %4518 = vmatprep.subr.bf16.mxu0 %v3513
    %4519 = vmatpush1.bf16.msra.mxu0 %v3512
    %4520 = vmatprep.subr.bf16.mxu0 %v3505
    %4521 = vmatpush1.bf16.msra.mxu0 %v3504
    %4522 = vmatprep.subr.bf16.mxu0 %v3497
    %4523 = vmatpush1.bf16.msra.mxu0 %v3496
    %4524 = vmatprep.subr.bf16.mxu0 %v3617
    %4525 = vmatpush2.bf16.msra.mxu0 %v3616
    %4526 = vmatprep.subr.bf16.mxu0 %v3609
    %4527 = vmatpush2.bf16.msra.mxu0 %v3608
    %4528 = vmatprep.subr.bf16.mxu0 %v3601
    %4529 = vmatpush2.bf16.msra.mxu0 %v3600
    %4530 = vmatprep.subr.bf16.mxu0 %v3593
    %4531 = vmatpush2.bf16.msra.mxu0 %v3592
    %4532 = vmatprep.subr.bf16.mxu0 %v3585
    %4533 = vmatpush2.bf16.msra.mxu0 %v3584
    %4534 = vmatprep.subr.bf16.mxu0 %v3577
    %4535 = vmatpush2.bf16.msra.mxu0 %v3576
    %4536 = vmatprep.subr.bf16.mxu0 %v3569
    %4537 = vmatpush2.bf16.msra.mxu0 %v3568
    %4538 = vmatprep.subr.bf16.mxu0 %v3561
    %4539 = vmatpush2.bf16.msra.mxu0 %v3560
    %4540 = vmatprep.mubr.bf16.mxu0 %v1145
    %4541 = vmatmul.mubr.bf16.gmra.mxu0 %v1144
    %v4542 = vpop.f32.mrf.mxu0
    %v4543 = vadd.f32 %v4502, %v4542
    %v4544 = vpop.f32.mrf.mxu0
    %v4545 = vadd.f32 %v4504, %v4544
    %v4546 = vpop.f32.mrf.mxu0
    %v4547 = vpop.f32.mrf.mxu0
    %4548 = vdwg.mxu0
    %4549 = vmatprep.subr.bf16.mxu0 %v3681
    %4550 = vmatpush1.bf16.msra.mxu0 %v3680
    %4551 = vmatprep.subr.bf16.mxu0 %v3673
    %4552 = vmatpush1.bf16.msra.mxu0 %v3672
    %4553 = vmatprep.subr.bf16.mxu0 %v3665
    %4554 = vmatpush1.bf16.msra.mxu0 %v3664
    %4555 = vmatprep.subr.bf16.mxu0 %v3657
    %4556 = vmatpush1.bf16.msra.mxu0 %v3656
    %4557 = vmatprep.subr.bf16.mxu0 %v3649
    %4558 = vmatpush1.bf16.msra.mxu0 %v3648
    %4559 = vmatprep.subr.bf16.mxu0 %v3641
    %4560 = vmatpush1.bf16.msra.mxu0 %v3640
    %4561 = vmatprep.subr.bf16.mxu0 %v3633
    %4562 = vmatpush1.bf16.msra.mxu0 %v3632
    %4563 = vmatprep.subr.bf16.mxu0 %v3625
    %4564 = vmatpush1.bf16.msra.mxu0 %v3624
    %4565 = vmatprep.subr.bf16.mxu0 %v3745
    %4566 = vmatpush2.bf16.msra.mxu0 %v3744
    %4567 = vmatprep.subr.bf16.mxu0 %v3737
    %4568 = vmatpush2.bf16.msra.mxu0 %v3736
    %4569 = vmatprep.subr.bf16.mxu0 %v3729
    %4570 = vmatpush2.bf16.msra.mxu0 %v3728
    %4571 = vmatprep.subr.bf16.mxu0 %v3721
    %4572 = vmatpush2.bf16.msra.mxu0 %v3720
    %4573 = vmatprep.subr.bf16.mxu0 %v3713
    %4574 = vmatpush2.bf16.msra.mxu0 %v3712
    %4575 = vmatprep.subr.bf16.mxu0 %v3705
    %4576 = vmatpush2.bf16.msra.mxu0 %v3704
    %4577 = vmatprep.subr.bf16.mxu0 %v3697
    %4578 = vmatpush2.bf16.msra.mxu0 %v3696
    %4579 = vmatprep.subr.bf16.mxu0 %v3689
    %4580 = vmatpush2.bf16.msra.mxu0 %v3688
    %4581 = vmatprep.mubr.bf16.mxu0 %v1147
    %4582 = vmatmul.mubr.bf16.gmra.mxu0 %v1146
    %v4583 = vpop.f32.mrf.mxu0
    %v4584 = vadd.f32 %v4543, %v4583
    %v4585 = vpop.f32.mrf.mxu0
    %v4586 = vadd.f32 %v4545, %v4585
    %v4587 = vpop.f32.mrf.mxu0
    %v4588 = vpop.f32.mrf.mxu0
    %4589 = vdwg.mxu0
    %4590 = vmatprep.subr.bf16.mxu0 %v3299
    %4591 = vmatpush1.bf16.msra.mxu0 %v3298
    %4592 = vmatprep.subr.bf16.mxu0 %v3291
    %4593 = vmatpush1.bf16.msra.mxu0 %v3290
    %4594 = vmatprep.subr.bf16.mxu0 %v3283
    %4595 = vmatpush1.bf16.msra.mxu0 %v3282
    %4596 = vmatprep.subr.bf16.mxu0 %v3275
    %4597 = vmatpush1.bf16.msra.mxu0 %v3274
    %4598 = vmatprep.subr.bf16.mxu0 %v3267
    %4599 = vmatpush1.bf16.msra.mxu0 %v3266
    %4600 = vmatprep.subr.bf16.mxu0 %v3259
    %4601 = vmatpush1.bf16.msra.mxu0 %v3258
    %4602 = vmatprep.subr.bf16.mxu0 %v3251
    %4603 = vmatpush1.bf16.msra.mxu0 %v3250
    %4604 = vmatprep.subr.bf16.mxu0 %v3243
    %4605 = vmatpush1.bf16.msra.mxu0 %v3242
    %4606 = vmatprep.subr.bf16.mxu0 %v3363
    %4607 = vmatpush2.bf16.msra.mxu0 %v3362
    %4608 = vmatprep.subr.bf16.mxu0 %v3355
    %4609 = vmatpush2.bf16.msra.mxu0 %v3354
    %4610 = vmatprep.subr.bf16.mxu0 %v3347
    %4611 = vmatpush2.bf16.msra.mxu0 %v3346
    %4612 = vmatprep.subr.bf16.mxu0 %v3339
    %4613 = vmatpush2.bf16.msra.mxu0 %v3338
    %4614 = vmatprep.subr.bf16.mxu0 %v3331
    %4615 = vmatpush2.bf16.msra.mxu0 %v3330
    %4616 = vmatprep.subr.bf16.mxu0 %v3323
    %4617 = vmatpush2.bf16.msra.mxu0 %v3322
    %4618 = vmatprep.subr.bf16.mxu0 %v3315
    %4619 = vmatpush2.bf16.msra.mxu0 %v3314
    %4620 = vmatprep.subr.bf16.mxu0 %v3307
    %4621 = vmatpush2.bf16.msra.mxu0 %v3306
    %4622 = vmatprep.mubr.bf16.mxu0 %v1141
    %4623 = vmatmul.mubr.bf16.gmra.mxu0 %v1140
    %v4624 = vpop.f32.mrf.mxu0
    %v4625 = vadd.f32 %v1681, %v4624
    %v4626 = vpop.f32.mrf.mxu0
    %v4627 = vadd.f32 %v1685, %v4626
    %v4628 = vpop.f32.mrf.mxu0
    %v4629 = vpop.f32.mrf.mxu0
    %4630 = vdwg.mxu0
    %4631 = vmatprep.subr.bf16.mxu0 %v3427
    %4632 = vmatpush1.bf16.msra.mxu0 %v3426
    %4633 = vmatprep.subr.bf16.mxu0 %v3419
    %4634 = vmatpush1.bf16.msra.mxu0 %v3418
    %4635 = vmatprep.subr.bf16.mxu0 %v3411
    %4636 = vmatpush1.bf16.msra.mxu0 %v3410
    %4637 = vmatprep.subr.bf16.mxu0 %v3403
    %4638 = vmatpush1.bf16.msra.mxu0 %v3402
    %4639 = vmatprep.subr.bf16.mxu0 %v3395
    %4640 = vmatpush1.bf16.msra.mxu0 %v3394
    %4641 = vmatprep.subr.bf16.mxu0 %v3387
    %4642 = vmatpush1.bf16.msra.mxu0 %v3386
    %4643 = vmatprep.subr.bf16.mxu0 %v3379
    %4644 = vmatpush1.bf16.msra.mxu0 %v3378
    %4645 = vmatprep.subr.bf16.mxu0 %v3371
    %4646 = vmatpush1.bf16.msra.mxu0 %v3370
    %4647 = vmatprep.subr.bf16.mxu0 %v3491
    %4648 = vmatpush2.bf16.msra.mxu0 %v3490
    %4649 = vmatprep.subr.bf16.mxu0 %v3483
    %4650 = vmatpush2.bf16.msra.mxu0 %v3482
    %4651 = vmatprep.subr.bf16.mxu0 %v3475
    %4652 = vmatpush2.bf16.msra.mxu0 %v3474
    %4653 = vmatprep.subr.bf16.mxu0 %v3467
    %4654 = vmatpush2.bf16.msra.mxu0 %v3466
    %4655 = vmatprep.subr.bf16.mxu0 %v3459
    %4656 = vmatpush2.bf16.msra.mxu0 %v3458
    %4657 = vmatprep.subr.bf16.mxu0 %v3451
    %4658 = vmatpush2.bf16.msra.mxu0 %v3450
    %4659 = vmatprep.subr.bf16.mxu0 %v3443
    %4660 = vmatpush2.bf16.msra.mxu0 %v3442
    %4661 = vmatprep.subr.bf16.mxu0 %v3435
    %4662 = vmatpush2.bf16.msra.mxu0 %v3434
    %4663 = vmatprep.mubr.bf16.mxu0 %v1143
    %4664 = vmatmul.mubr.bf16.gmra.mxu0 %v1142
    %v4665 = vpop.f32.mrf.mxu0
    %v4666 = vadd.f32 %v4625, %v4665
    %v4667 = vpop.f32.mrf.mxu0
    %v4668 = vadd.f32 %v4627, %v4667
    %v4669 = vpop.f32.mrf.mxu0
    %v4670 = vpop.f32.mrf.mxu0
    %4671 = vdwg.mxu0
    %4672 = vmatprep.subr.bf16.mxu0 %v3555
    %4673 = vmatpush1.bf16.msra.mxu0 %v3554
    %4674 = vmatprep.subr.bf16.mxu0 %v3547
    %4675 = vmatpush1.bf16.msra.mxu0 %v3546
    %4676 = vmatprep.subr.bf16.mxu0 %v3539
    %4677 = vmatpush1.bf16.msra.mxu0 %v3538
    %4678 = vmatprep.subr.bf16.mxu0 %v3531
    %4679 = vmatpush1.bf16.msra.mxu0 %v3530
    %4680 = vmatprep.subr.bf16.mxu0 %v3523
    %4681 = vmatpush1.bf16.msra.mxu0 %v3522
    %4682 = vmatprep.subr.bf16.mxu0 %v3515
    %4683 = vmatpush1.bf16.msra.mxu0 %v3514
    %4684 = vmatprep.subr.bf16.mxu0 %v3507
    %4685 = vmatpush1.bf16.msra.mxu0 %v3506
    %4686 = vmatprep.subr.bf16.mxu0 %v3499
    %4687 = vmatpush1.bf16.msra.mxu0 %v3498
    %4688 = vmatprep.subr.bf16.mxu0 %v3619
    %4689 = vmatpush2.bf16.msra.mxu0 %v3618
    %4690 = vmatprep.subr.bf16.mxu0 %v3611
    %4691 = vmatpush2.bf16.msra.mxu0 %v3610
    %4692 = vmatprep.subr.bf16.mxu0 %v3603
    %4693 = vmatpush2.bf16.msra.mxu0 %v3602
    %4694 = vmatprep.subr.bf16.mxu0 %v3595
    %4695 = vmatpush2.bf16.msra.mxu0 %v3594
    %4696 = vmatprep.subr.bf16.mxu0 %v3587
    %4697 = vmatpush2.bf16.msra.mxu0 %v3586
    %4698 = vmatprep.subr.bf16.mxu0 %v3579
    %4699 = vmatpush2.bf16.msra.mxu0 %v3578
    %4700 = vmatprep.subr.bf16.mxu0 %v3571
    %4701 = vmatpush2.bf16.msra.mxu0 %v3570
    %4702 = vmatprep.subr.bf16.mxu0 %v3563
    %4703 = vmatpush2.bf16.msra.mxu0 %v3562
    %4704 = vmatprep.mubr.bf16.mxu0 %v1145
    %4705 = vmatmul.mubr.bf16.gmra.mxu0 %v1144
    %v4706 = vpop.f32.mrf.mxu0
    %v4707 = vadd.f32 %v4666, %v4706
    %v4708 = vpop.f32.mrf.mxu0
    %v4709 = vadd.f32 %v4668, %v4708
    %v4710 = vpop.f32.mrf.mxu0
    %v4711 = vpop.f32.mrf.mxu0
    %4712 = vdwg.mxu0
    %4713 = vmatprep.subr.bf16.mxu0 %v3683
    %4714 = vmatpush1.bf16.msra.mxu0 %v3682
    %4715 = vmatprep.subr.bf16.mxu0 %v3675
    %4716 = vmatpush1.bf16.msra.mxu0 %v3674
    %4717 = vmatprep.subr.bf16.mxu0 %v3667
    %4718 = vmatpush1.bf16.msra.mxu0 %v3666
    %4719 = vmatprep.subr.bf16.mxu0 %v3659
    %4720 = vmatpush1.bf16.msra.mxu0 %v3658
    %4721 = vmatprep.subr.bf16.mxu0 %v3651
    %4722 = vmatpush1.bf16.msra.mxu0 %v3650
    %4723 = vmatprep.subr.bf16.mxu0 %v3643
    %4724 = vmatpush1.bf16.msra.mxu0 %v3642
    %4725 = vmatprep.subr.bf16.mxu0 %v3635
    %4726 = vmatpush1.bf16.msra.mxu0 %v3634
    %4727 = vmatprep.subr.bf16.mxu0 %v3627
    %4728 = vmatpush1.bf16.msra.mxu0 %v3626
    %4729 = vmatprep.subr.bf16.mxu0 %v3747
    %4730 = vmatpush2.bf16.msra.mxu0 %v3746
    %4731 = vmatprep.subr.bf16.mxu0 %v3739
    %4732 = vmatpush2.bf16.msra.mxu0 %v3738
    %4733 = vmatprep.subr.bf16.mxu0 %v3731
    %4734 = vmatpush2.bf16.msra.mxu0 %v3730
    %4735 = vmatprep.subr.bf16.mxu0 %v3723
    %4736 = vmatpush2.bf16.msra.mxu0 %v3722
    %4737 = vmatprep.subr.bf16.mxu0 %v3715
    %4738 = vmatpush2.bf16.msra.mxu0 %v3714
    %4739 = vmatprep.subr.bf16.mxu0 %v3707
    %4740 = vmatpush2.bf16.msra.mxu0 %v3706
    %4741 = vmatprep.subr.bf16.mxu0 %v3699
    %4742 = vmatpush2.bf16.msra.mxu0 %v3698
    %4743 = vmatprep.subr.bf16.mxu0 %v3691
    %4744 = vmatpush2.bf16.msra.mxu0 %v3690
    %4745 = vmatprep.mubr.bf16.mxu0 %v1147
    %4746 = vmatmul.mubr.bf16.gmra.mxu0 %v1146
    %v4747 = vpop.f32.mrf.mxu0
    %v4748 = vadd.f32 %v4707, %v4747
    %v4749 = vpop.f32.mrf.mxu0
    %v4750 = vadd.f32 %v4709, %v4749
    %v4751 = vpop.f32.mrf.mxu0
    %v4752 = vpop.f32.mrf.mxu0
    %4753 = vdwg.mxu0
    %4754 = vmatprep.subr.bf16.mxu0 %v3301
    %4755 = vmatpush1.bf16.msra.mxu0 %v3300
    %4756 = vmatprep.subr.bf16.mxu0 %v3293
    %4757 = vmatpush1.bf16.msra.mxu0 %v3292
    %4758 = vmatprep.subr.bf16.mxu0 %v3285
    %4759 = vmatpush1.bf16.msra.mxu0 %v3284
    %4760 = vmatprep.subr.bf16.mxu0 %v3277
    %4761 = vmatpush1.bf16.msra.mxu0 %v3276
    %4762 = vmatprep.subr.bf16.mxu0 %v3269
    %4763 = vmatpush1.bf16.msra.mxu0 %v3268
    %4764 = vmatprep.subr.bf16.mxu0 %v3261
    %4765 = vmatpush1.bf16.msra.mxu0 %v3260
    %4766 = vmatprep.subr.bf16.mxu0 %v3253
    %4767 = vmatpush1.bf16.msra.mxu0 %v3252
    %4768 = vmatprep.subr.bf16.mxu0 %v3245
    %4769 = vmatpush1.bf16.msra.mxu0 %v3244
    %4770 = vmatprep.subr.bf16.mxu0 %v3365
    %4771 = vmatpush2.bf16.msra.mxu0 %v3364
    %4772 = vmatprep.subr.bf16.mxu0 %v3357
    %4773 = vmatpush2.bf16.msra.mxu0 %v3356
    %4774 = vmatprep.subr.bf16.mxu0 %v3349
    %4775 = vmatpush2.bf16.msra.mxu0 %v3348
    %4776 = vmatprep.subr.bf16.mxu0 %v3341
    %4777 = vmatpush2.bf16.msra.mxu0 %v3340
    %4778 = vmatprep.subr.bf16.mxu0 %v3333
    %4779 = vmatpush2.bf16.msra.mxu0 %v3332
    %4780 = vmatprep.subr.bf16.mxu0 %v3325
    %4781 = vmatpush2.bf16.msra.mxu0 %v3324
    %4782 = vmatprep.subr.bf16.mxu0 %v3317
    %4783 = vmatpush2.bf16.msra.mxu0 %v3316
    %4784 = vmatprep.subr.bf16.mxu0 %v3309
    %4785 = vmatpush2.bf16.msra.mxu0 %v3308
    %4786 = vmatprep.mubr.bf16.mxu0 %v1141
    %4787 = vmatmul.mubr.bf16.gmra.mxu0 %v1140
    %v4788 = vpop.f32.mrf.mxu0
    %v4789 = vadd.f32 %v1689, %v4788
    %v4790 = vpop.f32.mrf.mxu0
    %v4791 = vadd.f32 %v1693, %v4790
    %v4792 = vpop.f32.mrf.mxu0
    %v4793 = vpop.f32.mrf.mxu0
    %4794 = vdwg.mxu0
    %4795 = vmatprep.subr.bf16.mxu0 %v3429
    %4796 = vmatpush1.bf16.msra.mxu0 %v3428
    %4797 = vmatprep.subr.bf16.mxu0 %v3421
    %4798 = vmatpush1.bf16.msra.mxu0 %v3420
    %4799 = vmatprep.subr.bf16.mxu0 %v3413
    %4800 = vmatpush1.bf16.msra.mxu0 %v3412
    %4801 = vmatprep.subr.bf16.mxu0 %v3405
    %4802 = vmatpush1.bf16.msra.mxu0 %v3404
    %4803 = vmatprep.subr.bf16.mxu0 %v3397
    %4804 = vmatpush1.bf16.msra.mxu0 %v3396
    %4805 = vmatprep.subr.bf16.mxu0 %v3389
    %4806 = vmatpush1.bf16.msra.mxu0 %v3388
    %4807 = vmatprep.subr.bf16.mxu0 %v3381
    %4808 = vmatpush1.bf16.msra.mxu0 %v3380
    %4809 = vmatprep.subr.bf16.mxu0 %v3373
    %4810 = vmatpush1.bf16.msra.mxu0 %v3372
    %4811 = vmatprep.subr.bf16.mxu0 %v3493
    %4812 = vmatpush2.bf16.msra.mxu0 %v3492
    %4813 = vmatprep.subr.bf16.mxu0 %v3485
    %4814 = vmatpush2.bf16.msra.mxu0 %v3484
    %4815 = vmatprep.subr.bf16.mxu0 %v3477
    %4816 = vmatpush2.bf16.msra.mxu0 %v3476
    %4817 = vmatprep.subr.bf16.mxu0 %v3469
    %4818 = vmatpush2.bf16.msra.mxu0 %v3468
    %4819 = vmatprep.subr.bf16.mxu0 %v3461
    %4820 = vmatpush2.bf16.msra.mxu0 %v3460
    %4821 = vmatprep.subr.bf16.mxu0 %v3453
    %4822 = vmatpush2.bf16.msra.mxu0 %v3452
    %4823 = vmatprep.subr.bf16.mxu0 %v3445
    %4824 = vmatpush2.bf16.msra.mxu0 %v3444
    %4825 = vmatprep.subr.bf16.mxu0 %v3437
    %4826 = vmatpush2.bf16.msra.mxu0 %v3436
    %4827 = vmatprep.mubr.bf16.mxu0 %v1143
    %4828 = vmatmul.mubr.bf16.gmra.mxu0 %v1142
    %v4829 = vpop.f32.mrf.mxu0
    %v4830 = vadd.f32 %v4789, %v4829
    %v4831 = vpop.f32.mrf.mxu0
    %v4832 = vadd.f32 %v4791, %v4831
    %v4833 = vpop.f32.mrf.mxu0
    %v4834 = vpop.f32.mrf.mxu0
    %4835 = vdwg.mxu0
    %4836 = vmatprep.subr.bf16.mxu0 %v3557
    %4837 = vmatpush1.bf16.msra.mxu0 %v3556
    %4838 = vmatprep.subr.bf16.mxu0 %v3549
    %4839 = vmatpush1.bf16.msra.mxu0 %v3548
    %4840 = vmatprep.subr.bf16.mxu0 %v3541
    %4841 = vmatpush1.bf16.msra.mxu0 %v3540
    %4842 = vmatprep.subr.bf16.mxu0 %v3533
    %4843 = vmatpush1.bf16.msra.mxu0 %v3532
    %4844 = vmatprep.subr.bf16.mxu0 %v3525
    %4845 = vmatpush1.bf16.msra.mxu0 %v3524
    %4846 = vmatprep.subr.bf16.mxu0 %v3517
    %4847 = vmatpush1.bf16.msra.mxu0 %v3516
    %4848 = vmatprep.subr.bf16.mxu0 %v3509
    %4849 = vmatpush1.bf16.msra.mxu0 %v3508
    %4850 = vmatprep.subr.bf16.mxu0 %v3501
    %4851 = vmatpush1.bf16.msra.mxu0 %v3500
    %4852 = vmatprep.subr.bf16.mxu0 %v3621
    %4853 = vmatpush2.bf16.msra.mxu0 %v3620
    %4854 = vmatprep.subr.bf16.mxu0 %v3613
    %4855 = vmatpush2.bf16.msra.mxu0 %v3612
    %4856 = vmatprep.subr.bf16.mxu0 %v3605
    %4857 = vmatpush2.bf16.msra.mxu0 %v3604
    %4858 = vmatprep.subr.bf16.mxu0 %v3597
    %4859 = vmatpush2.bf16.msra.mxu0 %v3596
    %4860 = vmatprep.subr.bf16.mxu0 %v3589
    %4861 = vmatpush2.bf16.msra.mxu0 %v3588
    %4862 = vmatprep.subr.bf16.mxu0 %v3581
    %4863 = vmatpush2.bf16.msra.mxu0 %v3580
    %4864 = vmatprep.subr.bf16.mxu0 %v3573
    %4865 = vmatpush2.bf16.msra.mxu0 %v3572
    %4866 = vmatprep.subr.bf16.mxu0 %v3565
    %4867 = vmatpush2.bf16.msra.mxu0 %v3564
    %4868 = vmatprep.mubr.bf16.mxu0 %v1145
    %4869 = vmatmul.mubr.bf16.gmra.mxu0 %v1144
    %v4870 = vpop.f32.mrf.mxu0
    %v4871 = vadd.f32 %v4830, %v4870
    %v4872 = vpop.f32.mrf.mxu0
    %v4873 = vadd.f32 %v4832, %v4872
    %v4874 = vpop.f32.mrf.mxu0
    %v4875 = vpop.f32.mrf.mxu0
    %4876 = vdwg.mxu0
    %4877 = vmatprep.subr.bf16.mxu0 %v3685
    %4878 = vmatpush1.bf16.msra.mxu0 %v3684
    %4879 = vmatprep.subr.bf16.mxu0 %v3677
    %4880 = vmatpush1.bf16.msra.mxu0 %v3676
    %4881 = vmatprep.subr.bf16.mxu0 %v3669
    %4882 = vmatpush1.bf16.msra.mxu0 %v3668
    %4883 = vmatprep.subr.bf16.mxu0 %v3661
    %4884 = vmatpush1.bf16.msra.mxu0 %v3660
    %4885 = vmatprep.subr.bf16.mxu0 %v3653
    %4886 = vmatpush1.bf16.msra.mxu0 %v3652
    %4887 = vmatprep.subr.bf16.mxu0 %v3645
    %4888 = vmatpush1.bf16.msra.mxu0 %v3644
    %4889 = vmatprep.subr.bf16.mxu0 %v3637
    %4890 = vmatpush1.bf16.msra.mxu0 %v3636
    %4891 = vmatprep.subr.bf16.mxu0 %v3629
    %4892 = vmatpush1.bf16.msra.mxu0 %v3628
    %4893 = vmatprep.subr.bf16.mxu0 %v3749
    %4894 = vmatpush2.bf16.msra.mxu0 %v3748
    %4895 = vmatprep.subr.bf16.mxu0 %v3741
    %4896 = vmatpush2.bf16.msra.mxu0 %v3740
    %4897 = vmatprep.subr.bf16.mxu0 %v3733
    %4898 = vmatpush2.bf16.msra.mxu0 %v3732
    %4899 = vmatprep.subr.bf16.mxu0 %v3725
    %4900 = vmatpush2.bf16.msra.mxu0 %v3724
    %4901 = vmatprep.subr.bf16.mxu0 %v3717
    %4902 = vmatpush2.bf16.msra.mxu0 %v3716
    %4903 = vmatprep.subr.bf16.mxu0 %v3709
    %4904 = vmatpush2.bf16.msra.mxu0 %v3708
    %4905 = vmatprep.subr.bf16.mxu0 %v3701
    %4906 = vmatpush2.bf16.msra.mxu0 %v3700
    %4907 = vmatprep.subr.bf16.mxu0 %v3693
    %4908 = vmatpush2.bf16.msra.mxu0 %v3692
    %4909 = vmatprep.mubr.bf16.mxu0 %v1147
    %4910 = vmatmul.mubr.bf16.gmra.mxu0 %v1146
    %v4911 = vpop.f32.mrf.mxu0
    %v4912 = vadd.f32 %v4871, %v4911
    %v4913 = vpop.f32.mrf.mxu0
    %v4914 = vadd.f32 %v4873, %v4913
    %v4915 = vpop.f32.mrf.mxu0
    %v4916 = vpop.f32.mrf.mxu0
    %4917 = vdwg.mxu0
    %vm4918 = vcmp.gt.f32.partialorder %v4420, 0.0
    %vm4919 = vcmp.gt.f32.partialorder %v4422, 0.0
    %vm4920 = vcmp.gt.f32.partialorder %v4584, 0.0
    %vm4921 = vcmp.gt.f32.partialorder %v4586, 0.0
    %vm4922 = vcmp.gt.f32.partialorder %v4748, 0.0
    %vm4923 = vcmp.gt.f32.partialorder %v4750, 0.0
    %vm4924 = vcmp.gt.f32.partialorder %v4912, 0.0
    %vm4925 = vcmp.gt.f32.partialorder %v4914, 0.0
    %v4926 = vmul.f32 %v4420, 0.01
    %v4927 = vmul.f32 %v4422, 0.01
    %v4928 = vmul.f32 %v4584, 0.01
    %v4929 = vmul.f32 %v4586, 0.01
    %v4930 = vmul.f32 %v4748, 0.01
    %v4931 = vmul.f32 %v4750, 0.01
    %v4932 = vmul.f32 %v4912, 0.01
    %v4933 = vmul.f32 %v4914, 0.01
    %v4934 = vsel %vm4918, %v4420, %v4926
    %v4935 = vsel %vm4919, %v4422, %v4927
    %v4936 = vsel %vm4920, %v4584, %v4928
    %v4937 = vsel %vm4921, %v4586, %v4929
    %v4938 = vsel %vm4922, %v4748, %v4930
    %v4939 = vsel %vm4923, %v4750, %v4931
    %v4940 = vsel %vm4924, %v4912, %v4932
    %v4941 = vsel %vm4925, %v4914, %v4933
    %v4942 = vpack.c.bf16 %v4934, %v4934
    %v4943 = vpack.c.bf16 %v4935, %v4935
    %v4944 = vpack.c.bf16 %v4936, %v4936
    %v4945 = vpack.c.bf16 %v4937, %v4937
    %v4946 = vpack.c.bf16 %v4938, %v4938
    %v4947 = vpack.c.bf16 %v4939, %v4939
    %v4948 = vpack.c.bf16 %v4940, %v4940
    %v4949 = vpack.c.bf16 %v4941, %v4941
    %v4950 = vld [vmem:[#allocation9] sm:$0xff]
    %v4951 = vld [vmem:[#allocation9 + $0x8] sm:$0xff]
    %v4952 = vld [vmem:[#allocation9 + $0x10] sm:$0xff]
    %v4953 = vld [vmem:[#allocation9 + $0x18] sm:$0xff]
    %v4954 = vld [vmem:[#allocation9 + $0x20] sm:$0xff]
    %v4955 = vld [vmem:[#allocation9 + $0x28] sm:$0xff]
    %v4956 = vld [vmem:[#allocation9 + $0x30] sm:$0xff]
    %v4957 = vld [vmem:[#allocation9 + $0x38] sm:$0xff]
    %v4958 = vld [vmem:[#allocation9 + $0x40] sm:$0xff]
    %v4959 = vld [vmem:[#allocation9 + $0x48] sm:$0xff]
    %v4960 = vld [vmem:[#allocation9 + $0x50] sm:$0xff]
    %v4961 = vld [vmem:[#allocation9 + $0x58] sm:$0xff]
    %v4962 = vld [vmem:[#allocation9 + $0x60] sm:$0xff]
    %v4963 = vld [vmem:[#allocation9 + $0x68] sm:$0xff]
    %v4964 = vld [vmem:[#allocation9 + $0x70] sm:$0xff]
    %v4965 = vld [vmem:[#allocation9 + $0x78] sm:$0xff]
    %v4966 = vld [vmem:[#allocation9 + $0x80] sm:$0xff]
    %v4967 = vld [vmem:[#allocation9 + $0x88] sm:$0xff]
    %v4968 = vld [vmem:[#allocation9 + $0x90] sm:$0xff]
    %v4969 = vld [vmem:[#allocation9 + $0x98] sm:$0xff]
    %v4970 = vld [vmem:[#allocation9 + $0xa0] sm:$0xff]
    %v4971 = vld [vmem:[#allocation9 + $0xa8] sm:$0xff]
    %v4972 = vld [vmem:[#allocation9 + $0xb0] sm:$0xff]
    %v4973 = vld [vmem:[#allocation9 + $0xb8] sm:$0xff]
    %v4974 = vld [vmem:[#allocation9 + $0xc0] sm:$0xff]
    %v4975 = vld [vmem:[#allocation9 + $0xc8] sm:$0xff]
    %v4976 = vld [vmem:[#allocation9 + $0xd0] sm:$0xff]
    %v4977 = vld [vmem:[#allocation9 + $0xd8] sm:$0xff]
    %v4978 = vld [vmem:[#allocation9 + $0xe0] sm:$0xff]
    %v4979 = vld [vmem:[#allocation9 + $0xe8] sm:$0xff]
    %v4980 = vld [vmem:[#allocation9 + $0xf0] sm:$0xff]
    %v4981 = vld [vmem:[#allocation9 + $0xf8] sm:$0xff]
    %v4982 = vld [vmem:[#allocation9 + $0x100] sm:$0xff]
    %v4983 = vld [vmem:[#allocation9 + $0x108] sm:$0xff]
    %v4984 = vld [vmem:[#allocation9 + $0x110] sm:$0xff]
    %v4985 = vld [vmem:[#allocation9 + $0x118] sm:$0xff]
    %v4986 = vld [vmem:[#allocation9 + $0x120] sm:$0xff]
    %v4987 = vld [vmem:[#allocation9 + $0x128] sm:$0xff]
    %v4988 = vld [vmem:[#allocation9 + $0x130] sm:$0xff]
    %v4989 = vld [vmem:[#allocation9 + $0x138] sm:$0xff]
    %v4990 = vld [vmem:[#allocation9 + $0x140] sm:$0xff]
    %v4991 = vld [vmem:[#allocation9 + $0x148] sm:$0xff]
    %v4992 = vld [vmem:[#allocation9 + $0x150] sm:$0xff]
    %v4993 = vld [vmem:[#allocation9 + $0x158] sm:$0xff]
    %v4994 = vld [vmem:[#allocation9 + $0x160] sm:$0xff]
    %v4995 = vld [vmem:[#allocation9 + $0x168] sm:$0xff]
    %v4996 = vld [vmem:[#allocation9 + $0x170] sm:$0xff]
    %v4997 = vld [vmem:[#allocation9 + $0x178] sm:$0xff]
    %v4998 = vld [vmem:[#allocation9 + $0x180] sm:$0xff]
    %v4999 = vld [vmem:[#allocation9 + $0x188] sm:$0xff]
    %v5000 = vld [vmem:[#allocation9 + $0x190] sm:$0xff]
    %v5001 = vld [vmem:[#allocation9 + $0x198] sm:$0xff]
    %v5002 = vld [vmem:[#allocation9 + $0x1a0] sm:$0xff]
    %v5003 = vld [vmem:[#allocation9 + $0x1a8] sm:$0xff]
    %v5004 = vld [vmem:[#allocation9 + $0x1b0] sm:$0xff]
    %v5005 = vld [vmem:[#allocation9 + $0x1b8] sm:$0xff]
    %v5006 = vld [vmem:[#allocation9 + $0x1c0] sm:$0xff]
    %v5007 = vld [vmem:[#allocation9 + $0x1c8] sm:$0xff]
    %v5008 = vld [vmem:[#allocation9 + $0x1d0] sm:$0xff]
    %v5009 = vld [vmem:[#allocation9 + $0x1d8] sm:$0xff]
    %v5010 = vld [vmem:[#allocation9 + $0x1e0] sm:$0xff]
    %v5011 = vld [vmem:[#allocation9 + $0x1e8] sm:$0xff]
    %v5012 = vld [vmem:[#allocation9 + $0x1f0] sm:$0xff]
    %v5013 = vld [vmem:[#allocation9 + $0x1f8] sm:$0xff]
    %v5014 = vld [vmem:[#allocation9 + $0x200] sm:$0xff]
    %v5015 = vld [vmem:[#allocation9 + $0x208] sm:$0xff]
    %v5016 = vld [vmem:[#allocation9 + $0x210] sm:$0xff]
    %v5017 = vld [vmem:[#allocation9 + $0x218] sm:$0xff]
    %v5018 = vld [vmem:[#allocation9 + $0x220] sm:$0xff]
    %v5019 = vld [vmem:[#allocation9 + $0x228] sm:$0xff]
    %v5020 = vld [vmem:[#allocation9 + $0x230] sm:$0xff]
    %v5021 = vld [vmem:[#allocation9 + $0x238] sm:$0xff]
    %v5022 = vld [vmem:[#allocation9 + $0x240] sm:$0xff]
    %v5023 = vld [vmem:[#allocation9 + $0x248] sm:$0xff]
    %v5024 = vld [vmem:[#allocation9 + $0x250] sm:$0xff]
    %v5025 = vld [vmem:[#allocation9 + $0x258] sm:$0xff]
    %v5026 = vld [vmem:[#allocation9 + $0x260] sm:$0xff]
    %v5027 = vld [vmem:[#allocation9 + $0x268] sm:$0xff]
    %v5028 = vld [vmem:[#allocation9 + $0x270] sm:$0xff]
    %v5029 = vld [vmem:[#allocation9 + $0x278] sm:$0xff]
    %v5030 = vld [vmem:[#allocation9 + $0x280] sm:$0xff]
    %v5031 = vld [vmem:[#allocation9 + $0x288] sm:$0xff]
    %v5032 = vld [vmem:[#allocation9 + $0x290] sm:$0xff]
    %v5033 = vld [vmem:[#allocation9 + $0x298] sm:$0xff]
    %v5034 = vld [vmem:[#allocation9 + $0x2a0] sm:$0xff]
    %v5035 = vld [vmem:[#allocation9 + $0x2a8] sm:$0xff]
    %v5036 = vld [vmem:[#allocation9 + $0x2b0] sm:$0xff]
    %v5037 = vld [vmem:[#allocation9 + $0x2b8] sm:$0xff]
    %v5038 = vld [vmem:[#allocation9 + $0x2c0] sm:$0xff]
    %v5039 = vld [vmem:[#allocation9 + $0x2c8] sm:$0xff]
    %v5040 = vld [vmem:[#allocation9 + $0x2d0] sm:$0xff]
    %v5041 = vld [vmem:[#allocation9 + $0x2d8] sm:$0xff]
    %v5042 = vld [vmem:[#allocation9 + $0x2e0] sm:$0xff]
    %v5043 = vld [vmem:[#allocation9 + $0x2e8] sm:$0xff]
    %v5044 = vld [vmem:[#allocation9 + $0x2f0] sm:$0xff]
    %v5045 = vld [vmem:[#allocation9 + $0x2f8] sm:$0xff]
    %v5046 = vld [vmem:[#allocation9 + $0x300] sm:$0xff]
    %v5047 = vld [vmem:[#allocation9 + $0x308] sm:$0xff]
    %v5048 = vld [vmem:[#allocation9 + $0x310] sm:$0xff]
    %v5049 = vld [vmem:[#allocation9 + $0x318] sm:$0xff]
    %v5050 = vld [vmem:[#allocation9 + $0x320] sm:$0xff]
    %v5051 = vld [vmem:[#allocation9 + $0x328] sm:$0xff]
    %v5052 = vld [vmem:[#allocation9 + $0x330] sm:$0xff]
    %v5053 = vld [vmem:[#allocation9 + $0x338] sm:$0xff]
    %v5054 = vld [vmem:[#allocation9 + $0x340] sm:$0xff]
    %v5055 = vld [vmem:[#allocation9 + $0x348] sm:$0xff]
    %v5056 = vld [vmem:[#allocation9 + $0x350] sm:$0xff]
    %v5057 = vld [vmem:[#allocation9 + $0x358] sm:$0xff]
    %v5058 = vld [vmem:[#allocation9 + $0x360] sm:$0xff]
    %v5059 = vld [vmem:[#allocation9 + $0x368] sm:$0xff]
    %v5060 = vld [vmem:[#allocation9 + $0x370] sm:$0xff]
    %v5061 = vld [vmem:[#allocation9 + $0x378] sm:$0xff]
    %v5062 = vld [vmem:[#allocation9 + $0x380] sm:$0xff]
    %v5063 = vld [vmem:[#allocation9 + $0x388] sm:$0xff]
    %v5064 = vld [vmem:[#allocation9 + $0x390] sm:$0xff]
    %v5065 = vld [vmem:[#allocation9 + $0x398] sm:$0xff]
    %v5066 = vld [vmem:[#allocation9 + $0x3a0] sm:$0xff]
    %v5067 = vld [vmem:[#allocation9 + $0x3a8] sm:$0xff]
    %v5068 = vld [vmem:[#allocation9 + $0x3b0] sm:$0xff]
    %v5069 = vld [vmem:[#allocation9 + $0x3b8] sm:$0xff]
    %v5070 = vld [vmem:[#allocation9 + $0x3c0] sm:$0xff]
    %v5071 = vld [vmem:[#allocation9 + $0x3c8] sm:$0xff]
    %v5072 = vld [vmem:[#allocation9 + $0x3d0] sm:$0xff]
    %v5073 = vld [vmem:[#allocation9 + $0x3d8] sm:$0xff]
    %v5074 = vld [vmem:[#allocation9 + $0x3e0] sm:$0xff]
    %v5075 = vld [vmem:[#allocation9 + $0x3e8] sm:$0xff]
    %v5076 = vld [vmem:[#allocation9 + $0x3f0] sm:$0xff]
    %v5077 = vld [vmem:[#allocation9 + $0x3f8] sm:$0xff]
    %v5078 = vld [vmem:[#allocation9 + $0x400] sm:$0xff]
    %v5079 = vld [vmem:[#allocation9 + $0x408] sm:$0xff]
    %v5080 = vld [vmem:[#allocation9 + $0x410] sm:$0xff]
    %v5081 = vld [vmem:[#allocation9 + $0x418] sm:$0xff]
    %v5082 = vld [vmem:[#allocation9 + $0x420] sm:$0xff]
    %v5083 = vld [vmem:[#allocation9 + $0x428] sm:$0xff]
    %v5084 = vld [vmem:[#allocation9 + $0x430] sm:$0xff]
    %v5085 = vld [vmem:[#allocation9 + $0x438] sm:$0xff]
    %v5086 = vld [vmem:[#allocation9 + $0x440] sm:$0xff]
    %v5087 = vld [vmem:[#allocation9 + $0x448] sm:$0xff]
    %v5088 = vld [vmem:[#allocation9 + $0x450] sm:$0xff]
    %v5089 = vld [vmem:[#allocation9 + $0x458] sm:$0xff]
    %v5090 = vld [vmem:[#allocation9 + $0x460] sm:$0xff]
    %v5091 = vld [vmem:[#allocation9 + $0x468] sm:$0xff]
    %v5092 = vld [vmem:[#allocation9 + $0x470] sm:$0xff]
    %v5093 = vld [vmem:[#allocation9 + $0x478] sm:$0xff]
    %v5094 = vld [vmem:[#allocation9 + $0x480] sm:$0xff]
    %v5095 = vld [vmem:[#allocation9 + $0x488] sm:$0xff]
    %v5096 = vld [vmem:[#allocation9 + $0x490] sm:$0xff]
    %v5097 = vld [vmem:[#allocation9 + $0x498] sm:$0xff]
    %v5098 = vld [vmem:[#allocation9 + $0x4a0] sm:$0xff]
    %v5099 = vld [vmem:[#allocation9 + $0x4a8] sm:$0xff]
    %v5100 = vld [vmem:[#allocation9 + $0x4b0] sm:$0xff]
    %v5101 = vld [vmem:[#allocation9 + $0x4b8] sm:$0xff]
    %v5102 = vld [vmem:[#allocation9 + $0x4c0] sm:$0xff]
    %v5103 = vld [vmem:[#allocation9 + $0x4c8] sm:$0xff]
    %v5104 = vld [vmem:[#allocation9 + $0x4d0] sm:$0xff]
    %v5105 = vld [vmem:[#allocation9 + $0x4d8] sm:$0xff]
    %v5106 = vld [vmem:[#allocation9 + $0x4e0] sm:$0xff]
    %v5107 = vld [vmem:[#allocation9 + $0x4e8] sm:$0xff]
    %v5108 = vld [vmem:[#allocation9 + $0x4f0] sm:$0xff]
    %v5109 = vld [vmem:[#allocation9 + $0x4f8] sm:$0xff]
    %v5110 = vld [vmem:[#allocation9 + $0x500] sm:$0xff]
    %v5111 = vld [vmem:[#allocation9 + $0x508] sm:$0xff]
    %v5112 = vld [vmem:[#allocation9 + $0x510] sm:$0xff]
    %v5113 = vld [vmem:[#allocation9 + $0x518] sm:$0xff]
    %v5114 = vld [vmem:[#allocation9 + $0x520] sm:$0xff]
    %v5115 = vld [vmem:[#allocation9 + $0x528] sm:$0xff]
    %v5116 = vld [vmem:[#allocation9 + $0x530] sm:$0xff]
    %v5117 = vld [vmem:[#allocation9 + $0x538] sm:$0xff]
    %v5118 = vld [vmem:[#allocation9 + $0x540] sm:$0xff]
    %v5119 = vld [vmem:[#allocation9 + $0x548] sm:$0xff]
    %v5120 = vld [vmem:[#allocation9 + $0x550] sm:$0xff]
    %v5121 = vld [vmem:[#allocation9 + $0x558] sm:$0xff]
    %v5122 = vld [vmem:[#allocation9 + $0x560] sm:$0xff]
    %v5123 = vld [vmem:[#allocation9 + $0x568] sm:$0xff]
    %v5124 = vld [vmem:[#allocation9 + $0x570] sm:$0xff]
    %v5125 = vld [vmem:[#allocation9 + $0x578] sm:$0xff]
    %v5126 = vld [vmem:[#allocation9 + $0x580] sm:$0xff]
    %v5127 = vld [vmem:[#allocation9 + $0x588] sm:$0xff]
    %v5128 = vld [vmem:[#allocation9 + $0x590] sm:$0xff]
    %v5129 = vld [vmem:[#allocation9 + $0x598] sm:$0xff]
    %v5130 = vld [vmem:[#allocation9 + $0x5a0] sm:$0xff]
    %v5131 = vld [vmem:[#allocation9 + $0x5a8] sm:$0xff]
    %v5132 = vld [vmem:[#allocation9 + $0x5b0] sm:$0xff]
    %v5133 = vld [vmem:[#allocation9 + $0x5b8] sm:$0xff]
    %v5134 = vld [vmem:[#allocation9 + $0x5c0] sm:$0xff]
    %v5135 = vld [vmem:[#allocation9 + $0x5c8] sm:$0xff]
    %v5136 = vld [vmem:[#allocation9 + $0x5d0] sm:$0xff]
    %v5137 = vld [vmem:[#allocation9 + $0x5d8] sm:$0xff]
    %v5138 = vld [vmem:[#allocation9 + $0x5e0] sm:$0xff]
    %v5139 = vld [vmem:[#allocation9 + $0x5e8] sm:$0xff]
    %v5140 = vld [vmem:[#allocation9 + $0x5f0] sm:$0xff]
    %v5141 = vld [vmem:[#allocation9 + $0x5f8] sm:$0xff]
    %v5142 = vld [vmem:[#allocation9 + $0x600] sm:$0xff]
    %v5143 = vld [vmem:[#allocation9 + $0x608] sm:$0xff]
    %v5144 = vld [vmem:[#allocation9 + $0x610] sm:$0xff]
    %v5145 = vld [vmem:[#allocation9 + $0x618] sm:$0xff]
    %v5146 = vld [vmem:[#allocation9 + $0x620] sm:$0xff]
    %v5147 = vld [vmem:[#allocation9 + $0x628] sm:$0xff]
    %v5148 = vld [vmem:[#allocation9 + $0x630] sm:$0xff]
    %v5149 = vld [vmem:[#allocation9 + $0x638] sm:$0xff]
    %v5150 = vld [vmem:[#allocation9 + $0x640] sm:$0xff]
    %v5151 = vld [vmem:[#allocation9 + $0x648] sm:$0xff]
    %v5152 = vld [vmem:[#allocation9 + $0x650] sm:$0xff]
    %v5153 = vld [vmem:[#allocation9 + $0x658] sm:$0xff]
    %v5154 = vld [vmem:[#allocation9 + $0x660] sm:$0xff]
    %v5155 = vld [vmem:[#allocation9 + $0x668] sm:$0xff]
    %v5156 = vld [vmem:[#allocation9 + $0x670] sm:$0xff]
    %v5157 = vld [vmem:[#allocation9 + $0x678] sm:$0xff]
    %v5158 = vld [vmem:[#allocation9 + $0x680] sm:$0xff]
    %v5159 = vld [vmem:[#allocation9 + $0x688] sm:$0xff]
    %v5160 = vld [vmem:[#allocation9 + $0x690] sm:$0xff]
    %v5161 = vld [vmem:[#allocation9 + $0x698] sm:$0xff]
    %v5162 = vld [vmem:[#allocation9 + $0x6a0] sm:$0xff]
    %v5163 = vld [vmem:[#allocation9 + $0x6a8] sm:$0xff]
    %v5164 = vld [vmem:[#allocation9 + $0x6b0] sm:$0xff]
    %v5165 = vld [vmem:[#allocation9 + $0x6b8] sm:$0xff]
    %v5166 = vld [vmem:[#allocation9 + $0x6c0] sm:$0xff]
    %v5167 = vld [vmem:[#allocation9 + $0x6c8] sm:$0xff]
    %v5168 = vld [vmem:[#allocation9 + $0x6d0] sm:$0xff]
    %v5169 = vld [vmem:[#allocation9 + $0x6d8] sm:$0xff]
    %v5170 = vld [vmem:[#allocation9 + $0x6e0] sm:$0xff]
    %v5171 = vld [vmem:[#allocation9 + $0x6e8] sm:$0xff]
    %v5172 = vld [vmem:[#allocation9 + $0x6f0] sm:$0xff]
    %v5173 = vld [vmem:[#allocation9 + $0x6f8] sm:$0xff]
    %v5174 = vld [vmem:[#allocation9 + $0x700] sm:$0xff]
    %v5175 = vld [vmem:[#allocation9 + $0x708] sm:$0xff]
    %v5176 = vld [vmem:[#allocation9 + $0x710] sm:$0xff]
    %v5177 = vld [vmem:[#allocation9 + $0x718] sm:$0xff]
    %v5178 = vld [vmem:[#allocation9 + $0x720] sm:$0xff]
    %v5179 = vld [vmem:[#allocation9 + $0x728] sm:$0xff]
    %v5180 = vld [vmem:[#allocation9 + $0x730] sm:$0xff]
    %v5181 = vld [vmem:[#allocation9 + $0x738] sm:$0xff]
    %v5182 = vld [vmem:[#allocation9 + $0x740] sm:$0xff]
    %v5183 = vld [vmem:[#allocation9 + $0x748] sm:$0xff]
    %v5184 = vld [vmem:[#allocation9 + $0x750] sm:$0xff]
    %v5185 = vld [vmem:[#allocation9 + $0x758] sm:$0xff]
    %v5186 = vld [vmem:[#allocation9 + $0x760] sm:$0xff]
    %v5187 = vld [vmem:[#allocation9 + $0x768] sm:$0xff]
    %v5188 = vld [vmem:[#allocation9 + $0x770] sm:$0xff]
    %v5189 = vld [vmem:[#allocation9 + $0x778] sm:$0xff]
    %v5190 = vld [vmem:[#allocation9 + $0x780] sm:$0xff]
    %v5191 = vld [vmem:[#allocation9 + $0x788] sm:$0xff]
    %v5192 = vld [vmem:[#allocation9 + $0x790] sm:$0xff]
    %v5193 = vld [vmem:[#allocation9 + $0x798] sm:$0xff]
    %v5194 = vld [vmem:[#allocation9 + $0x7a0] sm:$0xff]
    %v5195 = vld [vmem:[#allocation9 + $0x7a8] sm:$0xff]
    %v5196 = vld [vmem:[#allocation9 + $0x7b0] sm:$0xff]
    %v5197 = vld [vmem:[#allocation9 + $0x7b8] sm:$0xff]
    %v5198 = vld [vmem:[#allocation9 + $0x7c0] sm:$0xff]
    %v5199 = vld [vmem:[#allocation9 + $0x7c8] sm:$0xff]
    %v5200 = vld [vmem:[#allocation9 + $0x7d0] sm:$0xff]
    %v5201 = vld [vmem:[#allocation9 + $0x7d8] sm:$0xff]
    %v5202 = vld [vmem:[#allocation9 + $0x7e0] sm:$0xff]
    %v5203 = vld [vmem:[#allocation9 + $0x7e8] sm:$0xff]
    %v5204 = vld [vmem:[#allocation9 + $0x7f0] sm:$0xff]
    %v5205 = vld [vmem:[#allocation9 + $0x7f8] sm:$0xff]
    %v5206 = vld [vmem:[#allocation10] sm:$0xf]
    %v5208 = vlaneseq
    %v5209 = vshrl.u32 %v5208, 7
    %v5210 = vsub.s32 0, %v5209
    %v5211 = vrot.slane %v5206, %v5210
    %v5212 = vlaneseq
    %v5213 = vshrl.u32 %v5212, 7
    %v5214 = vsub.s32 1, %v5213
    %v5215 = vrot.slane %v5206, %v5214
    %v5216 = vlaneseq
    %v5217 = vshrl.u32 %v5216, 7
    %v5218 = vsub.s32 2, %v5217
    %v5219 = vrot.slane %v5206, %v5218
    %v5220 = vlaneseq
    %v5221 = vshrl.u32 %v5220, 7
    %v5222 = vsub.s32 3, %v5221
    %v5223 = vrot.slane %v5206, %v5222
    %v5484 = vunpack.c.l.b16 %v4950
    %v5485 = vunpack.c.h.b16 %v4950
    %v5486 = vunpack.c.l.b16 %v4951
    %v5487 = vunpack.c.h.b16 %v4951
    %v5488 = vunpack.c.l.b16 %v4952
    %v5489 = vunpack.c.h.b16 %v4952
    %v5490 = vunpack.c.l.b16 %v4953
    %v5491 = vunpack.c.h.b16 %v4953
    %v5492 = vunpack.c.l.b16 %v4954
    %v5493 = vunpack.c.h.b16 %v4954
    %v5494 = vunpack.c.l.b16 %v4955
    %v5495 = vunpack.c.h.b16 %v4955
    %v5496 = vunpack.c.l.b16 %v4956
    %v5497 = vunpack.c.h.b16 %v4956
    %v5498 = vunpack.c.l.b16 %v4957
    %v5499 = vunpack.c.h.b16 %v4957
    %v5500 = vunpack.c.l.b16 %v4958
    %v5501 = vunpack.c.h.b16 %v4958
    %v5502 = vunpack.c.l.b16 %v4959
    %v5503 = vunpack.c.h.b16 %v4959
    %v5504 = vunpack.c.l.b16 %v4960
    %v5505 = vunpack.c.h.b16 %v4960
    %v5506 = vunpack.c.l.b16 %v4961
    %v5507 = vunpack.c.h.b16 %v4961
    %v5508 = vunpack.c.l.b16 %v4962
    %v5509 = vunpack.c.h.b16 %v4962
    %v5510 = vunpack.c.l.b16 %v4963
    %v5511 = vunpack.c.h.b16 %v4963
    %v5512 = vunpack.c.l.b16 %v4964
    %v5513 = vunpack.c.h.b16 %v4964
    %v5514 = vunpack.c.l.b16 %v4965
    %v5515 = vunpack.c.h.b16 %v4965
    %v5516 = vunpack.c.l.b16 %v4966
    %v5517 = vunpack.c.h.b16 %v4966
    %v5518 = vunpack.c.l.b16 %v4967
    %v5519 = vunpack.c.h.b16 %v4967
    %v5520 = vunpack.c.l.b16 %v4968
    %v5521 = vunpack.c.h.b16 %v4968
    %v5522 = vunpack.c.l.b16 %v4969
    %v5523 = vunpack.c.h.b16 %v4969
    %v5524 = vunpack.c.l.b16 %v4970
    %v5525 = vunpack.c.h.b16 %v4970
    %v5526 = vunpack.c.l.b16 %v4971
    %v5527 = vunpack.c.h.b16 %v4971
    %v5528 = vunpack.c.l.b16 %v4972
    %v5529 = vunpack.c.h.b16 %v4972
    %v5530 = vunpack.c.l.b16 %v4973
    %v5531 = vunpack.c.h.b16 %v4973
    %v5532 = vunpack.c.l.b16 %v4974
    %v5533 = vunpack.c.h.b16 %v4974
    %v5534 = vunpack.c.l.b16 %v4975
    %v5535 = vunpack.c.h.b16 %v4975
    %v5536 = vunpack.c.l.b16 %v4976
    %v5537 = vunpack.c.h.b16 %v4976
    %v5538 = vunpack.c.l.b16 %v4977
    %v5539 = vunpack.c.h.b16 %v4977
    %v5540 = vunpack.c.l.b16 %v4978
    %v5541 = vunpack.c.h.b16 %v4978
    %v5542 = vunpack.c.l.b16 %v4979
    %v5543 = vunpack.c.h.b16 %v4979
    %v5544 = vunpack.c.l.b16 %v4980
    %v5545 = vunpack.c.h.b16 %v4980
    %v5546 = vunpack.c.l.b16 %v4981
    %v5547 = vunpack.c.h.b16 %v4981
    %v5548 = vunpack.c.l.b16 %v4982
    %v5549 = vunpack.c.h.b16 %v4982
    %v5550 = vunpack.c.l.b16 %v4983
    %v5551 = vunpack.c.h.b16 %v4983
    %v5552 = vunpack.c.l.b16 %v4984
    %v5553 = vunpack.c.h.b16 %v4984
    %v5554 = vunpack.c.l.b16 %v4985
    %v5555 = vunpack.c.h.b16 %v4985
    %v5556 = vunpack.c.l.b16 %v4986
    %v5557 = vunpack.c.h.b16 %v4986
    %v5558 = vunpack.c.l.b16 %v4987
    %v5559 = vunpack.c.h.b16 %v4987
    %v5560 = vunpack.c.l.b16 %v4988
    %v5561 = vunpack.c.h.b16 %v4988
    %v5562 = vunpack.c.l.b16 %v4989
    %v5563 = vunpack.c.h.b16 %v4989
    %v5564 = vunpack.c.l.b16 %v4990
    %v5565 = vunpack.c.h.b16 %v4990
    %v5566 = vunpack.c.l.b16 %v4991
    %v5567 = vunpack.c.h.b16 %v4991
    %v5568 = vunpack.c.l.b16 %v4992
    %v5569 = vunpack.c.h.b16 %v4992
    %v5570 = vunpack.c.l.b16 %v4993
    %v5571 = vunpack.c.h.b16 %v4993
    %v5572 = vunpack.c.l.b16 %v4994
    %v5573 = vunpack.c.h.b16 %v4994
    %v5574 = vunpack.c.l.b16 %v4995
    %v5575 = vunpack.c.h.b16 %v4995
    %v5576 = vunpack.c.l.b16 %v4996
    %v5577 = vunpack.c.h.b16 %v4996
    %v5578 = vunpack.c.l.b16 %v4997
    %v5579 = vunpack.c.h.b16 %v4997
    %v5580 = vunpack.c.l.b16 %v4998
    %v5581 = vunpack.c.h.b16 %v4998
    %v5582 = vunpack.c.l.b16 %v4999
    %v5583 = vunpack.c.h.b16 %v4999
    %v5584 = vunpack.c.l.b16 %v5000
    %v5585 = vunpack.c.h.b16 %v5000
    %v5586 = vunpack.c.l.b16 %v5001
    %v5587 = vunpack.c.h.b16 %v5001
    %v5588 = vunpack.c.l.b16 %v5002
    %v5589 = vunpack.c.h.b16 %v5002
    %v5590 = vunpack.c.l.b16 %v5003
    %v5591 = vunpack.c.h.b16 %v5003
    %v5592 = vunpack.c.l.b16 %v5004
    %v5593 = vunpack.c.h.b16 %v5004
    %v5594 = vunpack.c.l.b16 %v5005
    %v5595 = vunpack.c.h.b16 %v5005
    %v5596 = vunpack.c.l.b16 %v5006
    %v5597 = vunpack.c.h.b16 %v5006
    %v5598 = vunpack.c.l.b16 %v5007
    %v5599 = vunpack.c.h.b16 %v5007
    %v5600 = vunpack.c.l.b16 %v5008
    %v5601 = vunpack.c.h.b16 %v5008
    %v5602 = vunpack.c.l.b16 %v5009
    %v5603 = vunpack.c.h.b16 %v5009
    %v5604 = vunpack.c.l.b16 %v5010
    %v5605 = vunpack.c.h.b16 %v5010
    %v5606 = vunpack.c.l.b16 %v5011
    %v5607 = vunpack.c.h.b16 %v5011
    %v5608 = vunpack.c.l.b16 %v5012
    %v5609 = vunpack.c.h.b16 %v5012
    %v5610 = vunpack.c.l.b16 %v5013
    %v5611 = vunpack.c.h.b16 %v5013
    %v5612 = vunpack.c.l.b16 %v5014
    %v5613 = vunpack.c.h.b16 %v5014
    %v5614 = vunpack.c.l.b16 %v5015
    %v5615 = vunpack.c.h.b16 %v5015
    %v5616 = vunpack.c.l.b16 %v5016
    %v5617 = vunpack.c.h.b16 %v5016
    %v5618 = vunpack.c.l.b16 %v5017
    %v5619 = vunpack.c.h.b16 %v5017
    %v5620 = vunpack.c.l.b16 %v5018
    %v5621 = vunpack.c.h.b16 %v5018
    %v5622 = vunpack.c.l.b16 %v5019
    %v5623 = vunpack.c.h.b16 %v5019
    %v5624 = vunpack.c.l.b16 %v5020
    %v5625 = vunpack.c.h.b16 %v5020
    %v5626 = vunpack.c.l.b16 %v5021
    %v5627 = vunpack.c.h.b16 %v5021
    %v5628 = vunpack.c.l.b16 %v5022
    %v5629 = vunpack.c.h.b16 %v5022
    %v5630 = vunpack.c.l.b16 %v5023
    %v5631 = vunpack.c.h.b16 %v5023
    %v5632 = vunpack.c.l.b16 %v5024
    %v5633 = vunpack.c.h.b16 %v5024
    %v5634 = vunpack.c.l.b16 %v5025
    %v5635 = vunpack.c.h.b16 %v5025
    %v5636 = vunpack.c.l.b16 %v5026
    %v5637 = vunpack.c.h.b16 %v5026
    %v5638 = vunpack.c.l.b16 %v5027
    %v5639 = vunpack.c.h.b16 %v5027
    %v5640 = vunpack.c.l.b16 %v5028
    %v5641 = vunpack.c.h.b16 %v5028
    %v5642 = vunpack.c.l.b16 %v5029
    %v5643 = vunpack.c.h.b16 %v5029
    %v5644 = vunpack.c.l.b16 %v5030
    %v5645 = vunpack.c.h.b16 %v5030
    %v5646 = vunpack.c.l.b16 %v5031
    %v5647 = vunpack.c.h.b16 %v5031
    %v5648 = vunpack.c.l.b16 %v5032
    %v5649 = vunpack.c.h.b16 %v5032
    %v5650 = vunpack.c.l.b16 %v5033
    %v5651 = vunpack.c.h.b16 %v5033
    %v5652 = vunpack.c.l.b16 %v5034
    %v5653 = vunpack.c.h.b16 %v5034
    %v5654 = vunpack.c.l.b16 %v5035
    %v5655 = vunpack.c.h.b16 %v5035
    %v5656 = vunpack.c.l.b16 %v5036
    %v5657 = vunpack.c.h.b16 %v5036
    %v5658 = vunpack.c.l.b16 %v5037
    %v5659 = vunpack.c.h.b16 %v5037
    %v5660 = vunpack.c.l.b16 %v5038
    %v5661 = vunpack.c.h.b16 %v5038
    %v5662 = vunpack.c.l.b16 %v5039
    %v5663 = vunpack.c.h.b16 %v5039
    %v5664 = vunpack.c.l.b16 %v5040
    %v5665 = vunpack.c.h.b16 %v5040
    %v5666 = vunpack.c.l.b16 %v5041
    %v5667 = vunpack.c.h.b16 %v5041
    %v5668 = vunpack.c.l.b16 %v5042
    %v5669 = vunpack.c.h.b16 %v5042
    %v5670 = vunpack.c.l.b16 %v5043
    %v5671 = vunpack.c.h.b16 %v5043
    %v5672 = vunpack.c.l.b16 %v5044
    %v5673 = vunpack.c.h.b16 %v5044
    %v5674 = vunpack.c.l.b16 %v5045
    %v5675 = vunpack.c.h.b16 %v5045
    %v5676 = vunpack.c.l.b16 %v5046
    %v5677 = vunpack.c.h.b16 %v5046
    %v5678 = vunpack.c.l.b16 %v5047
    %v5679 = vunpack.c.h.b16 %v5047
    %v5680 = vunpack.c.l.b16 %v5048
    %v5681 = vunpack.c.h.b16 %v5048
    %v5682 = vunpack.c.l.b16 %v5049
    %v5683 = vunpack.c.h.b16 %v5049
    %v5684 = vunpack.c.l.b16 %v5050
    %v5685 = vunpack.c.h.b16 %v5050
    %v5686 = vunpack.c.l.b16 %v5051
    %v5687 = vunpack.c.h.b16 %v5051
    %v5688 = vunpack.c.l.b16 %v5052
    %v5689 = vunpack.c.h.b16 %v5052
    %v5690 = vunpack.c.l.b16 %v5053
    %v5691 = vunpack.c.h.b16 %v5053
    %v5692 = vunpack.c.l.b16 %v5054
    %v5693 = vunpack.c.h.b16 %v5054
    %v5694 = vunpack.c.l.b16 %v5055
    %v5695 = vunpack.c.h.b16 %v5055
    %v5696 = vunpack.c.l.b16 %v5056
    %v5697 = vunpack.c.h.b16 %v5056
    %v5698 = vunpack.c.l.b16 %v5057
    %v5699 = vunpack.c.h.b16 %v5057
    %v5700 = vunpack.c.l.b16 %v5058
    %v5701 = vunpack.c.h.b16 %v5058
    %v5702 = vunpack.c.l.b16 %v5059
    %v5703 = vunpack.c.h.b16 %v5059
    %v5704 = vunpack.c.l.b16 %v5060
    %v5705 = vunpack.c.h.b16 %v5060
    %v5706 = vunpack.c.l.b16 %v5061
    %v5707 = vunpack.c.h.b16 %v5061
    %v5708 = vunpack.c.l.b16 %v5062
    %v5709 = vunpack.c.h.b16 %v5062
    %v5710 = vunpack.c.l.b16 %v5063
    %v5711 = vunpack.c.h.b16 %v5063
    %v5712 = vunpack.c.l.b16 %v5064
    %v5713 = vunpack.c.h.b16 %v5064
    %v5714 = vunpack.c.l.b16 %v5065
    %v5715 = vunpack.c.h.b16 %v5065
    %v5716 = vunpack.c.l.b16 %v5066
    %v5717 = vunpack.c.h.b16 %v5066
    %v5718 = vunpack.c.l.b16 %v5067
    %v5719 = vunpack.c.h.b16 %v5067
    %v5720 = vunpack.c.l.b16 %v5068
    %v5721 = vunpack.c.h.b16 %v5068
    %v5722 = vunpack.c.l.b16 %v5069
    %v5723 = vunpack.c.h.b16 %v5069
    %v5724 = vunpack.c.l.b16 %v5070
    %v5725 = vunpack.c.h.b16 %v5070
    %v5726 = vunpack.c.l.b16 %v5071
    %v5727 = vunpack.c.h.b16 %v5071
    %v5728 = vunpack.c.l.b16 %v5072
    %v5729 = vunpack.c.h.b16 %v5072
    %v5730 = vunpack.c.l.b16 %v5073
    %v5731 = vunpack.c.h.b16 %v5073
    %v5732 = vunpack.c.l.b16 %v5074
    %v5733 = vunpack.c.h.b16 %v5074
    %v5734 = vunpack.c.l.b16 %v5075
    %v5735 = vunpack.c.h.b16 %v5075
    %v5736 = vunpack.c.l.b16 %v5076
    %v5737 = vunpack.c.h.b16 %v5076
    %v5738 = vunpack.c.l.b16 %v5077
    %v5739 = vunpack.c.h.b16 %v5077
    %v5740 = vunpack.c.l.b16 %v5078
    %v5741 = vunpack.c.h.b16 %v5078
    %v5742 = vunpack.c.l.b16 %v5079
    %v5743 = vunpack.c.h.b16 %v5079
    %v5744 = vunpack.c.l.b16 %v5080
    %v5745 = vunpack.c.h.b16 %v5080
    %v5746 = vunpack.c.l.b16 %v5081
    %v5747 = vunpack.c.h.b16 %v5081
    %v5748 = vunpack.c.l.b16 %v5082
    %v5749 = vunpack.c.h.b16 %v5082
    %v5750 = vunpack.c.l.b16 %v5083
    %v5751 = vunpack.c.h.b16 %v5083
    %v5752 = vunpack.c.l.b16 %v5084
    %v5753 = vunpack.c.h.b16 %v5084
    %v5754 = vunpack.c.l.b16 %v5085
    %v5755 = vunpack.c.h.b16 %v5085
    %v5756 = vunpack.c.l.b16 %v5086
    %v5757 = vunpack.c.h.b16 %v5086
    %v5758 = vunpack.c.l.b16 %v5087
    %v5759 = vunpack.c.h.b16 %v5087
    %v5760 = vunpack.c.l.b16 %v5088
    %v5761 = vunpack.c.h.b16 %v5088
    %v5762 = vunpack.c.l.b16 %v5089
    %v5763 = vunpack.c.h.b16 %v5089
    %v5764 = vunpack.c.l.b16 %v5090
    %v5765 = vunpack.c.h.b16 %v5090
    %v5766 = vunpack.c.l.b16 %v5091
    %v5767 = vunpack.c.h.b16 %v5091
    %v5768 = vunpack.c.l.b16 %v5092
    %v5769 = vunpack.c.h.b16 %v5092
    %v5770 = vunpack.c.l.b16 %v5093
    %v5771 = vunpack.c.h.b16 %v5093
    %v5772 = vunpack.c.l.b16 %v5094
    %v5773 = vunpack.c.h.b16 %v5094
    %v5774 = vunpack.c.l.b16 %v5095
    %v5775 = vunpack.c.h.b16 %v5095
    %v5776 = vunpack.c.l.b16 %v5096
    %v5777 = vunpack.c.h.b16 %v5096
    %v5778 = vunpack.c.l.b16 %v5097
    %v5779 = vunpack.c.h.b16 %v5097
    %v5780 = vunpack.c.l.b16 %v5098
    %v5781 = vunpack.c.h.b16 %v5098
    %v5782 = vunpack.c.l.b16 %v5099
    %v5783 = vunpack.c.h.b16 %v5099
    %v5784 = vunpack.c.l.b16 %v5100
    %v5785 = vunpack.c.h.b16 %v5100
    %v5786 = vunpack.c.l.b16 %v5101
    %v5787 = vunpack.c.h.b16 %v5101
    %v5788 = vunpack.c.l.b16 %v5102
    %v5789 = vunpack.c.h.b16 %v5102
    %v5790 = vunpack.c.l.b16 %v5103
    %v5791 = vunpack.c.h.b16 %v5103
    %v5792 = vunpack.c.l.b16 %v5104
    %v5793 = vunpack.c.h.b16 %v5104
    %v5794 = vunpack.c.l.b16 %v5105
    %v5795 = vunpack.c.h.b16 %v5105
    %v5796 = vunpack.c.l.b16 %v5106
    %v5797 = vunpack.c.h.b16 %v5106
    %v5798 = vunpack.c.l.b16 %v5107
    %v5799 = vunpack.c.h.b16 %v5107
    %v5800 = vunpack.c.l.b16 %v5108
    %v5801 = vunpack.c.h.b16 %v5108
    %v5802 = vunpack.c.l.b16 %v5109
    %v5803 = vunpack.c.h.b16 %v5109
    %v5804 = vunpack.c.l.b16 %v5110
    %v5805 = vunpack.c.h.b16 %v5110
    %v5806 = vunpack.c.l.b16 %v5111
    %v5807 = vunpack.c.h.b16 %v5111
    %v5808 = vunpack.c.l.b16 %v5112
    %v5809 = vunpack.c.h.b16 %v5112
    %v5810 = vunpack.c.l.b16 %v5113
    %v5811 = vunpack.c.h.b16 %v5113
    %v5812 = vunpack.c.l.b16 %v5114
    %v5813 = vunpack.c.h.b16 %v5114
    %v5814 = vunpack.c.l.b16 %v5115
    %v5815 = vunpack.c.h.b16 %v5115
    %v5816 = vunpack.c.l.b16 %v5116
    %v5817 = vunpack.c.h.b16 %v5116
    %v5818 = vunpack.c.l.b16 %v5117
    %v5819 = vunpack.c.h.b16 %v5117
    %v5820 = vunpack.c.l.b16 %v5118
    %v5821 = vunpack.c.h.b16 %v5118
    %v5822 = vunpack.c.l.b16 %v5119
    %v5823 = vunpack.c.h.b16 %v5119
    %v5824 = vunpack.c.l.b16 %v5120
    %v5825 = vunpack.c.h.b16 %v5120
    %v5826 = vunpack.c.l.b16 %v5121
    %v5827 = vunpack.c.h.b16 %v5121
    %v5828 = vunpack.c.l.b16 %v5122
    %v5829 = vunpack.c.h.b16 %v5122
    %v5830 = vunpack.c.l.b16 %v5123
    %v5831 = vunpack.c.h.b16 %v5123
    %v5832 = vunpack.c.l.b16 %v5124
    %v5833 = vunpack.c.h.b16 %v5124
    %v5834 = vunpack.c.l.b16 %v5125
    %v5835 = vunpack.c.h.b16 %v5125
    %v5836 = vunpack.c.l.b16 %v5126
    %v5837 = vunpack.c.h.b16 %v5126
    %v5838 = vunpack.c.l.b16 %v5127
    %v5839 = vunpack.c.h.b16 %v5127
    %v5840 = vunpack.c.l.b16 %v5128
    %v5841 = vunpack.c.h.b16 %v5128
    %v5842 = vunpack.c.l.b16 %v5129
    %v5843 = vunpack.c.h.b16 %v5129
    %v5844 = vunpack.c.l.b16 %v5130
    %v5845 = vunpack.c.h.b16 %v5130
    %v5846 = vunpack.c.l.b16 %v5131
    %v5847 = vunpack.c.h.b16 %v5131
    %v5848 = vunpack.c.l.b16 %v5132
    %v5849 = vunpack.c.h.b16 %v5132
    %v5850 = vunpack.c.l.b16 %v5133
    %v5851 = vunpack.c.h.b16 %v5133
    %v5852 = vunpack.c.l.b16 %v5134
    %v5853 = vunpack.c.h.b16 %v5134
    %v5854 = vunpack.c.l.b16 %v5135
    %v5855 = vunpack.c.h.b16 %v5135
    %v5856 = vunpack.c.l.b16 %v5136
    %v5857 = vunpack.c.h.b16 %v5136
    %v5858 = vunpack.c.l.b16 %v5137
    %v5859 = vunpack.c.h.b16 %v5137
    %v5860 = vunpack.c.l.b16 %v5138
    %v5861 = vunpack.c.h.b16 %v5138
    %v5862 = vunpack.c.l.b16 %v5139
    %v5863 = vunpack.c.h.b16 %v5139
    %v5864 = vunpack.c.l.b16 %v5140
    %v5865 = vunpack.c.h.b16 %v5140
    %v5866 = vunpack.c.l.b16 %v5141
    %v5867 = vunpack.c.h.b16 %v5141
    %v5868 = vunpack.c.l.b16 %v5142
    %v5869 = vunpack.c.h.b16 %v5142
    %v5870 = vunpack.c.l.b16 %v5143
    %v5871 = vunpack.c.h.b16 %v5143
    %v5872 = vunpack.c.l.b16 %v5144
    %v5873 = vunpack.c.h.b16 %v5144
    %v5874 = vunpack.c.l.b16 %v5145
    %v5875 = vunpack.c.h.b16 %v5145
    %v5876 = vunpack.c.l.b16 %v5146
    %v5877 = vunpack.c.h.b16 %v5146
    %v5878 = vunpack.c.l.b16 %v5147
    %v5879 = vunpack.c.h.b16 %v5147
    %v5880 = vunpack.c.l.b16 %v5148
    %v5881 = vunpack.c.h.b16 %v5148
    %v5882 = vunpack.c.l.b16 %v5149
    %v5883 = vunpack.c.h.b16 %v5149
    %v5884 = vunpack.c.l.b16 %v5150
    %v5885 = vunpack.c.h.b16 %v5150
    %v5886 = vunpack.c.l.b16 %v5151
    %v5887 = vunpack.c.h.b16 %v5151
    %v5888 = vunpack.c.l.b16 %v5152
    %v5889 = vunpack.c.h.b16 %v5152
    %v5890 = vunpack.c.l.b16 %v5153
    %v5891 = vunpack.c.h.b16 %v5153
    %v5892 = vunpack.c.l.b16 %v5154
    %v5893 = vunpack.c.h.b16 %v5154
    %v5894 = vunpack.c.l.b16 %v5155
    %v5895 = vunpack.c.h.b16 %v5155
    %v5896 = vunpack.c.l.b16 %v5156
    %v5897 = vunpack.c.h.b16 %v5156
    %v5898 = vunpack.c.l.b16 %v5157
    %v5899 = vunpack.c.h.b16 %v5157
    %v5900 = vunpack.c.l.b16 %v5158
    %v5901 = vunpack.c.h.b16 %v5158
    %v5902 = vunpack.c.l.b16 %v5159
    %v5903 = vunpack.c.h.b16 %v5159
    %v5904 = vunpack.c.l.b16 %v5160
    %v5905 = vunpack.c.h.b16 %v5160
    %v5906 = vunpack.c.l.b16 %v5161
    %v5907 = vunpack.c.h.b16 %v5161
    %v5908 = vunpack.c.l.b16 %v5162
    %v5909 = vunpack.c.h.b16 %v5162
    %v5910 = vunpack.c.l.b16 %v5163
    %v5911 = vunpack.c.h.b16 %v5163
    %v5912 = vunpack.c.l.b16 %v5164
    %v5913 = vunpack.c.h.b16 %v5164
    %v5914 = vunpack.c.l.b16 %v5165
    %v5915 = vunpack.c.h.b16 %v5165
    %v5916 = vunpack.c.l.b16 %v5166
    %v5917 = vunpack.c.h.b16 %v5166
    %v5918 = vunpack.c.l.b16 %v5167
    %v5919 = vunpack.c.h.b16 %v5167
    %v5920 = vunpack.c.l.b16 %v5168
    %v5921 = vunpack.c.h.b16 %v5168
    %v5922 = vunpack.c.l.b16 %v5169
    %v5923 = vunpack.c.h.b16 %v5169
    %v5924 = vunpack.c.l.b16 %v5170
    %v5925 = vunpack.c.h.b16 %v5170
    %v5926 = vunpack.c.l.b16 %v5171
    %v5927 = vunpack.c.h.b16 %v5171
    %v5928 = vunpack.c.l.b16 %v5172
    %v5929 = vunpack.c.h.b16 %v5172
    %v5930 = vunpack.c.l.b16 %v5173
    %v5931 = vunpack.c.h.b16 %v5173
    %v5932 = vunpack.c.l.b16 %v5174
    %v5933 = vunpack.c.h.b16 %v5174
    %v5934 = vunpack.c.l.b16 %v5175
    %v5935 = vunpack.c.h.b16 %v5175
    %v5936 = vunpack.c.l.b16 %v5176
    %v5937 = vunpack.c.h.b16 %v5176
    %v5938 = vunpack.c.l.b16 %v5177
    %v5939 = vunpack.c.h.b16 %v5177
    %v5940 = vunpack.c.l.b16 %v5178
    %v5941 = vunpack.c.h.b16 %v5178
    %v5942 = vunpack.c.l.b16 %v5179
    %v5943 = vunpack.c.h.b16 %v5179
    %v5944 = vunpack.c.l.b16 %v5180
    %v5945 = vunpack.c.h.b16 %v5180
    %v5946 = vunpack.c.l.b16 %v5181
    %v5947 = vunpack.c.h.b16 %v5181
    %v5948 = vunpack.c.l.b16 %v5182
    %v5949 = vunpack.c.h.b16 %v5182
    %v5950 = vunpack.c.l.b16 %v5183
    %v5951 = vunpack.c.h.b16 %v5183
    %v5952 = vunpack.c.l.b16 %v5184
    %v5953 = vunpack.c.h.b16 %v5184
    %v5954 = vunpack.c.l.b16 %v5185
    %v5955 = vunpack.c.h.b16 %v5185
    %v5956 = vunpack.c.l.b16 %v5186
    %v5957 = vunpack.c.h.b16 %v5186
    %v5958 = vunpack.c.l.b16 %v5187
    %v5959 = vunpack.c.h.b16 %v5187
    %v5960 = vunpack.c.l.b16 %v5188
    %v5961 = vunpack.c.h.b16 %v5188
    %v5962 = vunpack.c.l.b16 %v5189
    %v5963 = vunpack.c.h.b16 %v5189
    %v5964 = vunpack.c.l.b16 %v5190
    %v5965 = vunpack.c.h.b16 %v5190
    %v5966 = vunpack.c.l.b16 %v5191
    %v5967 = vunpack.c.h.b16 %v5191
    %v5968 = vunpack.c.l.b16 %v5192
    %v5969 = vunpack.c.h.b16 %v5192
    %v5970 = vunpack.c.l.b16 %v5193
    %v5971 = vunpack.c.h.b16 %v5193
    %v5972 = vunpack.c.l.b16 %v5194
    %v5973 = vunpack.c.h.b16 %v5194
    %v5974 = vunpack.c.l.b16 %v5195
    %v5975 = vunpack.c.h.b16 %v5195
    %v5976 = vunpack.c.l.b16 %v5196
    %v5977 = vunpack.c.h.b16 %v5196
    %v5978 = vunpack.c.l.b16 %v5197
    %v5979 = vunpack.c.h.b16 %v5197
    %v5980 = vunpack.c.l.b16 %v5198
    %v5981 = vunpack.c.h.b16 %v5198
    %v5982 = vunpack.c.l.b16 %v5199
    %v5983 = vunpack.c.h.b16 %v5199
    %v5984 = vunpack.c.l.b16 %v5200
    %v5985 = vunpack.c.h.b16 %v5200
    %v5986 = vunpack.c.l.b16 %v5201
    %v5987 = vunpack.c.h.b16 %v5201
    %v5988 = vunpack.c.l.b16 %v5202
    %v5989 = vunpack.c.h.b16 %v5202
    %v5990 = vunpack.c.l.b16 %v5203
    %v5991 = vunpack.c.h.b16 %v5203
    %v5992 = vunpack.c.l.b16 %v5204
    %v5993 = vunpack.c.h.b16 %v5204
    %v5994 = vunpack.c.l.b16 %v5205
    %v5995 = vunpack.c.h.b16 %v5205
    %v5996 = vpack.c.b16 %v5488, %v5484
    %v5997 = vpack.c.b16 %v5489, %v5485
    %v5998 = vpack.c.b16 %v5490, %v5486
    %v5999 = vpack.c.b16 %v5491, %v5487
    %v6000 = vpack.c.b16 %v5496, %v5492
    %v6001 = vpack.c.b16 %v5497, %v5493
    %v6002 = vpack.c.b16 %v5498, %v5494
    %v6003 = vpack.c.b16 %v5499, %v5495
    %v6004 = vpack.c.b16 %v5504, %v5500
    %v6005 = vpack.c.b16 %v5505, %v5501
    %v6006 = vpack.c.b16 %v5506, %v5502
    %v6007 = vpack.c.b16 %v5507, %v5503
    %v6008 = vpack.c.b16 %v5512, %v5508
    %v6009 = vpack.c.b16 %v5513, %v5509
    %v6010 = vpack.c.b16 %v5514, %v5510
    %v6011 = vpack.c.b16 %v5515, %v5511
    %v6012 = vpack.c.b16 %v5520, %v5516
    %v6013 = vpack.c.b16 %v5521, %v5517
    %v6014 = vpack.c.b16 %v5522, %v5518
    %v6015 = vpack.c.b16 %v5523, %v5519
    %v6016 = vpack.c.b16 %v5528, %v5524
    %v6017 = vpack.c.b16 %v5529, %v5525
    %v6018 = vpack.c.b16 %v5530, %v5526
    %v6019 = vpack.c.b16 %v5531, %v5527
    %v6020 = vpack.c.b16 %v5536, %v5532
    %v6021 = vpack.c.b16 %v5537, %v5533
    %v6022 = vpack.c.b16 %v5538, %v5534
    %v6023 = vpack.c.b16 %v5539, %v5535
    %v6024 = vpack.c.b16 %v5544, %v5540
    %v6025 = vpack.c.b16 %v5545, %v5541
    %v6026 = vpack.c.b16 %v5546, %v5542
    %v6027 = vpack.c.b16 %v5547, %v5543
    %v6028 = vpack.c.b16 %v5552, %v5548
    %v6029 = vpack.c.b16 %v5553, %v5549
    %v6030 = vpack.c.b16 %v5554, %v5550
    %v6031 = vpack.c.b16 %v5555, %v5551
    %v6032 = vpack.c.b16 %v5560, %v5556
    %v6033 = vpack.c.b16 %v5561, %v5557
    %v6034 = vpack.c.b16 %v5562, %v5558
    %v6035 = vpack.c.b16 %v5563, %v5559
    %v6036 = vpack.c.b16 %v5568, %v5564
    %v6037 = vpack.c.b16 %v5569, %v5565
    %v6038 = vpack.c.b16 %v5570, %v5566
    %v6039 = vpack.c.b16 %v5571, %v5567
    %v6040 = vpack.c.b16 %v5576, %v5572
    %v6041 = vpack.c.b16 %v5577, %v5573
    %v6042 = vpack.c.b16 %v5578, %v5574
    %v6043 = vpack.c.b16 %v5579, %v5575
    %v6044 = vpack.c.b16 %v5584, %v5580
    %v6045 = vpack.c.b16 %v5585, %v5581
    %v6046 = vpack.c.b16 %v5586, %v5582
    %v6047 = vpack.c.b16 %v5587, %v5583
    %v6048 = vpack.c.b16 %v5592, %v5588
    %v6049 = vpack.c.b16 %v5593, %v5589
    %v6050 = vpack.c.b16 %v5594, %v5590
    %v6051 = vpack.c.b16 %v5595, %v5591
    %v6052 = vpack.c.b16 %v5600, %v5596
    %v6053 = vpack.c.b16 %v5601, %v5597
    %v6054 = vpack.c.b16 %v5602, %v5598
    %v6055 = vpack.c.b16 %v5603, %v5599
    %v6056 = vpack.c.b16 %v5608, %v5604
    %v6057 = vpack.c.b16 %v5609, %v5605
    %v6058 = vpack.c.b16 %v5610, %v5606
    %v6059 = vpack.c.b16 %v5611, %v5607
    %v6060 = vpack.c.b16 %v5616, %v5612
    %v6061 = vpack.c.b16 %v5617, %v5613
    %v6062 = vpack.c.b16 %v5618, %v5614
    %v6063 = vpack.c.b16 %v5619, %v5615
    %v6064 = vpack.c.b16 %v5624, %v5620
    %v6065 = vpack.c.b16 %v5625, %v5621
    %v6066 = vpack.c.b16 %v5626, %v5622
    %v6067 = vpack.c.b16 %v5627, %v5623
    %v6068 = vpack.c.b16 %v5632, %v5628
    %v6069 = vpack.c.b16 %v5633, %v5629
    %v6070 = vpack.c.b16 %v5634, %v5630
    %v6071 = vpack.c.b16 %v5635, %v5631
    %v6072 = vpack.c.b16 %v5640, %v5636
    %v6073 = vpack.c.b16 %v5641, %v5637
    %v6074 = vpack.c.b16 %v5642, %v5638
    %v6075 = vpack.c.b16 %v5643, %v5639
    %v6076 = vpack.c.b16 %v5648, %v5644
    %v6077 = vpack.c.b16 %v5649, %v5645
    %v6078 = vpack.c.b16 %v5650, %v5646
    %v6079 = vpack.c.b16 %v5651, %v5647
    %v6080 = vpack.c.b16 %v5656, %v5652
    %v6081 = vpack.c.b16 %v5657, %v5653
    %v6082 = vpack.c.b16 %v5658, %v5654
    %v6083 = vpack.c.b16 %v5659, %v5655
    %v6084 = vpack.c.b16 %v5664, %v5660
    %v6085 = vpack.c.b16 %v5665, %v5661
    %v6086 = vpack.c.b16 %v5666, %v5662
    %v6087 = vpack.c.b16 %v5667, %v5663
    %v6088 = vpack.c.b16 %v5672, %v5668
    %v6089 = vpack.c.b16 %v5673, %v5669
    %v6090 = vpack.c.b16 %v5674, %v5670
    %v6091 = vpack.c.b16 %v5675, %v5671
    %v6092 = vpack.c.b16 %v5680, %v5676
    %v6093 = vpack.c.b16 %v5681, %v5677
    %v6094 = vpack.c.b16 %v5682, %v5678
    %v6095 = vpack.c.b16 %v5683, %v5679
    %v6096 = vpack.c.b16 %v5688, %v5684
    %v6097 = vpack.c.b16 %v5689, %v5685
    %v6098 = vpack.c.b16 %v5690, %v5686
    %v6099 = vpack.c.b16 %v5691, %v5687
    %v6100 = vpack.c.b16 %v5696, %v5692
    %v6101 = vpack.c.b16 %v5697, %v5693
    %v6102 = vpack.c.b16 %v5698, %v5694
    %v6103 = vpack.c.b16 %v5699, %v5695
    %v6104 = vpack.c.b16 %v5704, %v5700
    %v6105 = vpack.c.b16 %v5705, %v5701
    %v6106 = vpack.c.b16 %v5706, %v5702
    %v6107 = vpack.c.b16 %v5707, %v5703
    %v6108 = vpack.c.b16 %v5712, %v5708
    %v6109 = vpack.c.b16 %v5713, %v5709
    %v6110 = vpack.c.b16 %v5714, %v5710
    %v6111 = vpack.c.b16 %v5715, %v5711
    %v6112 = vpack.c.b16 %v5720, %v5716
    %v6113 = vpack.c.b16 %v5721, %v5717
    %v6114 = vpack.c.b16 %v5722, %v5718
    %v6115 = vpack.c.b16 %v5723, %v5719
    %v6116 = vpack.c.b16 %v5728, %v5724
    %v6117 = vpack.c.b16 %v5729, %v5725
    %v6118 = vpack.c.b16 %v5730, %v5726
    %v6119 = vpack.c.b16 %v5731, %v5727
    %v6120 = vpack.c.b16 %v5736, %v5732
    %v6121 = vpack.c.b16 %v5737, %v5733
    %v6122 = vpack.c.b16 %v5738, %v5734
    %v6123 = vpack.c.b16 %v5739, %v5735
    %v6124 = vpack.c.b16 %v5744, %v5740
    %v6125 = vpack.c.b16 %v5745, %v5741
    %v6126 = vpack.c.b16 %v5746, %v5742
    %v6127 = vpack.c.b16 %v5747, %v5743
    %v6128 = vpack.c.b16 %v5752, %v5748
    %v6129 = vpack.c.b16 %v5753, %v5749
    %v6130 = vpack.c.b16 %v5754, %v5750
    %v6131 = vpack.c.b16 %v5755, %v5751
    %v6132 = vpack.c.b16 %v5760, %v5756
    %v6133 = vpack.c.b16 %v5761, %v5757
    %v6134 = vpack.c.b16 %v5762, %v5758
    %v6135 = vpack.c.b16 %v5763, %v5759
    %v6136 = vpack.c.b16 %v5768, %v5764
    %v6137 = vpack.c.b16 %v5769, %v5765
    %v6138 = vpack.c.b16 %v5770, %v5766
    %v6139 = vpack.c.b16 %v5771, %v5767
    %v6140 = vpack.c.b16 %v5776, %v5772
    %v6141 = vpack.c.b16 %v5777, %v5773
    %v6142 = vpack.c.b16 %v5778, %v5774
    %v6143 = vpack.c.b16 %v5779, %v5775
    %v6144 = vpack.c.b16 %v5784, %v5780
    %v6145 = vpack.c.b16 %v5785, %v5781
    %v6146 = vpack.c.b16 %v5786, %v5782
    %v6147 = vpack.c.b16 %v5787, %v5783
    %v6148 = vpack.c.b16 %v5792, %v5788
    %v6149 = vpack.c.b16 %v5793, %v5789
    %v6150 = vpack.c.b16 %v5794, %v5790
    %v6151 = vpack.c.b16 %v5795, %v5791
    %v6152 = vpack.c.b16 %v5800, %v5796
    %v6153 = vpack.c.b16 %v5801, %v5797
    %v6154 = vpack.c.b16 %v5802, %v5798
    %v6155 = vpack.c.b16 %v5803, %v5799
    %v6156 = vpack.c.b16 %v5808, %v5804
    %v6157 = vpack.c.b16 %v5809, %v5805
    %v6158 = vpack.c.b16 %v5810, %v5806
    %v6159 = vpack.c.b16 %v5811, %v5807
    %v6160 = vpack.c.b16 %v5816, %v5812
    %v6161 = vpack.c.b16 %v5817, %v5813
    %v6162 = vpack.c.b16 %v5818, %v5814
    %v6163 = vpack.c.b16 %v5819, %v5815
    %v6164 = vpack.c.b16 %v5824, %v5820
    %v6165 = vpack.c.b16 %v5825, %v5821
    %v6166 = vpack.c.b16 %v5826, %v5822
    %v6167 = vpack.c.b16 %v5827, %v5823
    %v6168 = vpack.c.b16 %v5832, %v5828
    %v6169 = vpack.c.b16 %v5833, %v5829
    %v6170 = vpack.c.b16 %v5834, %v5830
    %v6171 = vpack.c.b16 %v5835, %v5831
    %v6172 = vpack.c.b16 %v5840, %v5836
    %v6173 = vpack.c.b16 %v5841, %v5837
    %v6174 = vpack.c.b16 %v5842, %v5838
    %v6175 = vpack.c.b16 %v5843, %v5839
    %v6176 = vpack.c.b16 %v5848, %v5844
    %v6177 = vpack.c.b16 %v5849, %v5845
    %v6178 = vpack.c.b16 %v5850, %v5846
    %v6179 = vpack.c.b16 %v5851, %v5847
    %v6180 = vpack.c.b16 %v5856, %v5852
    %v6181 = vpack.c.b16 %v5857, %v5853
    %v6182 = vpack.c.b16 %v5858, %v5854
    %v6183 = vpack.c.b16 %v5859, %v5855
    %v6184 = vpack.c.b16 %v5864, %v5860
    %v6185 = vpack.c.b16 %v5865, %v5861
    %v6186 = vpack.c.b16 %v5866, %v5862
    %v6187 = vpack.c.b16 %v5867, %v5863
    %v6188 = vpack.c.b16 %v5872, %v5868
    %v6189 = vpack.c.b16 %v5873, %v5869
    %v6190 = vpack.c.b16 %v5874, %v5870
    %v6191 = vpack.c.b16 %v5875, %v5871
    %v6192 = vpack.c.b16 %v5880, %v5876
    %v6193 = vpack.c.b16 %v5881, %v5877
    %v6194 = vpack.c.b16 %v5882, %v5878
    %v6195 = vpack.c.b16 %v5883, %v5879
    %v6196 = vpack.c.b16 %v5888, %v5884
    %v6197 = vpack.c.b16 %v5889, %v5885
    %v6198 = vpack.c.b16 %v5890, %v5886
    %v6199 = vpack.c.b16 %v5891, %v5887
    %v6200 = vpack.c.b16 %v5896, %v5892
    %v6201 = vpack.c.b16 %v5897, %v5893
    %v6202 = vpack.c.b16 %v5898, %v5894
    %v6203 = vpack.c.b16 %v5899, %v5895
    %v6204 = vpack.c.b16 %v5904, %v5900
    %v6205 = vpack.c.b16 %v5905, %v5901
    %v6206 = vpack.c.b16 %v5906, %v5902
    %v6207 = vpack.c.b16 %v5907, %v5903
    %v6208 = vpack.c.b16 %v5912, %v5908
    %v6209 = vpack.c.b16 %v5913, %v5909
    %v6210 = vpack.c.b16 %v5914, %v5910
    %v6211 = vpack.c.b16 %v5915, %v5911
    %v6212 = vpack.c.b16 %v5920, %v5916
    %v6213 = vpack.c.b16 %v5921, %v5917
    %v6214 = vpack.c.b16 %v5922, %v5918
    %v6215 = vpack.c.b16 %v5923, %v5919
    %v6216 = vpack.c.b16 %v5928, %v5924
    %v6217 = vpack.c.b16 %v5929, %v5925
    %v6218 = vpack.c.b16 %v5930, %v5926
    %v6219 = vpack.c.b16 %v5931, %v5927
    %v6220 = vpack.c.b16 %v5936, %v5932
    %v6221 = vpack.c.b16 %v5937, %v5933
    %v6222 = vpack.c.b16 %v5938, %v5934
    %v6223 = vpack.c.b16 %v5939, %v5935
    %v6224 = vpack.c.b16 %v5944, %v5940
    %v6225 = vpack.c.b16 %v5945, %v5941
    %v6226 = vpack.c.b16 %v5946, %v5942
    %v6227 = vpack.c.b16 %v5947, %v5943
    %v6228 = vpack.c.b16 %v5952, %v5948
    %v6229 = vpack.c.b16 %v5953, %v5949
    %v6230 = vpack.c.b16 %v5954, %v5950
    %v6231 = vpack.c.b16 %v5955, %v5951
    %v6232 = vpack.c.b16 %v5960, %v5956
    %v6233 = vpack.c.b16 %v5961, %v5957
    %v6234 = vpack.c.b16 %v5962, %v5958
    %v6235 = vpack.c.b16 %v5963, %v5959
    %v6236 = vpack.c.b16 %v5968, %v5964
    %v6237 = vpack.c.b16 %v5969, %v5965
    %v6238 = vpack.c.b16 %v5970, %v5966
    %v6239 = vpack.c.b16 %v5971, %v5967
    %v6240 = vpack.c.b16 %v5976, %v5972
    %v6241 = vpack.c.b16 %v5977, %v5973
    %v6242 = vpack.c.b16 %v5978, %v5974
    %v6243 = vpack.c.b16 %v5979, %v5975
    %v6244 = vpack.c.b16 %v5984, %v5980
    %v6245 = vpack.c.b16 %v5985, %v5981
    %v6246 = vpack.c.b16 %v5986, %v5982
    %v6247 = vpack.c.b16 %v5987, %v5983
    %v6248 = vpack.c.b16 %v5992, %v5988
    %v6249 = vpack.c.b16 %v5993, %v5989
    %v6250 = vpack.c.b16 %v5994, %v5990
    %v6251 = vpack.c.b16 %v5995, %v5991
    %6508 = vmatprep.subr.bf16.mxu0 %v6025
    %6509 = vmatpush1.bf16.msra.mxu0 %v6024
    %6510 = vmatprep.subr.bf16.mxu0 %v6021
    %6511 = vmatpush1.bf16.msra.mxu0 %v6020
    %6512 = vmatprep.subr.bf16.mxu0 %v6017
    %6513 = vmatpush1.bf16.msra.mxu0 %v6016
    %6514 = vmatprep.subr.bf16.mxu0 %v6013
    %6515 = vmatpush1.bf16.msra.mxu0 %v6012
    %6516 = vmatprep.subr.bf16.mxu0 %v6009
    %6517 = vmatpush1.bf16.msra.mxu0 %v6008
    %6518 = vmatprep.subr.bf16.mxu0 %v6005
    %6519 = vmatpush1.bf16.msra.mxu0 %v6004
    %6520 = vmatprep.subr.bf16.mxu0 %v6001
    %6521 = vmatpush1.bf16.msra.mxu0 %v6000
    %6522 = vmatprep.subr.bf16.mxu0 %v5997
    %6523 = vmatpush1.bf16.msra.mxu0 %v5996
    %6524 = vmatprep.subr.bf16.mxu0 %v6057
    %6525 = vmatpush2.bf16.msra.mxu0 %v6056
    %6526 = vmatprep.subr.bf16.mxu0 %v6053
    %6527 = vmatpush2.bf16.msra.mxu0 %v6052
    %6528 = vmatprep.subr.bf16.mxu0 %v6049
    %6529 = vmatpush2.bf16.msra.mxu0 %v6048
    %6530 = vmatprep.subr.bf16.mxu0 %v6045
    %6531 = vmatpush2.bf16.msra.mxu0 %v6044
    %6532 = vmatprep.subr.bf16.mxu0 %v6041
    %6533 = vmatpush2.bf16.msra.mxu0 %v6040
    %6534 = vmatprep.subr.bf16.mxu0 %v6037
    %6535 = vmatpush2.bf16.msra.mxu0 %v6036
    %6536 = vmatprep.subr.bf16.mxu0 %v6033
    %6537 = vmatpush2.bf16.msra.mxu0 %v6032
    %6538 = vmatprep.subr.bf16.mxu0 %v6029
    %6539 = vmatpush2.bf16.msra.mxu0 %v6028
    %6540 = vmatprep.mubr.bf16.mxu0 %v4943
    %6541 = vmatmul.mubr.bf16.gmra.mxu0 %v4942
    %v6542 = vpop.f32.mrf.mxu0
    %v6543 = vadd.f32 %v5211, %v6542
    %v6544 = vpop.f32.mrf.mxu0
    %v6545 = vadd.f32 %v5215, %v6544
    %v6546 = vpop.f32.mrf.mxu0
    %v6547 = vpop.f32.mrf.mxu0
    %6548 = vdwg.mxu0
    %6549 = vmatprep.subr.bf16.mxu0 %v6089
    %6550 = vmatpush1.bf16.msra.mxu0 %v6088
    %6551 = vmatprep.subr.bf16.mxu0 %v6085
    %6552 = vmatpush1.bf16.msra.mxu0 %v6084
    %6553 = vmatprep.subr.bf16.mxu0 %v6081
    %6554 = vmatpush1.bf16.msra.mxu0 %v6080
    %6555 = vmatprep.subr.bf16.mxu0 %v6077
    %6556 = vmatpush1.bf16.msra.mxu0 %v6076
    %6557 = vmatprep.subr.bf16.mxu0 %v6073
    %6558 = vmatpush1.bf16.msra.mxu0 %v6072
    %6559 = vmatprep.subr.bf16.mxu0 %v6069
    %6560 = vmatpush1.bf16.msra.mxu0 %v6068
    %6561 = vmatprep.subr.bf16.mxu0 %v6065
    %6562 = vmatpush1.bf16.msra.mxu0 %v6064
    %6563 = vmatprep.subr.bf16.mxu0 %v6061
    %6564 = vmatpush1.bf16.msra.mxu0 %v6060
    %6565 = vmatprep.subr.bf16.mxu0 %v6121
    %6566 = vmatpush2.bf16.msra.mxu0 %v6120
    %6567 = vmatprep.subr.bf16.mxu0 %v6117
    %6568 = vmatpush2.bf16.msra.mxu0 %v6116
    %6569 = vmatprep.subr.bf16.mxu0 %v6113
    %6570 = vmatpush2.bf16.msra.mxu0 %v6112
    %6571 = vmatprep.subr.bf16.mxu0 %v6109
    %6572 = vmatpush2.bf16.msra.mxu0 %v6108
    %6573 = vmatprep.subr.bf16.mxu0 %v6105
    %6574 = vmatpush2.bf16.msra.mxu0 %v6104
    %6575 = vmatprep.subr.bf16.mxu0 %v6101
    %6576 = vmatpush2.bf16.msra.mxu0 %v6100
    %6577 = vmatprep.subr.bf16.mxu0 %v6097
    %6578 = vmatpush2.bf16.msra.mxu0 %v6096
    %6579 = vmatprep.subr.bf16.mxu0 %v6093
    %6580 = vmatpush2.bf16.msra.mxu0 %v6092
    %6581 = vmatprep.mubr.bf16.mxu0 %v4945
    %6582 = vmatmul.mubr.bf16.gmra.mxu0 %v4944
    %v6583 = vpop.f32.mrf.mxu0
    %v6584 = vadd.f32 %v6543, %v6583
    %v6585 = vpop.f32.mrf.mxu0
    %v6586 = vadd.f32 %v6545, %v6585
    %v6587 = vpop.f32.mrf.mxu0
    %v6588 = vpop.f32.mrf.mxu0
    %6589 = vdwg.mxu0
    %6590 = vmatprep.subr.bf16.mxu0 %v6153
    %6591 = vmatpush1.bf16.msra.mxu0 %v6152
    %6592 = vmatprep.subr.bf16.mxu0 %v6149
    %6593 = vmatpush1.bf16.msra.mxu0 %v6148
    %6594 = vmatprep.subr.bf16.mxu0 %v6145
    %6595 = vmatpush1.bf16.msra.mxu0 %v6144
    %6596 = vmatprep.subr.bf16.mxu0 %v6141
    %6597 = vmatpush1.bf16.msra.mxu0 %v6140
    %6598 = vmatprep.subr.bf16.mxu0 %v6137
    %6599 = vmatpush1.bf16.msra.mxu0 %v6136
    %6600 = vmatprep.subr.bf16.mxu0 %v6133
    %6601 = vmatpush1.bf16.msra.mxu0 %v6132
    %6602 = vmatprep.subr.bf16.mxu0 %v6129
    %6603 = vmatpush1.bf16.msra.mxu0 %v6128
    %6604 = vmatprep.subr.bf16.mxu0 %v6125
    %6605 = vmatpush1.bf16.msra.mxu0 %v6124
    %6606 = vmatprep.subr.bf16.mxu0 %v6185
    %6607 = vmatpush2.bf16.msra.mxu0 %v6184
    %6608 = vmatprep.subr.bf16.mxu0 %v6181
    %6609 = vmatpush2.bf16.msra.mxu0 %v6180
    %6610 = vmatprep.subr.bf16.mxu0 %v6177
    %6611 = vmatpush2.bf16.msra.mxu0 %v6176
    %6612 = vmatprep.subr.bf16.mxu0 %v6173
    %6613 = vmatpush2.bf16.msra.mxu0 %v6172
    %6614 = vmatprep.subr.bf16.mxu0 %v6169
    %6615 = vmatpush2.bf16.msra.mxu0 %v6168
    %6616 = vmatprep.subr.bf16.mxu0 %v6165
    %6617 = vmatpush2.bf16.msra.mxu0 %v6164
    %6618 = vmatprep.subr.bf16.mxu0 %v6161
    %6619 = vmatpush2.bf16.msra.mxu0 %v6160
    %6620 = vmatprep.subr.bf16.mxu0 %v6157
    %6621 = vmatpush2.bf16.msra.mxu0 %v6156
    %6622 = vmatprep.mubr.bf16.mxu0 %v4947
    %6623 = vmatmul.mubr.bf16.gmra.mxu0 %v4946
    %v6624 = vpop.f32.mrf.mxu0
    %v6625 = vadd.f32 %v6584, %v6624
    %v6626 = vpop.f32.mrf.mxu0
    %v6627 = vadd.f32 %v6586, %v6626
    %v6628 = vpop.f32.mrf.mxu0
    %v6629 = vpop.f32.mrf.mxu0
    %6630 = vdwg.mxu0
    %6631 = vmatprep.subr.bf16.mxu0 %v6217
    %6632 = vmatpush1.bf16.msra.mxu0 %v6216
    %6633 = vmatprep.subr.bf16.mxu0 %v6213
    %6634 = vmatpush1.bf16.msra.mxu0 %v6212
    %6635 = vmatprep.subr.bf16.mxu0 %v6209
    %6636 = vmatpush1.bf16.msra.mxu0 %v6208
    %6637 = vmatprep.subr.bf16.mxu0 %v6205
    %6638 = vmatpush1.bf16.msra.mxu0 %v6204
    %6639 = vmatprep.subr.bf16.mxu0 %v6201
    %6640 = vmatpush1.bf16.msra.mxu0 %v6200
    %6641 = vmatprep.subr.bf16.mxu0 %v6197
    %6642 = vmatpush1.bf16.msra.mxu0 %v6196
    %6643 = vmatprep.subr.bf16.mxu0 %v6193
    %6644 = vmatpush1.bf16.msra.mxu0 %v6192
    %6645 = vmatprep.subr.bf16.mxu0 %v6189
    %6646 = vmatpush1.bf16.msra.mxu0 %v6188
    %6647 = vmatprep.subr.bf16.mxu0 %v6249
    %6648 = vmatpush2.bf16.msra.mxu0 %v6248
    %6649 = vmatprep.subr.bf16.mxu0 %v6245
    %6650 = vmatpush2.bf16.msra.mxu0 %v6244
    %6651 = vmatprep.subr.bf16.mxu0 %v6241
    %6652 = vmatpush2.bf16.msra.mxu0 %v6240
    %6653 = vmatprep.subr.bf16.mxu0 %v6237
    %6654 = vmatpush2.bf16.msra.mxu0 %v6236
    %6655 = vmatprep.subr.bf16.mxu0 %v6233
    %6656 = vmatpush2.bf16.msra.mxu0 %v6232
    %6657 = vmatprep.subr.bf16.mxu0 %v6229
    %6658 = vmatpush2.bf16.msra.mxu0 %v6228
    %6659 = vmatprep.subr.bf16.mxu0 %v6225
    %6660 = vmatpush2.bf16.msra.mxu0 %v6224
    %6661 = vmatprep.subr.bf16.mxu0 %v6221
    %6662 = vmatpush2.bf16.msra.mxu0 %v6220
    %6663 = vmatprep.mubr.bf16.mxu0 %v4949
    %6664 = vmatmul.mubr.bf16.gmra.mxu0 %v4948
    %v6665 = vpop.f32.mrf.mxu0
    %v6666 = vadd.f32 %v6625, %v6665
    %v6667 = vpop.f32.mrf.mxu0
    %v6668 = vadd.f32 %v6627, %v6667
    %v6669 = vpop.f32.mrf.mxu0
    %v6670 = vpop.f32.mrf.mxu0
    %6671 = vdwg.mxu0
    %6672 = vmatprep.subr.bf16.mxu0 %v6027
    %6673 = vmatpush1.bf16.msra.mxu0 %v6026
    %6674 = vmatprep.subr.bf16.mxu0 %v6023
    %6675 = vmatpush1.bf16.msra.mxu0 %v6022
    %6676 = vmatprep.subr.bf16.mxu0 %v6019
    %6677 = vmatpush1.bf16.msra.mxu0 %v6018
    %6678 = vmatprep.subr.bf16.mxu0 %v6015
    %6679 = vmatpush1.bf16.msra.mxu0 %v6014
    %6680 = vmatprep.subr.bf16.mxu0 %v6011
    %6681 = vmatpush1.bf16.msra.mxu0 %v6010
    %6682 = vmatprep.subr.bf16.mxu0 %v6007
    %6683 = vmatpush1.bf16.msra.mxu0 %v6006
    %6684 = vmatprep.subr.bf16.mxu0 %v6003
    %6685 = vmatpush1.bf16.msra.mxu0 %v6002
    %6686 = vmatprep.subr.bf16.mxu0 %v5999
    %6687 = vmatpush1.bf16.msra.mxu0 %v5998
    %6688 = vmatprep.subr.bf16.mxu0 %v6059
    %6689 = vmatpush2.bf16.msra.mxu0 %v6058
    %6690 = vmatprep.subr.bf16.mxu0 %v6055
    %6691 = vmatpush2.bf16.msra.mxu0 %v6054
    %6692 = vmatprep.subr.bf16.mxu0 %v6051
    %6693 = vmatpush2.bf16.msra.mxu0 %v6050
    %6694 = vmatprep.subr.bf16.mxu0 %v6047
    %6695 = vmatpush2.bf16.msra.mxu0 %v6046
    %6696 = vmatprep.subr.bf16.mxu0 %v6043
    %6697 = vmatpush2.bf16.msra.mxu0 %v6042
    %6698 = vmatprep.subr.bf16.mxu0 %v6039
    %6699 = vmatpush2.bf16.msra.mxu0 %v6038
    %6700 = vmatprep.subr.bf16.mxu0 %v6035
    %6701 = vmatpush2.bf16.msra.mxu0 %v6034
    %6702 = vmatprep.subr.bf16.mxu0 %v6031
    %6703 = vmatpush2.bf16.msra.mxu0 %v6030
    %6704 = vmatprep.mubr.bf16.mxu0 %v4943
    %6705 = vmatmul.mubr.bf16.gmra.mxu0 %v4942
    %v6706 = vpop.f32.mrf.mxu0
    %v6707 = vadd.f32 %v5219, %v6706
    %v6708 = vpop.f32.mrf.mxu0
    %v6709 = vadd.f32 %v5223, %v6708
    %v6710 = vpop.f32.mrf.mxu0
    %v6711 = vpop.f32.mrf.mxu0
    %6712 = vdwg.mxu0
    %6713 = vmatprep.subr.bf16.mxu0 %v6091
    %6714 = vmatpush1.bf16.msra.mxu0 %v6090
    %6715 = vmatprep.subr.bf16.mxu0 %v6087
    %6716 = vmatpush1.bf16.msra.mxu0 %v6086
    %6717 = vmatprep.subr.bf16.mxu0 %v6083
    %6718 = vmatpush1.bf16.msra.mxu0 %v6082
    %6719 = vmatprep.subr.bf16.mxu0 %v6079
    %6720 = vmatpush1.bf16.msra.mxu0 %v6078
    %6721 = vmatprep.subr.bf16.mxu0 %v6075
    %6722 = vmatpush1.bf16.msra.mxu0 %v6074
    %6723 = vmatprep.subr.bf16.mxu0 %v6071
    %6724 = vmatpush1.bf16.msra.mxu0 %v6070
    %6725 = vmatprep.subr.bf16.mxu0 %v6067
    %6726 = vmatpush1.bf16.msra.mxu0 %v6066
    %6727 = vmatprep.subr.bf16.mxu0 %v6063
    %6728 = vmatpush1.bf16.msra.mxu0 %v6062
    %6729 = vmatprep.subr.bf16.mxu0 %v6123
    %6730 = vmatpush2.bf16.msra.mxu0 %v6122
    %6731 = vmatprep.subr.bf16.mxu0 %v6119
    %6732 = vmatpush2.bf16.msra.mxu0 %v6118
    %6733 = vmatprep.subr.bf16.mxu0 %v6115
    %6734 = vmatpush2.bf16.msra.mxu0 %v6114
    %6735 = vmatprep.subr.bf16.mxu0 %v6111
    %6736 = vmatpush2.bf16.msra.mxu0 %v6110
    %6737 = vmatprep.subr.bf16.mxu0 %v6107
    %6738 = vmatpush2.bf16.msra.mxu0 %v6106
    %6739 = vmatprep.subr.bf16.mxu0 %v6103
    %6740 = vmatpush2.bf16.msra.mxu0 %v6102
    %6741 = vmatprep.subr.bf16.mxu0 %v6099
    %6742 = vmatpush2.bf16.msra.mxu0 %v6098
    %6743 = vmatprep.subr.bf16.mxu0 %v6095
    %6744 = vmatpush2.bf16.msra.mxu0 %v6094
    %6745 = vmatprep.mubr.bf16.mxu0 %v4945
    %6746 = vmatmul.mubr.bf16.gmra.mxu0 %v4944
    %v6747 = vpop.f32.mrf.mxu0
    %v6748 = vadd.f32 %v6707, %v6747
    %v6749 = vpop.f32.mrf.mxu0
    %v6750 = vadd.f32 %v6709, %v6749
    %v6751 = vpop.f32.mrf.mxu0
    %v6752 = vpop.f32.mrf.mxu0
    %6753 = vdwg.mxu0
    %6754 = vmatprep.subr.bf16.mxu0 %v6155
    %6755 = vmatpush1.bf16.msra.mxu0 %v6154
    %6756 = vmatprep.subr.bf16.mxu0 %v6151
    %6757 = vmatpush1.bf16.msra.mxu0 %v6150
    %6758 = vmatprep.subr.bf16.mxu0 %v6147
    %6759 = vmatpush1.bf16.msra.mxu0 %v6146
    %6760 = vmatprep.subr.bf16.mxu0 %v6143
    %6761 = vmatpush1.bf16.msra.mxu0 %v6142
    %6762 = vmatprep.subr.bf16.mxu0 %v6139
    %6763 = vmatpush1.bf16.msra.mxu0 %v6138
    %6764 = vmatprep.subr.bf16.mxu0 %v6135
    %6765 = vmatpush1.bf16.msra.mxu0 %v6134
    %6766 = vmatprep.subr.bf16.mxu0 %v6131
    %6767 = vmatpush1.bf16.msra.mxu0 %v6130
    %6768 = vmatprep.subr.bf16.mxu0 %v6127
    %6769 = vmatpush1.bf16.msra.mxu0 %v6126
    %6770 = vmatprep.subr.bf16.mxu0 %v6187
    %6771 = vmatpush2.bf16.msra.mxu0 %v6186
    %6772 = vmatprep.subr.bf16.mxu0 %v6183
    %6773 = vmatpush2.bf16.msra.mxu0 %v6182
    %6774 = vmatprep.subr.bf16.mxu0 %v6179
    %6775 = vmatpush2.bf16.msra.mxu0 %v6178
    %6776 = vmatprep.subr.bf16.mxu0 %v6175
    %6777 = vmatpush2.bf16.msra.mxu0 %v6174
    %6778 = vmatprep.subr.bf16.mxu0 %v6171
    %6779 = vmatpush2.bf16.msra.mxu0 %v6170
    %6780 = vmatprep.subr.bf16.mxu0 %v6167
    %6781 = vmatpush2.bf16.msra.mxu0 %v6166
    %6782 = vmatprep.subr.bf16.mxu0 %v6163
    %6783 = vmatpush2.bf16.msra.mxu0 %v6162
    %6784 = vmatprep.subr.bf16.mxu0 %v6159
    %6785 = vmatpush2.bf16.msra.mxu0 %v6158
    %6786 = vmatprep.mubr.bf16.mxu0 %v4947
    %6787 = vmatmul.mubr.bf16.gmra.mxu0 %v4946
    %v6788 = vpop.f32.mrf.mxu0
    %v6789 = vadd.f32 %v6748, %v6788
    %v6790 = vpop.f32.mrf.mxu0
    %v6791 = vadd.f32 %v6750, %v6790
    %v6792 = vpop.f32.mrf.mxu0
    %v6793 = vpop.f32.mrf.mxu0
    %6794 = vdwg.mxu0
    %6795 = vmatprep.subr.bf16.mxu0 %v6219
    %6796 = vmatpush1.bf16.msra.mxu0 %v6218
    %6797 = vmatprep.subr.bf16.mxu0 %v6215
    %6798 = vmatpush1.bf16.msra.mxu0 %v6214
    %6799 = vmatprep.subr.bf16.mxu0 %v6211
    %6800 = vmatpush1.bf16.msra.mxu0 %v6210
    %6801 = vmatprep.subr.bf16.mxu0 %v6207
    %6802 = vmatpush1.bf16.msra.mxu0 %v6206
    %6803 = vmatprep.subr.bf16.mxu0 %v6203
    %6804 = vmatpush1.bf16.msra.mxu0 %v6202
    %6805 = vmatprep.subr.bf16.mxu0 %v6199
    %6806 = vmatpush1.bf16.msra.mxu0 %v6198
    %6807 = vmatprep.subr.bf16.mxu0 %v6195
    %6808 = vmatpush1.bf16.msra.mxu0 %v6194
    %6809 = vmatprep.subr.bf16.mxu0 %v6191
    %6810 = vmatpush1.bf16.msra.mxu0 %v6190
    %6811 = vmatprep.subr.bf16.mxu0 %v6251
    %6812 = vmatpush2.bf16.msra.mxu0 %v6250
    %6813 = vmatprep.subr.bf16.mxu0 %v6247
    %6814 = vmatpush2.bf16.msra.mxu0 %v6246
    %6815 = vmatprep.subr.bf16.mxu0 %v6243
    %6816 = vmatpush2.bf16.msra.mxu0 %v6242
    %6817 = vmatprep.subr.bf16.mxu0 %v6239
    %6818 = vmatpush2.bf16.msra.mxu0 %v6238
    %6819 = vmatprep.subr.bf16.mxu0 %v6235
    %6820 = vmatpush2.bf16.msra.mxu0 %v6234
    %6821 = vmatprep.subr.bf16.mxu0 %v6231
    %6822 = vmatpush2.bf16.msra.mxu0 %v6230
    %6823 = vmatprep.subr.bf16.mxu0 %v6227
    %6824 = vmatpush2.bf16.msra.mxu0 %v6226
    %6825 = vmatprep.subr.bf16.mxu0 %v6223
    %6826 = vmatpush2.bf16.msra.mxu0 %v6222
    %6827 = vmatprep.mubr.bf16.mxu0 %v4949
    %6828 = vmatmul.mubr.bf16.gmra.mxu0 %v4948
    %v6829 = vpop.f32.mrf.mxu0
    %v6830 = vadd.f32 %v6789, %v6829
    %v6831 = vpop.f32.mrf.mxu0
    %v6832 = vadd.f32 %v6791, %v6831
    %v6833 = vpop.f32.mrf.mxu0
    %v6834 = vpop.f32.mrf.mxu0
    %6835 = vdwg.mxu0
    %vm6836 = vcmp.gt.f32.partialorder %v6666, 0.0
    %vm6837 = vcmp.gt.f32.partialorder %v6668, 0.0
    %vm6838 = vcmp.gt.f32.partialorder %v6830, 0.0
    %vm6839 = vcmp.gt.f32.partialorder %v6832, 0.0
    %v6840 = vmul.f32 %v6666, 0.01
    %v6841 = vmul.f32 %v6668, 0.01
    %v6842 = vmul.f32 %v6830, 0.01
    %v6843 = vmul.f32 %v6832, 0.01
    %v6844 = vsel %vm6836, %v6666, %v6840
    %v6845 = vsel %vm6837, %v6668, %v6841
    %v6846 = vsel %vm6838, %v6830, %v6842
    %v6847 = vsel %vm6839, %v6832, %v6843
    %v6848 = vpack.c.bf16 %v6844, %v6844
    %v6849 = vpack.c.bf16 %v6845, %v6845
    %v6850 = vpack.c.bf16 %v6846, %v6846
    %v6851 = vpack.c.bf16 %v6847, %v6847
    %v6852 = vld [vmem:[#allocation12] sm:$0xf]
    %v6853 = vld [vmem:[#allocation12 + $0x4] sm:$0xf]
    %v6854 = vld [vmem:[#allocation12 + $0x8] sm:$0xf]
    %v6855 = vld [vmem:[#allocation12 + $0xc] sm:$0xf]
    %v6856 = vld [vmem:[#allocation12 + $0x10] sm:$0xf]
    %v6857 = vld [vmem:[#allocation12 + $0x14] sm:$0xf]
    %v6858 = vld [vmem:[#allocation12 + $0x18] sm:$0xf]
    %v6859 = vld [vmem:[#allocation12 + $0x1c] sm:$0xf]
    %v6860 = vld [vmem:[#allocation12 + $0x20] sm:$0xf]
    %v6861 = vld [vmem:[#allocation12 + $0x24] sm:$0xf]
    %v6862 = vld [vmem:[#allocation12 + $0x28] sm:$0xf]
    %v6863 = vld [vmem:[#allocation12 + $0x2c] sm:$0xf]
    %v6864 = vld [vmem:[#allocation12 + $0x30] sm:$0xf]
    %v6865 = vld [vmem:[#allocation12 + $0x34] sm:$0xf]
    %v6866 = vld [vmem:[#allocation12 + $0x38] sm:$0xf]
    %v6867 = vld [vmem:[#allocation12 + $0x3c] sm:$0xf]
    %v6868 = vld [vmem:[#allocation12 + $0x40] sm:$0xf]
    %v6869 = vld [vmem:[#allocation12 + $0x44] sm:$0xf]
    %v6870 = vld [vmem:[#allocation12 + $0x48] sm:$0xf]
    %v6871 = vld [vmem:[#allocation12 + $0x4c] sm:$0xf]
    %v6872 = vld [vmem:[#allocation12 + $0x50] sm:$0xf]
    %v6873 = vld [vmem:[#allocation12 + $0x54] sm:$0xf]
    %v6874 = vld [vmem:[#allocation12 + $0x58] sm:$0xf]
    %v6875 = vld [vmem:[#allocation12 + $0x5c] sm:$0xf]
    %v6876 = vld [vmem:[#allocation12 + $0x60] sm:$0xf]
    %v6877 = vld [vmem:[#allocation12 + $0x64] sm:$0xf]
    %v6878 = vld [vmem:[#allocation12 + $0x68] sm:$0xf]
    %v6879 = vld [vmem:[#allocation12 + $0x6c] sm:$0xf]
    %v6880 = vld [vmem:[#allocation12 + $0x70] sm:$0xf]
    %v6881 = vld [vmem:[#allocation12 + $0x74] sm:$0xf]
    %v6882 = vld [vmem:[#allocation12 + $0x78] sm:$0xf]
    %v6883 = vld [vmem:[#allocation12 + $0x7c] sm:$0xf]
    %v6884 = vld [vmem:[#allocation12 + $0x80] sm:$0xf]
    %v6885 = vld [vmem:[#allocation12 + $0x84] sm:$0xf]
    %v6886 = vld [vmem:[#allocation12 + $0x88] sm:$0xf]
    %v6887 = vld [vmem:[#allocation12 + $0x8c] sm:$0xf]
    %v6888 = vld [vmem:[#allocation12 + $0x90] sm:$0xf]
    %v6889 = vld [vmem:[#allocation12 + $0x94] sm:$0xf]
    %v6890 = vld [vmem:[#allocation12 + $0x98] sm:$0xf]
    %v6891 = vld [vmem:[#allocation12 + $0x9c] sm:$0xf]
    %v6892 = vld [vmem:[#allocation12 + $0xa0] sm:$0xf]
    %v6893 = vld [vmem:[#allocation12 + $0xa4] sm:$0xf]
    %v6894 = vld [vmem:[#allocation12 + $0xa8] sm:$0xf]
    %v6895 = vld [vmem:[#allocation12 + $0xac] sm:$0xf]
    %v6896 = vld [vmem:[#allocation12 + $0xb0] sm:$0xf]
    %v6897 = vld [vmem:[#allocation12 + $0xb4] sm:$0xf]
    %v6898 = vld [vmem:[#allocation12 + $0xb8] sm:$0xf]
    %v6899 = vld [vmem:[#allocation12 + $0xbc] sm:$0xf]
    %v6900 = vld [vmem:[#allocation12 + $0xc0] sm:$0xf]
    %v6901 = vld [vmem:[#allocation12 + $0xc4] sm:$0xf]
    %v6902 = vld [vmem:[#allocation12 + $0xc8] sm:$0xf]
    %v6903 = vld [vmem:[#allocation12 + $0xcc] sm:$0xf]
    %v6904 = vld [vmem:[#allocation12 + $0xd0] sm:$0xf]
    %v6905 = vld [vmem:[#allocation12 + $0xd4] sm:$0xf]
    %v6906 = vld [vmem:[#allocation12 + $0xd8] sm:$0xf]
    %v6907 = vld [vmem:[#allocation12 + $0xdc] sm:$0xf]
    %v6908 = vld [vmem:[#allocation12 + $0xe0] sm:$0xf]
    %v6909 = vld [vmem:[#allocation12 + $0xe4] sm:$0xf]
    %v6910 = vld [vmem:[#allocation12 + $0xe8] sm:$0xf]
    %v6911 = vld [vmem:[#allocation12 + $0xec] sm:$0xf]
    %v6912 = vld [vmem:[#allocation12 + $0xf0] sm:$0xf]
    %v6913 = vld [vmem:[#allocation12 + $0xf4] sm:$0xf]
    %v6914 = vld [vmem:[#allocation12 + $0xf8] sm:$0xf]
    %v6915 = vld [vmem:[#allocation12 + $0xfc] sm:$0xf]
    %v6916 = vld [vmem:[#allocation13] sm:$0x1]
    %v6918 = vlaneseq
    %v6919 = vshrl.u32 %v6918, 7
    %v6920 = vsub.s32 0, %v6919
    %v6921 = vrot.slane %v6916, %v6920
    %v6987 = vunpack.c.l.b16 %v6852
    %v6988 = vunpack.c.l.b16 %v6853
    %v6989 = vunpack.c.l.b16 %v6854
    %v6990 = vunpack.c.l.b16 %v6855
    %v6991 = vunpack.c.l.b16 %v6856
    %v6992 = vunpack.c.l.b16 %v6857
    %v6993 = vunpack.c.l.b16 %v6858
    %v6994 = vunpack.c.l.b16 %v6859
    %v6995 = vunpack.c.l.b16 %v6860
    %v6996 = vunpack.c.l.b16 %v6861
    %v6997 = vunpack.c.l.b16 %v6862
    %v6998 = vunpack.c.l.b16 %v6863
    %v6999 = vunpack.c.l.b16 %v6864
    %v7000 = vunpack.c.l.b16 %v6865
    %v7001 = vunpack.c.l.b16 %v6866
    %v7002 = vunpack.c.l.b16 %v6867
    %v7003 = vunpack.c.l.b16 %v6868
    %v7004 = vunpack.c.l.b16 %v6869
    %v7005 = vunpack.c.l.b16 %v6870
    %v7006 = vunpack.c.l.b16 %v6871
    %v7007 = vunpack.c.l.b16 %v6872
    %v7008 = vunpack.c.l.b16 %v6873
    %v7009 = vunpack.c.l.b16 %v6874
    %v7010 = vunpack.c.l.b16 %v6875
    %v7011 = vunpack.c.l.b16 %v6876
    %v7012 = vunpack.c.l.b16 %v6877
    %v7013 = vunpack.c.l.b16 %v6878
    %v7014 = vunpack.c.l.b16 %v6879
    %v7015 = vunpack.c.l.b16 %v6880
    %v7016 = vunpack.c.l.b16 %v6881
    %v7017 = vunpack.c.l.b16 %v6882
    %v7018 = vunpack.c.l.b16 %v6883
    %v7019 = vunpack.c.l.b16 %v6884
    %v7020 = vunpack.c.l.b16 %v6885
    %v7021 = vunpack.c.l.b16 %v6886
    %v7022 = vunpack.c.l.b16 %v6887
    %v7023 = vunpack.c.l.b16 %v6888
    %v7024 = vunpack.c.l.b16 %v6889
    %v7025 = vunpack.c.l.b16 %v6890
    %v7026 = vunpack.c.l.b16 %v6891
    %v7027 = vunpack.c.l.b16 %v6892
    %v7028 = vunpack.c.l.b16 %v6893
    %v7029 = vunpack.c.l.b16 %v6894
    %v7030 = vunpack.c.l.b16 %v6895
    %v7031 = vunpack.c.l.b16 %v6896
    %v7032 = vunpack.c.l.b16 %v6897
    %v7033 = vunpack.c.l.b16 %v6898
    %v7034 = vunpack.c.l.b16 %v6899
    %v7035 = vunpack.c.l.b16 %v6900
    %v7036 = vunpack.c.l.b16 %v6901
    %v7037 = vunpack.c.l.b16 %v6902
    %v7038 = vunpack.c.l.b16 %v6903
    %v7039 = vunpack.c.l.b16 %v6904
    %v7040 = vunpack.c.l.b16 %v6905
    %v7041 = vunpack.c.l.b16 %v6906
    %v7042 = vunpack.c.l.b16 %v6907
    %v7043 = vunpack.c.l.b16 %v6908
    %v7044 = vunpack.c.l.b16 %v6909
    %v7045 = vunpack.c.l.b16 %v6910
    %v7046 = vunpack.c.l.b16 %v6911
    %v7047 = vunpack.c.l.b16 %v6912
    %v7048 = vunpack.c.l.b16 %v6913
    %v7049 = vunpack.c.l.b16 %v6914
    %v7050 = vunpack.c.l.b16 %v6915
    %v7051 = vpack.c.b16 %v6988, %v6987
    %v7052 = vpack.c.b16 %v6990, %v6989
    %v7053 = vpack.c.b16 %v6992, %v6991
    %v7054 = vpack.c.b16 %v6994, %v6993
    %v7055 = vpack.c.b16 %v6996, %v6995
    %v7056 = vpack.c.b16 %v6998, %v6997
    %v7057 = vpack.c.b16 %v7000, %v6999
    %v7058 = vpack.c.b16 %v7002, %v7001
    %v7059 = vpack.c.b16 %v7004, %v7003
    %v7060 = vpack.c.b16 %v7006, %v7005
    %v7061 = vpack.c.b16 %v7008, %v7007
    %v7062 = vpack.c.b16 %v7010, %v7009
    %v7063 = vpack.c.b16 %v7012, %v7011
    %v7064 = vpack.c.b16 %v7014, %v7013
    %v7065 = vpack.c.b16 %v7016, %v7015
    %v7066 = vpack.c.b16 %v7018, %v7017
    %v7067 = vpack.c.b16 %v7020, %v7019
    %v7068 = vpack.c.b16 %v7022, %v7021
    %v7069 = vpack.c.b16 %v7024, %v7023
    %v7070 = vpack.c.b16 %v7026, %v7025
    %v7071 = vpack.c.b16 %v7028, %v7027
    %v7072 = vpack.c.b16 %v7030, %v7029
    %v7073 = vpack.c.b16 %v7032, %v7031
    %v7074 = vpack.c.b16 %v7034, %v7033
    %v7075 = vpack.c.b16 %v7036, %v7035
    %v7076 = vpack.c.b16 %v7038, %v7037
    %v7077 = vpack.c.b16 %v7040, %v7039
    %v7078 = vpack.c.b16 %v7042, %v7041
    %v7079 = vpack.c.b16 %v7044, %v7043
    %v7080 = vpack.c.b16 %v7046, %v7045
    %v7081 = vpack.c.b16 %v7048, %v7047
    %v7082 = vpack.c.b16 %v7050, %v7049
    %7115 = vmatprep.subr.bf16.mxu0 0
    %7116 = vmatpush1.bf16.msra.mxu0 %v7058
    %7117 = vmatprep.subr.bf16.mxu0 0
    %7118 = vmatpush1.bf16.msra.mxu0 %v7057
    %7119 = vmatprep.subr.bf16.mxu0 0
    %7120 = vmatpush1.bf16.msra.mxu0 %v7056
    %7121 = vmatprep.subr.bf16.mxu0 0
    %7122 = vmatpush1.bf16.msra.mxu0 %v7055
    %7123 = vmatprep.subr.bf16.mxu0 0
    %7124 = vmatpush1.bf16.msra.mxu0 %v7054
    %7125 = vmatprep.subr.bf16.mxu0 0
    %7126 = vmatpush1.bf16.msra.mxu0 %v7053
    %7127 = vmatprep.subr.bf16.mxu0 0
    %7128 = vmatpush1.bf16.msra.mxu0 %v7052
    %7129 = vmatprep.subr.bf16.mxu0 0
    %7130 = vmatpush1.bf16.msra.mxu0 %v7051
    %7131 = vmatprep.subr.bf16.mxu0 0
    %7132 = vmatpush2.bf16.msra.mxu0 %v7066
    %7133 = vmatprep.subr.bf16.mxu0 0
    %7134 = vmatpush2.bf16.msra.mxu0 %v7065
    %7135 = vmatprep.subr.bf16.mxu0 0
    %7136 = vmatpush2.bf16.msra.mxu0 %v7064
    %7137 = vmatprep.subr.bf16.mxu0 0
    %7138 = vmatpush2.bf16.msra.mxu0 %v7063
    %7139 = vmatprep.subr.bf16.mxu0 0
    %7140 = vmatpush2.bf16.msra.mxu0 %v7062
    %7141 = vmatprep.subr.bf16.mxu0 0
    %7142 = vmatpush2.bf16.msra.mxu0 %v7061
    %7143 = vmatprep.subr.bf16.mxu0 0
    %7144 = vmatpush2.bf16.msra.mxu0 %v7060
    %7145 = vmatprep.subr.bf16.mxu0 0
    %7146 = vmatpush2.bf16.msra.mxu0 %v7059
    %7147 = vmatprep.mubr.bf16.mxu0 %v6849
    %7148 = vmatmul.mubr.bf16.gmra.mxu0 %v6848
    %v7149 = vpop.f32.mrf.mxu0
    %v7150 = vadd.f32 %v6921, %v7149
    %v7151 = vpop.f32.mrf.mxu0
    %v7152 = vpop.f32.mrf.mxu0
    %v7153 = vpop.f32.mrf.mxu0
    %7154 = vdwg.mxu0
    %7155 = vmatprep.subr.bf16.mxu0 0
    %7156 = vmatpush1.bf16.msra.mxu0 %v7074
    %7157 = vmatprep.subr.bf16.mxu0 0
    %7158 = vmatpush1.bf16.msra.mxu0 %v7073
    %7159 = vmatprep.subr.bf16.mxu0 0
    %7160 = vmatpush1.bf16.msra.mxu0 %v7072
    %7161 = vmatprep.subr.bf16.mxu0 0
    %7162 = vmatpush1.bf16.msra.mxu0 %v7071
    %7163 = vmatprep.subr.bf16.mxu0 0
    %7164 = vmatpush1.bf16.msra.mxu0 %v7070
    %7165 = vmatprep.subr.bf16.mxu0 0
    %7166 = vmatpush1.bf16.msra.mxu0 %v7069
    %7167 = vmatprep.subr.bf16.mxu0 0
    %7168 = vmatpush1.bf16.msra.mxu0 %v7068
    %7169 = vmatprep.subr.bf16.mxu0 0
    %7170 = vmatpush1.bf16.msra.mxu0 %v7067
    %7171 = vmatprep.subr.bf16.mxu0 0
    %7172 = vmatpush2.bf16.msra.mxu0 %v7082
    %7173 = vmatprep.subr.bf16.mxu0 0
    %7174 = vmatpush2.bf16.msra.mxu0 %v7081
    %7175 = vmatprep.subr.bf16.mxu0 0
    %7176 = vmatpush2.bf16.msra.mxu0 %v7080
    %7177 = vmatprep.subr.bf16.mxu0 0
    %7178 = vmatpush2.bf16.msra.mxu0 %v7079
    %7179 = vmatprep.subr.bf16.mxu0 0
    %7180 = vmatpush2.bf16.msra.mxu0 %v7078
    %7181 = vmatprep.subr.bf16.mxu0 0
    %7182 = vmatpush2.bf16.msra.mxu0 %v7077
    %7183 = vmatprep.subr.bf16.mxu0 0
    %7184 = vmatpush2.bf16.msra.mxu0 %v7076
    %7185 = vmatprep.subr.bf16.mxu0 0
    %7186 = vmatpush2.bf16.msra.mxu0 %v7075
    %7187 = vmatprep.mubr.bf16.mxu0 %v6851
    %7188 = vmatmul.mubr.bf16.gmra.mxu0 %v6850
    %v7189 = vpop.f32.mrf.mxu0
    %v7190 = vadd.f32 %v7150, %v7189
    %v7191 = vpop.f32.mrf.mxu0
    %v7192 = vpop.f32.mrf.mxu0
    %v7193 = vpop.f32.mrf.mxu0
    %7194 = vdwg.mxu0
    %7195 = vst [vmem:[%s9] sm:$0xff] %v7190
    // Predicated region
    $region70: #{base_model_forward.1} parent=1 // pred_check
      _
    $region71: #{base_model_forward.1} parent=1 // pred_check_branch
      %7197 = sbr.rel (0) target = $region73
    $region72: #{base_model_forward.1} parent=1 // pred_region
      _
    $region73: #{base_model_forward.1} parent=1 // pred_fallthru
      _
    // Predicated region
    $region74: #{base_model_forward.1} parent=1 // pred_check
      _
    $region75: #{base_model_forward.1} parent=1 // pred_check_branch
      %7199 = sbr.rel (0) target = $region77
    $region76: #{base_model_forward.1} parent=1 // pred_region
      _
    $region77: #{base_model_forward.1} parent=1 // pred_fallthru
      _
    %7200 = vsyncpa [#allocation3], 1
    %7201 = vsyncpa [#allocation5], 1
    %7202 = vsyncpa [#allocation8], 1
    %7203 = vsyncpa [#allocation11], 1
    %7204 = vsyncpa [#allocation14], 1

</llo_original>
